<compile_context>
chip_gen: v6e
topology: v6e:2x2x1
jax: 0.10.0
libtpu: 0.0.40
codegen_flags: <defaults>
</compile_context>

<pallas_src>
import functools

import jax
import jax.numpy as jnp
import numpy as np
from jax import lax
from jax.experimental import pallas as pl
from jax.experimental.pallas import tpu as pltpu


def _round_up(x, m):
    return (x + m - 1) // m * m


def _vmem_bytes(shape, dtype):
    """Approximate VMEM footprint of one block (last two dims tile-padded)."""
    shape = tuple(int(s) for s in shape)
    if len(shape) >= 2:
        padded = shape[:-2] + (_round_up(shape[-2], 8), _round_up(shape[-1], 128))
    else:
        padded = (_round_up(shape[0], 128),)
    return int(np.prod(padded)) * jnp.dtype(dtype).itemsize


# ----------------------------- Pallas kernel ------------------------------- #
def _make_conv_kernel(kh, kw, stride, tr, wo, cin, cout):
    """Kernel for one (batch, row-tile) grid step.

    x_ref: (1, Hp, Wp, Cin)        bf16  padded NHWC slab for this batch (resident)
    w_ref: (1, kh, kw, Cin, Cout)        per-batch folded weight (resident, tiny)
    b_ref: (1, 1, Cout)            f32   per-batch folded bias
    o_ref: (1, TR, Wo, Cout)             lane-tight bf16 output row tile
    """

    def kernel(x_ref, w_ref, b_ref, o_ref):
        r = pl.program_id(1)
        row0 = pl.multiple_of(r * (tr * stride), tr * stride)
        acc = jnp.zeros((tr * wo, cout), jnp.float32)
        # In-kernel im2col: accumulate one small MXU matmul per (i, j) tap over
        # the shifted input window — no patch tensor ever touches HBM.
        for i in range(kh):
            for j in range(kw):
                if stride == 1:
                    win = x_ref[0, pl.ds(row0 + i, tr), pl.ds(j, wo), :]
                else:
                    # TODO(synk): strided pl.ds tap path (stride > 1) is untested on HW.
                    win = x_ref[0, pl.ds(row0 + i, tr, stride),
                                pl.ds(j, wo, stride), :]
                patches = win.reshape(tr * wo, cin)
                acc = acc + jnp.dot(patches, w_ref[0, i, j],
                                    preferred_element_type=jnp.float32)
        acc = acc + b_ref[0]                       # (1, Cout) broadcast over rows
        o_ref[0] = acc.reshape(tr, wo, cout).astype(o_ref.dtype)

    return kernel


# ------------------------------ JAX wrapper --------------------------------- #
def new_struct_lora_conv(x_nchw, c_nc11, params, *, stride, padding, lora_scale,
                         target_tile_positions=2048,
                         weight_dtype=jnp.bfloat16, out_dtype=jnp.bfloat16):
    """Forward pass matching NewStructLoRAConv.forward. Returns NCHW output.

    lora_scale must be a static Python float (same Python-level early-out as
    the PyTorch module). Set weight_dtype=jnp.float32 if the LoRA delta is much
    smaller than the frozen weight (e.g. right after the zero-init of B).
    """
    B, Cin, H, W = x_nchw.shape
    kh, kw, _, Cout = params["w_weight"].shape

    Ho = (H + 2 * padding - kh) // stride + 1
    Wo = (W + 2 * padding - kw) // stride + 1

    # ---- output-row tiling (aim for ~target_tile_positions per grid step) ----
    TR = max(1, min(Ho, target_tile_positions // max(Wo, 1)))
    n_rt = -(-Ho // TR)                      # cdiv
    Ho_pad = n_rt * TR

    # ---- input: NCHW -> NHWC, bf16, single fused spatial pad ------------------
    x = jnp.transpose(x_nchw, (0, 2, 3, 1)).astype(jnp.bfloat16)
    Hp = max(H + 2 * padding, (Ho_pad - 1) * stride + kh)   # cover padded row tiles
    Wp = W + 2 * padding
    x_pad = jnp.pad(
        x, ((0, 0), (padding, Hp - H - padding), (padding, Wp - W - padding), (0, 0)))

    # ---- per-batch effective weight/bias fold (f32; tiny vs. main conv) ------
    ww = params["w_weight"].astype(jnp.float32)              # (kh, kw, Cin, Cout)
    bw = params["w_bias"].astype(jnp.float32)                # (Cout,)
    if lora_scale == 0.0:
        # Conditioning never read; single shared weight, index_map returns block 0.
        w_eff = ww[None]                                     # (1, kh, kw, Cin, Cout)
        b_eff = bw[None]                                     # (1, Cout)
        per_batch = False
    else:
        c_dim = params["beta_weight"].shape[0]
        cvec = c_nc11.reshape(B, c_dim).astype(jnp.float32)
        shift = cvec @ params["beta_weight"].astype(jnp.float32)        # (B, rank)
        scale = cvec @ params["gamma_weight"].astype(jnp.float32) + 1.0  # (B, rank)
        wa = params["a_weight"].astype(jnp.float32)                      # (kh,kw,Cin,rank)
        wb_s = lora_scale * params["b_weight"].astype(jnp.float32)       # (rank, Cout)
        # TODO(synk): for large Cin*Cout with small N, keep Ww shared and apply the
        # per-batch low-rank correction as a second matmul instead of this fold.
        w_eff = ww[None] + jnp.einsum("hwcr,br,rd->bhwcd", wa, scale, wb_s)
        b_eff = bw[None] + shift @ wb_s                                  # (B, Cout)
        per_batch = True

    w_eff = w_eff.astype(weight_dtype)
    b_eff = b_eff.reshape(-1, 1, Cout).astype(jnp.float32)

    # ---- pallas_call -----------------------------------------------------------
    kernel = _make_conv_kernel(kh, kw, stride, TR, Wo, Cin, Cout)

    if per_batch:
        w_idx = lambda b, r: (b, 0, 0, 0, 0)
        bias_idx = lambda b, r: (b, 0, 0)
    else:
        w_idx = lambda b, r: (0, 0, 0, 0, 0)
        bias_idx = lambda b, r: (0, 0, 0)

    in_specs = [
        pl.BlockSpec((1, Hp, Wp, Cin), lambda b, r: (b, 0, 0, 0)),       # input slab
        # TODO(synk): for very large Cin/Cout (e.g. 3x3x2048->2048) add Cout (and
        # Cin) tile grid axes so this resident weight block fits v7x's 64 MiB VMEM.
        pl.BlockSpec((1, kh, kw, Cin, Cout), w_idx),                      # W_eff
        pl.BlockSpec((1, 1, Cout), bias_idx),                             # bias_eff
    ]
    out_specs = pl.BlockSpec((1, TR, Wo, Cout), lambda b, r: (b, r, 0, 0))

    vmem_est = (
        2 * _vmem_bytes((1, Hp, Wp, Cin), jnp.bfloat16)
        + 2 * _vmem_bytes((1, kh, kw, Cin, Cout), weight_dtype)
        + 2 * _vmem_bytes((1, 1, Cout), jnp.float32)
        + 2 * _vmem_bytes((1, TR, Wo, Cout), out_dtype)
        + _vmem_bytes((TR * Wo, Cout), jnp.float32)          # f32 accumulator value
    )
    vmem_limit = int(min(48 * 2**20, max(16 * 2**20, 2 * vmem_est)))

    out = pl.pallas_call(
        kernel,
        out_shape=jax.ShapeDtypeStruct((B, Ho_pad, Wo, Cout), out_dtype),
        grid=(B, n_rt),
        in_specs=in_specs,
        out_specs=out_specs,
        compiler_params=pltpu.CompilerParams(
            dimension_semantics=("parallel", "parallel"),
            vmem_limit_bytes=vmem_limit,
        ),
    )(x_pad, w_eff, b_eff)

    out = out[:, :Ho, :, :]
    return jnp.transpose(out, (0, 3, 1, 2))                  # back to NCHW


# ----------------------------- pure-JAX reference --------------------------- #
def reference_forward(x_nchw, c_nc11, params, *, stride, padding, lora_scale):
    x = jnp.transpose(x_nchw, (0, 2, 3, 1)).astype(jnp.float32)  # NHWC
    dn = ("NHWC", "HWIO", "NHWC")
    pad2 = [(padding, padding), (padding, padding)]
    w_out = lax.conv_general_dilated(x, params["w_weight"], (stride, stride), pad2,
                                     dimension_numbers=dn) + params["w_bias"]
    if lora_scale == 0.0:
        return jnp.transpose(w_out, (0, 3, 1, 2))
    a_out = lax.conv_general_dilated(x, params["a_weight"], (stride, stride), pad2,
                                     dimension_numbers=dn)
    cvec = c_nc11.reshape(c_nc11.shape[0], -1).astype(jnp.float32)   # (B, c_dim)
    shift = cvec @ params["beta_weight"]                              # (B, rank)
    scale = cvec @ params["gamma_weight"] + 1.0
    a_cond = a_out * scale[:, None, None, :] + shift[:, None, None, :]
    b_out = jnp.einsum("bhwr,rc->bhwc", a_cond, params["b_weight"])
    out = w_out + lora_scale * b_out
    return jnp.transpose(out, (0, 3, 1, 2))


# --------------------------------- main ------------------------------------ #
if __name__ == "__main__":
    # Module hyper-parameters (small, consistent with the forward pass).
    B, Cin, H, W = 2, 4, 16, 16
    Cout, ksize, stride, padding = 8, 3, 1, 1
    c_dim, rank, lora_scale = 32, 4, 1.0

    key = jax.random.PRNGKey(0)
    kx, kc, kw_, kb_, ka_, kB_, kbeta, kgamma = jax.random.split(key, 8)

    # Inputs: x in NCHW (PyTorch convention), conditioning c as (B, c_dim, 1, 1).
    x = jax.random.normal(kx, (B, Cin, H, W), dtype=jnp.float32)
    c = jax.random.normal(kc, (B, c_dim, 1, 1), dtype=jnp.float32)

    # Deterministic synthetic parameters; conv weights in HWIO layout.
    fan_in = ksize * ksize * Cin
    params = {
        "w_weight": jax.random.normal(kw_, (ksize, ksize, Cin, Cout), jnp.float32)
                    / np.sqrt(fan_in),
        "w_bias": jax.random.normal(kb_, (Cout,), jnp.float32) * 0.1,
        # kaiming_normal_(a=1) ~ N(0, 1/fan_in)
        "a_weight": jax.random.normal(ka_, (ksize, ksize, Cin, rank), jnp.float32)
                    / np.sqrt(fan_in),
        # NOTE: the real module zero-inits B (LoRA branch vanishes at init);
        # we use small nonzero values so the conditioned LoRA path is exercised.
        "b_weight": jax.random.normal(kB_, (rank, Cout), jnp.float32) * 0.05,
        "beta_weight": jax.random.normal(kbeta, (c_dim, rank), jnp.float32)
                       / np.sqrt(c_dim),
        "gamma_weight": jax.random.normal(kgamma, (c_dim, rank), jnp.float32)
                        / np.sqrt(c_dim),
    }

    fwd = jax.jit(functools.partial(new_struct_lora_conv, stride=stride,
                                    padding=padding, lora_scale=lora_scale))
    out = jax.block_until_ready(fwd(x, c, params))

    ref = jax.block_until_ready(
        reference_forward(x, c, params, stride=stride, padding=padding,
                          lora_scale=lora_scale))

    assert out.shape == (B, Cout, H, W), out.shape
    # Tolerance accounts for bf16 inputs/weights/output (f32 accumulation).
    np.testing.assert_allclose(np.asarray(out.astype(jnp.float32)),
                               np.asarray(ref), rtol=2e-2, atol=2e-2)
    print("KERNEL_OK")
</pallas_src>

<mosaic_0001>
module attributes {stable_mosaic.version = 11 : i64} {
  func.func @kernel(%arg0: i32, %arg1: i32, %arg2: memref<1x18x18x4xbf16, #tpu.memory_space<vmem>>, %arg3: memref<1x3x3x4x8xbf16, #tpu.memory_space<vmem>>, %arg4: memref<1x1x8xf32, #tpu.memory_space<vmem>>, %arg5: memref<1x16x16x8xbf16, #tpu.memory_space<vmem>>) attributes {dimension_semantics = [#tpu.dimension_semantics<parallel>, #tpu.dimension_semantics<parallel>], iteration_bounds = array<i64: 2, 1>, scalar_prefetch = 0 : i64, scratch_operands = 0 : i64, tpu.core_type = #tpu.core_type<tc>, window_params = [{transform_indices = @transform_0, window_bounds = array<i64: 1, 18, 18, 4>}, {transform_indices = @transform_1, window_bounds = array<i64: 1, 3, 3, 4, 8>}, {transform_indices = @transform_2, window_bounds = array<i64: 1, 1, 8>}, {transform_indices = @transform_3, window_bounds = array<i64: 1, 16, 16, 8>}]} {
    %c16_i32 = arith.constant 16 : i32
    %0 = arith.muli %arg1, %c16_i32 : i32
    %1 = tpu.assume_multiple %0, 16 : i32
    %cst = arith.constant 0.000000e+00 : f32
    %2 = vector.broadcast %cst : f32 to vector<256x8xf32>
    %c0_i32 = arith.constant 0 : i32
    %3 = arith.addi %1, %c0_i32 : i32
    %c0 = arith.constant 0 : index
    %4 = arith.index_cast %3 : i32 to index
    %c0_0 = arith.constant 0 : index
    %c0_1 = arith.constant 0 : index
    %5 = vector.load %arg2[%c0, %4, %c0_0, %c0_1] : memref<1x18x18x4xbf16, #tpu.memory_space<vmem>>, vector<1x16x16x4xbf16>
    %6 = vector.shape_cast %5 : vector<1x16x16x4xbf16> to vector<16x16x4xbf16>
    %7 = vector.shape_cast %6 : vector<16x16x4xbf16> to vector<256x4xbf16>
    %c0_2 = arith.constant 0 : index
    %c0_3 = arith.constant 0 : index
    %c0_4 = arith.constant 0 : index
    %c0_5 = arith.constant 0 : index
    %c0_6 = arith.constant 0 : index
    %8 = vector.load %arg3[%c0_2, %c0_3, %c0_4, %c0_5, %c0_6] : memref<1x3x3x4x8xbf16, #tpu.memory_space<vmem>>, vector<1x1x1x4x8xbf16>
    %9 = vector.shape_cast %8 : vector<1x1x1x4x8xbf16> to vector<4x8xbf16>
    %cst_7 = arith.constant dense<0.000000e+00> : vector<256x8xf32>
    %10 = tpu.matmul %7, %9, %cst_7 {dimension_numbers = #tpu.dot_dimension_numbers<[1], [0], [0], [1], [0, 0, 1, 1], [], []>} : vector<256x4xbf16>, vector<4x8xbf16>, vector<256x8xf32> -> vector<256x8xf32>
    %11 = arith.addf %2, %10 : vector<256x8xf32>
    %c0_i32_8 = arith.constant 0 : i32
    %12 = arith.addi %1, %c0_i32_8 : i32
    %c0_9 = arith.constant 0 : index
    %13 = arith.index_cast %12 : i32 to index
    %c1 = arith.constant 1 : index
    %c0_10 = arith.constant 0 : index
    %14 = vector.load %arg2[%c0_9, %13, %c1, %c0_10] : memref<1x18x18x4xbf16, #tpu.memory_space<vmem>>, vector<1x16x16x4xbf16>
    %15 = vector.shape_cast %14 : vector<1x16x16x4xbf16> to vector<16x16x4xbf16>
    %16 = vector.shape_cast %15 : vector<16x16x4xbf16> to vector<256x4xbf16>
    %c0_11 = arith.constant 0 : index
    %c0_12 = arith.constant 0 : index
    %c1_13 = arith.constant 1 : index
    %c0_14 = arith.constant 0 : index
    %c0_15 = arith.constant 0 : index
    %17 = vector.load %arg3[%c0_11, %c0_12, %c1_13, %c0_14, %c0_15] : memref<1x3x3x4x8xbf16, #tpu.memory_space<vmem>>, vector<1x1x1x4x8xbf16>
    %18 = vector.shape_cast %17 : vector<1x1x1x4x8xbf16> to vector<4x8xbf16>
    %cst_16 = arith.constant dense<0.000000e+00> : vector<256x8xf32>
    %19 = tpu.matmul %16, %18, %cst_16 {dimension_numbers = #tpu.dot_dimension_numbers<[1], [0], [0], [1], [0, 0, 1, 1], [], []>} : vector<256x4xbf16>, vector<4x8xbf16>, vector<256x8xf32> -> vector<256x8xf32>
    %20 = arith.addf %11, %19 : vector<256x8xf32>
    %c0_i32_17 = arith.constant 0 : i32
    %21 = arith.addi %1, %c0_i32_17 : i32
    %c0_18 = arith.constant 0 : index
    %22 = arith.index_cast %21 : i32 to index
    %c2 = arith.constant 2 : index
    %c0_19 = arith.constant 0 : index
    %23 = vector.load %arg2[%c0_18, %22, %c2, %c0_19] : memref<1x18x18x4xbf16, #tpu.memory_space<vmem>>, vector<1x16x16x4xbf16>
    %24 = vector.shape_cast %23 : vector<1x16x16x4xbf16> to vector<16x16x4xbf16>
    %25 = vector.shape_cast %24 : vector<16x16x4xbf16> to vector<256x4xbf16>
    %c0_20 = arith.constant 0 : index
    %c0_21 = arith.constant 0 : index
    %c2_22 = arith.constant 2 : index
    %c0_23 = arith.constant 0 : index
    %c0_24 = arith.constant 0 : index
    %26 = vector.load %arg3[%c0_20, %c0_21, %c2_22, %c0_23, %c0_24] : memref<1x3x3x4x8xbf16, #tpu.memory_space<vmem>>, vector<1x1x1x4x8xbf16>
    %27 = vector.shape_cast %26 : vector<1x1x1x4x8xbf16> to vector<4x8xbf16>
    %cst_25 = arith.constant dense<0.000000e+00> : vector<256x8xf32>
    %28 = tpu.matmul %25, %27, %cst_25 {dimension_numbers = #tpu.dot_dimension_numbers<[1], [0], [0], [1], [0, 0, 1, 1], [], []>} : vector<256x4xbf16>, vector<4x8xbf16>, vector<256x8xf32> -> vector<256x8xf32>
    %29 = arith.addf %20, %28 : vector<256x8xf32>
    %c1_i32 = arith.constant 1 : i32
    %30 = arith.addi %1, %c1_i32 : i32
    %c0_26 = arith.constant 0 : index
    %31 = arith.index_cast %30 : i32 to index
    %c0_27 = arith.constant 0 : index
    %c0_28 = arith.constant 0 : index
    %32 = vector.load %arg2[%c0_26, %31, %c0_27, %c0_28] : memref<1x18x18x4xbf16, #tpu.memory_space<vmem>>, vector<1x16x16x4xbf16>
    %33 = vector.shape_cast %32 : vector<1x16x16x4xbf16> to vector<16x16x4xbf16>
    %34 = vector.shape_cast %33 : vector<16x16x4xbf16> to vector<256x4xbf16>
    %c0_29 = arith.constant 0 : index
    %c1_30 = arith.constant 1 : index
    %c0_31 = arith.constant 0 : index
    %c0_32 = arith.constant 0 : index
    %c0_33 = arith.constant 0 : index
    %35 = vector.load %arg3[%c0_29, %c1_30, %c0_31, %c0_32, %c0_33] : memref<1x3x3x4x8xbf16, #tpu.memory_space<vmem>>, vector<1x1x1x4x8xbf16>
    %36 = vector.shape_cast %35 : vector<1x1x1x4x8xbf16> to vector<4x8xbf16>
    %cst_34 = arith.constant dense<0.000000e+00> : vector<256x8xf32>
    %37 = tpu.matmul %34, %36, %cst_34 {dimension_numbers = #tpu.dot_dimension_numbers<[1], [0], [0], [1], [0, 0, 1, 1], [], []>} : vector<256x4xbf16>, vector<4x8xbf16>, vector<256x8xf32> -> vector<256x8xf32>
    %38 = arith.addf %29, %37 : vector<256x8xf32>
    %c1_i32_35 = arith.constant 1 : i32
    %39 = arith.addi %1, %c1_i32_35 : i32
    %c0_36 = arith.constant 0 : index
    %40 = arith.index_cast %39 : i32 to index
    %c1_37 = arith.constant 1 : index
    %c0_38 = arith.constant 0 : index
    %41 = vector.load %arg2[%c0_36, %40, %c1_37, %c0_38] : memref<1x18x18x4xbf16, #tpu.memory_space<vmem>>, vector<1x16x16x4xbf16>
    %42 = vector.shape_cast %41 : vector<1x16x16x4xbf16> to vector<16x16x4xbf16>
    %43 = vector.shape_cast %42 : vector<16x16x4xbf16> to vector<256x4xbf16>
    %c0_39 = arith.constant 0 : index
    %c1_40 = arith.constant 1 : index
    %c1_41 = arith.constant 1 : index
    %c0_42 = arith.constant 0 : index
    %c0_43 = arith.constant 0 : index
    %44 = vector.load %arg3[%c0_39, %c1_40, %c1_41, %c0_42, %c0_43] : memref<1x3x3x4x8xbf16, #tpu.memory_space<vmem>>, vector<1x1x1x4x8xbf16>
    %45 = vector.shape_cast %44 : vector<1x1x1x4x8xbf16> to vector<4x8xbf16>
    %cst_44 = arith.constant dense<0.000000e+00> : vector<256x8xf32>
    %46 = tpu.matmul %43, %45, %cst_44 {dimension_numbers = #tpu.dot_dimension_numbers<[1], [0], [0], [1], [0, 0, 1, 1], [], []>} : vector<256x4xbf16>, vector<4x8xbf16>, vector<256x8xf32> -> vector<256x8xf32>
    %47 = arith.addf %38, %46 : vector<256x8xf32>
    %c1_i32_45 = arith.constant 1 : i32
    %48 = arith.addi %1, %c1_i32_45 : i32
    %c0_46 = arith.constant 0 : index
    %49 = arith.index_cast %48 : i32 to index
    %c2_47 = arith.constant 2 : index
    %c0_48 = arith.constant 0 : index
    %50 = vector.load %arg2[%c0_46, %49, %c2_47, %c0_48] : memref<1x18x18x4xbf16, #tpu.memory_space<vmem>>, vector<1x16x16x4xbf16>
    %51 = vector.shape_cast %50 : vector<1x16x16x4xbf16> to vector<16x16x4xbf16>
    %52 = vector.shape_cast %51 : vector<16x16x4xbf16> to vector<256x4xbf16>
    %c0_49 = arith.constant 0 : index
    %c1_50 = arith.constant 1 : index
    %c2_51 = arith.constant 2 : index
    %c0_52 = arith.constant 0 : index
    %c0_53 = arith.constant 0 : index
    %53 = vector.load %arg3[%c0_49, %c1_50, %c2_51, %c0_52, %c0_53] : memref<1x3x3x4x8xbf16, #tpu.memory_space<vmem>>, vector<1x1x1x4x8xbf16>
    %54 = vector.shape_cast %53 : vector<1x1x1x4x8xbf16> to vector<4x8xbf16>
    %cst_54 = arith.constant dense<0.000000e+00> : vector<256x8xf32>
    %55 = tpu.matmul %52, %54, %cst_54 {dimension_numbers = #tpu.dot_dimension_numbers<[1], [0], [0], [1], [0, 0, 1, 1], [], []>} : vector<256x4xbf16>, vector<4x8xbf16>, vector<256x8xf32> -> vector<256x8xf32>
    %56 = arith.addf %47, %55 : vector<256x8xf32>
    %c2_i32 = arith.constant 2 : i32
    %57 = arith.addi %1, %c2_i32 : i32
    %c0_55 = arith.constant 0 : index
    %58 = arith.index_cast %57 : i32 to index
    %c0_56 = arith.constant 0 : index
    %c0_57 = arith.constant 0 : index
    %59 = vector.load %arg2[%c0_55, %58, %c0_56, %c0_57] : memref<1x18x18x4xbf16, #tpu.memory_space<vmem>>, vector<1x16x16x4xbf16>
    %60 = vector.shape_cast %59 : vector<1x16x16x4xbf16> to vector<16x16x4xbf16>
    %61 = vector.shape_cast %60 : vector<16x16x4xbf16> to vector<256x4xbf16>
    %c0_58 = arith.constant 0 : index
    %c2_59 = arith.constant 2 : index
    %c0_60 = arith.constant 0 : index
    %c0_61 = arith.constant 0 : index
    %c0_62 = arith.constant 0 : index
    %62 = vector.load %arg3[%c0_58, %c2_59, %c0_60, %c0_61, %c0_62] : memref<1x3x3x4x8xbf16, #tpu.memory_space<vmem>>, vector<1x1x1x4x8xbf16>
    %63 = vector.shape_cast %62 : vector<1x1x1x4x8xbf16> to vector<4x8xbf16>
    %cst_63 = arith.constant dense<0.000000e+00> : vector<256x8xf32>
    %64 = tpu.matmul %61, %63, %cst_63 {dimension_numbers = #tpu.dot_dimension_numbers<[1], [0], [0], [1], [0, 0, 1, 1], [], []>} : vector<256x4xbf16>, vector<4x8xbf16>, vector<256x8xf32> -> vector<256x8xf32>
    %65 = arith.addf %56, %64 : vector<256x8xf32>
    %c2_i32_64 = arith.constant 2 : i32
    %66 = arith.addi %1, %c2_i32_64 : i32
    %c0_65 = arith.constant 0 : index
    %67 = arith.index_cast %66 : i32 to index
    %c1_66 = arith.constant 1 : index
    %c0_67 = arith.constant 0 : index
    %68 = vector.load %arg2[%c0_65, %67, %c1_66, %c0_67] : memref<1x18x18x4xbf16, #tpu.memory_space<vmem>>, vector<1x16x16x4xbf16>
    %69 = vector.shape_cast %68 : vector<1x16x16x4xbf16> to vector<16x16x4xbf16>
    %70 = vector.shape_cast %69 : vector<16x16x4xbf16> to vector<256x4xbf16>
    %c0_68 = arith.constant 0 : index
    %c2_69 = arith.constant 2 : index
    %c1_70 = arith.constant 1 : index
    %c0_71 = arith.constant 0 : index
    %c0_72 = arith.constant 0 : index
    %71 = vector.load %arg3[%c0_68, %c2_69, %c1_70, %c0_71, %c0_72] : memref<1x3x3x4x8xbf16, #tpu.memory_space<vmem>>, vector<1x1x1x4x8xbf16>
    %72 = vector.shape_cast %71 : vector<1x1x1x4x8xbf16> to vector<4x8xbf16>
    %cst_73 = arith.constant dense<0.000000e+00> : vector<256x8xf32>
    %73 = tpu.matmul %70, %72, %cst_73 {dimension_numbers = #tpu.dot_dimension_numbers<[1], [0], [0], [1], [0, 0, 1, 1], [], []>} : vector<256x4xbf16>, vector<4x8xbf16>, vector<256x8xf32> -> vector<256x8xf32>
    %74 = arith.addf %65, %73 : vector<256x8xf32>
    %c2_i32_74 = arith.constant 2 : i32
    %75 = arith.addi %1, %c2_i32_74 : i32
    %c0_75 = arith.constant 0 : index
    %76 = arith.index_cast %75 : i32 to index
    %c2_76 = arith.constant 2 : index
    %c0_77 = arith.constant 0 : index
    %77 = vector.load %arg2[%c0_75, %76, %c2_76, %c0_77] : memref<1x18x18x4xbf16, #tpu.memory_space<vmem>>, vector<1x16x16x4xbf16>
    %78 = vector.shape_cast %77 : vector<1x16x16x4xbf16> to vector<16x16x4xbf16>
    %79 = vector.shape_cast %78 : vector<16x16x4xbf16> to vector<256x4xbf16>
    %c0_78 = arith.constant 0 : index
    %c2_79 = arith.constant 2 : index
    %c2_80 = arith.constant 2 : index
    %c0_81 = arith.constant 0 : index
    %c0_82 = arith.constant 0 : index
    %80 = vector.load %arg3[%c0_78, %c2_79, %c2_80, %c0_81, %c0_82] : memref<1x3x3x4x8xbf16, #tpu.memory_space<vmem>>, vector<1x1x1x4x8xbf16>
    %81 = vector.shape_cast %80 : vector<1x1x1x4x8xbf16> to vector<4x8xbf16>
    %cst_83 = arith.constant dense<0.000000e+00> : vector<256x8xf32>
    %82 = tpu.matmul %79, %81, %cst_83 {dimension_numbers = #tpu.dot_dimension_numbers<[1], [0], [0], [1], [0, 0, 1, 1], [], []>} : vector<256x4xbf16>, vector<4x8xbf16>, vector<256x8xf32> -> vector<256x8xf32>
    %83 = arith.addf %74, %82 : vector<256x8xf32>
    %c0_84 = arith.constant 0 : index
    %c0_85 = arith.constant 0 : index
    %c0_86 = arith.constant 0 : index
    %84 = vector.load %arg4[%c0_84, %c0_85, %c0_86] : memref<1x1x8xf32, #tpu.memory_space<vmem>>, vector<1x1x8xf32>
    %85 = vector.shape_cast %84 : vector<1x1x8xf32> to vector<1x8xf32>
    %86 = vector.broadcast %85 : vector<1x8xf32> to vector<256x8xf32>
    %87 = arith.addf %83, %86 : vector<256x8xf32>
    %88 = vector.shape_cast %87 : vector<256x8xf32> to vector<16x16x8xf32>
    %89 = arith.truncf %88 : vector<16x16x8xf32> to vector<16x16x8xbf16>
    %c0_87 = arith.constant 0 : index
    %c0_88 = arith.constant 0 : index
    %c0_89 = arith.constant 0 : index
    %c0_90 = arith.constant 0 : index
    %90 = vector.load %arg5[%c0_87, %c0_88, %c0_89, %c0_90] : memref<1x16x16x8xbf16, #tpu.memory_space<vmem>>, vector<1x16x16x8xbf16>
    %91 = vector.shape_cast %90 : vector<1x16x16x8xbf16> to vector<16x16x8xbf16>
    %92 = vector.shape_cast %89 : vector<16x16x8xbf16> to vector<1x16x16x8xbf16>
    tpu.vector_store %arg5[%c0_87, %c0_88, %c0_89, %c0_90], %92 {strides = array<i32>} : memref<1x16x16x8xbf16, #tpu.memory_space<vmem>>, vector<1x16x16x8xbf16>,
    return
  }
  func.func @transform_0(%arg0: i32, %arg1: i32) -> (i32, i32, i32, i32) {
    %c0_i32 = arith.constant 0 : i32
    %c0_i32_0 = arith.constant 0 : i32
    %c0_i32_1 = arith.constant 0 : i32
    %c0_i32_2 = arith.constant 0 : i32
    return %arg0, %c0_i32, %c0_i32_0, %c0_i32_1 : i32, i32, i32, i32
  }
  func.func @transform_1(%arg0: i32, %arg1: i32) -> (i32, i32, i32, i32, i32) {
    %c0_i32 = arith.constant 0 : i32
    %c0_i32_0 = arith.constant 0 : i32
    %c0_i32_1 = arith.constant 0 : i32
    %c0_i32_2 = arith.constant 0 : i32
    %c0_i32_3 = arith.constant 0 : i32
    return %arg0, %c0_i32, %c0_i32_0, %c0_i32_1, %c0_i32_2 : i32, i32, i32, i32, i32
  }
  func.func @transform_2(%arg0: i32, %arg1: i32) -> (i32, i32, i32) {
    %c0_i32 = arith.constant 0 : i32
    %c0_i32_0 = arith.constant 0 : i32
    %c0_i32_1 = arith.constant 0 : i32
    return %arg0, %c0_i32, %c0_i32_0 : i32, i32, i32
  }
  func.func @transform_3(%arg0: i32, %arg1: i32) -> (i32, i32, i32, i32) {
    %c0_i32 = arith.constant 0 : i32
    %c0_i32_0 = arith.constant 0 : i32
    %c0_i32_1 = arith.constant 0 : i32
    return %arg0, %arg1, %c0_i32, %c0_i32_0 : i32, i32, i32, i32
  }
}

</mosaic_0001>

<llo_original>
// kernel: new_struct_lora_conv.1
$region0: #{new_struct_lora_conv.1}
  #allocation0 [shape = 'u32[]', space=smem, size = 0x4, offset = 0x4, fixed_abs, tag = 'smem constant byte address 0x4 - core index']
  #allocation1 [shape = 'u32[144,128]{1,0:T(1,128)}', space=vmem, size = 0x12000, scoped, tag = 'internal scratch']
  %s0 = inlined_call_operand.vmem [shape: bf16[2,18,18,4], index: 0, kind: input, shape index: {}]
  %s1 = inlined_call_operand.vmem [shape: bf16[2,3,3,4,8], index: 1, kind: input, shape index: {}]
  %s2 = inlined_call_operand.vmem [shape: f32[2,1,8], index: 2, kind: input, shape index: {}]
  %s3 = inlined_call_operand.vmem [shape: bf16[2,16,16,8], index: 3, kind: output, shape index: {}]
  %s4 = sld [smem:[#allocation0]]
  $region45: #{new_struct_lora_conv.1} parent=0
    _
  %s6 = ssub.s32 1, %s4
  %s7 = scalar_select 0, %s6, %s4
  loop: start=0, step=1, limit=4
  $region2: #{new_struct_lora_conv.1} parent=0 // loop_pre_header
    _
  $region3: #{new_struct_lora_conv.1} parent=0 // loop_header
    %s9 = sphi 0, %s13
    %p10 = scmp.ge.s32.totalorder %s9, 4
    %s16 = sphi 0, %s28
    %s17 = sphi 0, %s24
    %s18 = sphi 0, %s16
    %s19 = sphi 0, %s17
    %s20 = sphi 0, %s18
    %s21 = sphi 0, %s19
    %s31 = sphi 0, %s33
    %s34 = sphi 0, %s31
    %s35 = sphi 0, %s34
    %s51 = sphi 0, %s35
    %s57 = sphi 0, %s59
    %s60 = sphi 0, %s57
    %s61 = sphi 0, %s60
    %s77 = sphi 0, %s61
    %s83 = sphi 0, %s85
    %s86 = sphi 0, %s83
    %s87 = sphi 0, %s86
    %s103 = sphi 0, %s87
    %s111 = sphi 0, %s113
    %s114 = sphi 0, %s111
    %s115 = sphi 0, %s114
    %s131 = sphi 0, %s115
  $region4: #{new_struct_lora_conv.1} parent=0 // loop_header_branch
    %12 = sbr.rel (%p10) target = $region8
  $region5: #{new_struct_lora_conv.1} parent=0 // loop_body
    %s14 = ssub.s32 %s9, 1
    %s15 = ssub.s32 %s9, 2
    %s22 = sadd.s32 1, %s17
    %p23 = scmp.ge.s32.totalorder %s22, 1
    %s24 = scalar_select %p23, 0, %s22
    %s25 = sadd.s32 1, %s16
    %s26 = scalar_select %p23, %s25, %s16
    %p27 = scmp.ge.s32.totalorder %s26, 2
    %s28 = scalar_select %p27, 0, %s26
    %s29 = ssub.s32 %s16, %s28
    %p30 = scmp.eq.s32.totalorder %s29, 0
    %s32 = sadd.s32 %s31, 1
    %s33 = scalar_select %p30, %s31, %s32
    %p36 = pneg %p30
    %p37 = scmp.eq.s32.totalorder %s9, 1
    %p38 = por %p36, %p37
    %p39 = scmp.ne.s32.totalorder %s31, %s34
    %p40 = scmp.eq.s32.totalorder %s9, 0
    %p41 = por %p39, %p40
    %p42 = scmp.ne.s32.totalorder %s31, %s34
    %p43 = scmp.eq.s32.totalorder %s14, 1
    %p44 = por %p42, %p43
    %p45 = scmp.ne.s32.totalorder %s34, %s35
    %p46 = scmp.eq.s32.totalorder %s14, 0
    %p47 = por %p45, %p46
    %p48 = scmp.ne.s32.totalorder %s34, %s35
    %p49 = scmp.eq.s32.totalorder %s15, 1
    %p50 = por %p48, %p49
    %p52 = scmp.ne.s32.totalorder %s35, %s51
    %p53 = scmp.eq.s32.totalorder %s15, 0
    %p54 = por %p52, %p53
    %s55 = ssub.s32 %s16, %s28
    %p56 = scmp.eq.s32.totalorder %s55, 0
    %s58 = sadd.s32 %s57, 1
    %s59 = scalar_select %p56, %s57, %s58
    %p62 = pneg %p56
    %p63 = scmp.eq.s32.totalorder %s9, 1
    %p64 = por %p62, %p63
    %p65 = scmp.ne.s32.totalorder %s57, %s60
    %p66 = scmp.eq.s32.totalorder %s9, 0
    %p67 = por %p65, %p66
    %p68 = scmp.ne.s32.totalorder %s57, %s60
    %p69 = scmp.eq.s32.totalorder %s14, 1
    %p70 = por %p68, %p69
    %p71 = scmp.ne.s32.totalorder %s60, %s61
    %p72 = scmp.eq.s32.totalorder %s14, 0
    %p73 = por %p71, %p72
    %p74 = scmp.ne.s32.totalorder %s60, %s61
    %p75 = scmp.eq.s32.totalorder %s15, 1
    %p76 = por %p74, %p75
    %p78 = scmp.ne.s32.totalorder %s61, %s77
    %p79 = scmp.eq.s32.totalorder %s15, 0
    %p80 = por %p78, %p79
    %s81 = ssub.s32 %s16, %s28
    %p82 = scmp.eq.s32.totalorder %s81, 0
    %s84 = sadd.s32 %s83, 1
    %s85 = scalar_select %p82, %s83, %s84
    %p88 = pneg %p82
    %p89 = scmp.eq.s32.totalorder %s9, 1
    %p90 = por %p88, %p89
    %p91 = scmp.ne.s32.totalorder %s83, %s86
    %p92 = scmp.eq.s32.totalorder %s9, 0
    %p93 = por %p91, %p92
    %p94 = scmp.ne.s32.totalorder %s83, %s86
    %p95 = scmp.eq.s32.totalorder %s14, 1
    %p96 = por %p94, %p95
    %p97 = scmp.ne.s32.totalorder %s86, %s87
    %p98 = scmp.eq.s32.totalorder %s14, 0
    %p99 = por %p97, %p98
    %p100 = scmp.ne.s32.totalorder %s86, %s87
    %p101 = scmp.eq.s32.totalorder %s15, 1
    %p102 = por %p100, %p101
    %p104 = scmp.ne.s32.totalorder %s87, %s103
    %p105 = scmp.eq.s32.totalorder %s15, 0
    %p106 = por %p104, %p105
    %s107 = ssub.s32 %s16, %s28
    %s108 = ssub.s32 %s17, %s24
    %s109 = sor.u32 %s107, %s108
    %p110 = scmp.eq.s32.totalorder %s109, 0
    %s112 = sadd.s32 %s111, 1
    %s113 = scalar_select %p110, %s111, %s112
    %p116 = pneg %p110
    %p117 = scmp.eq.s32.totalorder %s9, 1
    %p118 = por %p116, %p117
    %p119 = scmp.ne.s32.totalorder %s111, %s114
    %p120 = scmp.eq.s32.totalorder %s9, 0
    %p121 = por %p119, %p120
    %p122 = scmp.ne.s32.totalorder %s111, %s114
    %p123 = scmp.eq.s32.totalorder %s14, 1
    %p124 = por %p122, %p123
    %p125 = scmp.ne.s32.totalorder %s114, %s115
    %p126 = scmp.eq.s32.totalorder %s14, 0
    %p127 = por %p125, %p126
    %p128 = scmp.ne.s32.totalorder %s114, %s115
    %p129 = scmp.eq.s32.totalorder %s15, 1
    %p130 = por %p128, %p129
    %p132 = scmp.ne.s32.totalorder %s115, %s131
    %p133 = scmp.eq.s32.totalorder %s15, 0
    %p134 = por %p132, %p133
    %p135 = scmp.le.s32.totalorder 1, %s9
    %p136 = scmp.lt.s32.totalorder %s9, 3
    %p137 = pnand %p135, %p136
    %p138 = pneg %p137
    // Predicated region
    $region9: #{new_struct_lora_conv.1} parent=5 // pred_check
      _
    $region10: #{new_struct_lora_conv.1} parent=5 // pred_check_branch
      %140 = sbr.rel (%p137) target = $region12
    $region11: #{new_struct_lora_conv.1} parent=5 // pred_region
      %s141 = ssub.s32 %s9, 1
    $region12: #{new_struct_lora_conv.1} parent=5 // pred_fallthru
      _
    %p142 = scmp.lt.s32.totalorder %s9, 2
    // Predicated region
    $region13: #{new_struct_lora_conv.1} parent=5 // pred_check
      %p143 = pneg %p142
    $region14: #{new_struct_lora_conv.1} parent=5 // pred_check_branch
      %145 = sbr.rel (%p143) target = $region16
    $region15: #{new_struct_lora_conv.1} parent=5 // pred_region
      // Predicated region
      $region17: #{new_struct_lora_conv.1} parent=15 // pred_check
        %p146 = pneg %p41
      $region18: #{new_struct_lora_conv.1} parent=15 // pred_check_branch
        %148 = sbr.rel (%p146) target = $region20
      $region19: #{new_struct_lora_conv.1} parent=15 // pred_region
        %p149 = scmp.lt.s32.totalorder %s16, 1
        %s150 = scalar_select %p149, %s16, 1
        %s151 = smul.addr %s150, 54
        %s152 = smul.addr %s151, 4
        %s153 = scalar_lea.vmem %s0, %s152
      $region20: #{new_struct_lora_conv.1} parent=15 // pred_fallthru
        _
      // Predicated region
      $region21: #{new_struct_lora_conv.1} parent=15 // pred_check
        %p154 = pneg %p67
      $region22: #{new_struct_lora_conv.1} parent=15 // pred_check_branch
        %156 = sbr.rel (%p154) target = $region24
      $region23: #{new_struct_lora_conv.1} parent=15 // pred_region
        %p157 = scmp.lt.s32.totalorder %s16, 1
        %s158 = scalar_select %p157, %s16, 1
        %s159 = smul.addr %s158, 9
        %s160 = smul.addr %s159, 2
        %s161 = scalar_lea.vmem %s1, %s160
      $region24: #{new_struct_lora_conv.1} parent=15 // pred_fallthru
        _
      // Predicated region
      $region25: #{new_struct_lora_conv.1} parent=15 // pred_check
        %p162 = pneg %p93
      $region26: #{new_struct_lora_conv.1} parent=15 // pred_check_branch
        %164 = sbr.rel (%p162) target = $region28
      $region27: #{new_struct_lora_conv.1} parent=15 // pred_region
        %p165 = scmp.lt.s32.totalorder %s16, 1
        %s166 = scalar_select %p165, %s16, 1
        %s167 = scalar_lea.vmem %s2, %s166
      $region28: #{new_struct_lora_conv.1} parent=15 // pred_fallthru
        _
    $region16: #{new_struct_lora_conv.1} parent=5 // pred_fallthru
      _
    %p168 = scmp.le.s32.totalorder 1, %s9
    %p169 = scmp.lt.s32.totalorder %s9, 3
    %p170 = pnand %p168, %p169
    %p171 = pneg %p170
    // Predicated region
    $region29: #{new_struct_lora_conv.1} parent=5 // pred_check
      _
    $region30: #{new_struct_lora_conv.1} parent=5 // pred_check_branch
      %173 = sbr.rel (%p170) target = $region32
    $region31: #{new_struct_lora_conv.1} parent=5 // pred_region
      %s174 = ssub.s32 %s9, 1
      %p175 = scmp.lt.s32.totalorder %s18, 1
      %s176 = scalar_select %p175, %s18, 1
      %s177 = smul.addr %s176, 54
      %s178 = smul.addr %s177, 4
      %s179 = scalar_lea.vmem %s0, %s178
      %p180 = pneg %p47
      %p181 = pneg %p44
      %p182 = scmp.lt.s32.totalorder %s18, 1
      %s183 = scalar_select %p182, %s18, 1
      %s184 = smul.addr %s183, 9
      %s185 = smul.addr %s184, 2
      %s186 = scalar_lea.vmem %s1, %s185
      %p187 = pneg %p73
      %p188 = pneg %p70
      %p189 = scmp.lt.s32.totalorder %s18, 1
      %s190 = scalar_select %p189, %s18, 1
      %s191 = scalar_lea.vmem %s2, %s190
      %p192 = pneg %p99
      %p193 = pneg %p96
      %p194 = pneg %p127
      %p195 = pneg %p124
      %s196 = smul.u32 16, %s19
      %p197 = scmp.lt.s32.totalorder %s18, 1
      %s198 = scalar_select %p197, %s18, 1
      %p199 = scmp.lt.s32.totalorder %s196, 15
      %s200 = scalar_select %p199, %s196, 15
      %s201 = smul.addr %s200, 2
      %s202 = smul.addr %s198, 32
      %s203 = sadd.s32 %s201, %s202
      %s204 = smul.addr %s203, 4
      %s205 = scalar_lea.vmem %s3, %s204
      %p206 = scmp.lt.s32.totalorder %s18, 1
      %s207 = scalar_select %p206, %s18, 1
      %s208 = smul.addr %s207, 54
      %s209 = smul.addr %s208, 4
      %s210 = scalar_lea.vmem %s0, %s209
      %p211 = scmp.lt.s32.totalorder %s18, 1
      %s212 = scalar_select %p211, %s18, 1
      %s213 = smul.addr %s212, 9
      %s214 = smul.addr %s213, 2
      %s215 = scalar_lea.vmem %s1, %s214
      %p216 = scmp.lt.s32.totalorder %s18, 1
      %s217 = scalar_select %p216, %s18, 1
      %s218 = scalar_lea.vmem %s2, %s217
      %s219 = smul.u32 16, %s19
      %p220 = scmp.lt.s32.totalorder %s18, 1
      %s221 = scalar_select %p220, %s18, 1
      %p222 = scmp.lt.s32.totalorder %s219, 15
      %s223 = scalar_select %p222, %s219, 15
      %s224 = smul.addr %s223, 2
      %s225 = smul.addr %s221, 32
      %s226 = sadd.s32 %s224, %s225
      %s227 = smul.addr %s226, 4
      %s228 = scalar_lea.vmem %s3, %s227
      %s229 = smul.u32 16, %s19
      %s231 = smul.u32 %s19, 16
      %s232 = smul.u32 %s231, 3
      %s233 = smul.addr %s232, 4
      %s234 = scalar_lea.vmem %s210, %s233
      %v235 = vld [vmem:[%s234] sm:$0xf]
      %v236 = vld [vmem:[%s234 + $0x4] sm:$0xf]
      %v237 = vld [vmem:[%s234 + $0xc] sm:$0xf]
      %v238 = vld [vmem:[%s234 + $0x10] sm:$0xf]
      %v239 = vld [vmem:[%s234 + $0x18] sm:$0xf]
      %v240 = vld [vmem:[%s234 + $0x1c] sm:$0xf]
      %v241 = vld [vmem:[%s234 + $0x24] sm:$0xf]
      %v242 = vld [vmem:[%s234 + $0x28] sm:$0xf]
      %v243 = vld [vmem:[%s234 + $0x30] sm:$0xf]
      %v244 = vld [vmem:[%s234 + $0x34] sm:$0xf]
      %v245 = vld [vmem:[%s234 + $0x3c] sm:$0xf]
      %v246 = vld [vmem:[%s234 + $0x40] sm:$0xf]
      %v247 = vld [vmem:[%s234 + $0x48] sm:$0xf]
      %v248 = vld [vmem:[%s234 + $0x4c] sm:$0xf]
      %v249 = vld [vmem:[%s234 + $0x54] sm:$0xf]
      %v250 = vld [vmem:[%s234 + $0x58] sm:$0xf]
      %v251 = vld [vmem:[%s234 + $0x60] sm:$0xf]
      %v252 = vld [vmem:[%s234 + $0x64] sm:$0xf]
      %v253 = vld [vmem:[%s234 + $0x6c] sm:$0xf]
      %v254 = vld [vmem:[%s234 + $0x70] sm:$0xf]
      %v255 = vld [vmem:[%s234 + $0x78] sm:$0xf]
      %v256 = vld [vmem:[%s234 + $0x7c] sm:$0xf]
      %v257 = vld [vmem:[%s234 + $0x84] sm:$0xf]
      %v258 = vld [vmem:[%s234 + $0x88] sm:$0xf]
      %v259 = vld [vmem:[%s234 + $0x90] sm:$0xf]
      %v260 = vld [vmem:[%s234 + $0x94] sm:$0xf]
      %v261 = vld [vmem:[%s234 + $0x9c] sm:$0xf]
      %v262 = vld [vmem:[%s234 + $0xa0] sm:$0xf]
      %v263 = vld [vmem:[%s234 + $0xa8] sm:$0xf]
      %v264 = vld [vmem:[%s234 + $0xac] sm:$0xf]
      %v265 = vld [vmem:[%s234 + $0xb4] sm:$0xf]
      %v266 = vld [vmem:[%s234 + $0xb8] sm:$0xf]
      %v267 = vld [vmem:[%s215] sm:$0x3]
      %v268 = vld [vmem:[%s234 + $0x8] sm:$0x1]
      %v269 = vld [vmem:[%s234 + $0x14] sm:$0x1]
      %v270 = vld [vmem:[%s234 + $0x20] sm:$0x1]
      %v271 = vld [vmem:[%s234 + $0x2c] sm:$0x1]
      %v272 = vld [vmem:[%s234 + $0x38] sm:$0x1]
      %v273 = vld [vmem:[%s234 + $0x44] sm:$0x1]
      %v274 = vld [vmem:[%s234 + $0x50] sm:$0x1]
      %v275 = vld [vmem:[%s234 + $0x5c] sm:$0x1]
      %v276 = vld [vmem:[%s234 + $0x68] sm:$0x1]
      %v277 = vld [vmem:[%s234 + $0x74] sm:$0x1]
      %v278 = vld [vmem:[%s234 + $0x80] sm:$0x1]
      %v279 = vld [vmem:[%s234 + $0x8c] sm:$0x1]
      %v280 = vld [vmem:[%s234 + $0x98] sm:$0x1]
      %v281 = vld [vmem:[%s234 + $0xa4] sm:$0x1]
      %v282 = vld [vmem:[%s234 + $0xb0] sm:$0x1]
      %v283 = vld [vmem:[%s234 + $0xbc] sm:$0x1]
      %vm284 = vsmask.f32 3328
      %vm285 = vsmask.f32 7440
      %vm286 = vmor %vm284, %vm285
      %v288 = vshrl.u32 %v235, 16
      %v290 = vrot.slane %v288, 4
      %v291 = vshll.u32 %v235, 16
      %v293 = vrot.slane %v291, 5
      %v294 = vor.u32 %v290, %v293
      %v295 = vrot.slane %v294, 4
      %v297 = vshll.u32 %v236, 16
      %v299 = vrot.slane %v297, 5
      %v300 = vsel %vm286, %v295, %v299
      %v301 = vshrl.u32 %v236, 16
      %v303 = vrot.slane %v301, 4
      %v304 = vor.u32 %v303, %v299
      %v305 = vrot.slane %v304, 4
      %v307 = vshll.u32 %v268, 16
      %v309 = vrot.slane %v307, 5
      %v310 = vsel %vm286, %v305, %v309
      %v312 = vshrl.u32 %v237, 16
      %v314 = vrot.slane %v312, 4
      %v315 = vshll.u32 %v237, 16
      %v317 = vrot.slane %v315, 5
      %v318 = vor.u32 %v314, %v317
      %v319 = vrot.slane %v318, 4
      %v321 = vshll.u32 %v238, 16
      %v323 = vrot.slane %v321, 5
      %v324 = vsel %vm286, %v319, %v323
      %v325 = vshrl.u32 %v238, 16
      %v327 = vrot.slane %v325, 4
      %v328 = vor.u32 %v327, %v323
      %v329 = vrot.slane %v328, 4
      %v331 = vshll.u32 %v269, 16
      %v333 = vrot.slane %v331, 5
      %v334 = vsel %vm286, %v329, %v333
      %v336 = vshrl.u32 %v239, 16
      %v338 = vrot.slane %v336, 4
      %v339 = vshll.u32 %v239, 16
      %v341 = vrot.slane %v339, 5
      %v342 = vor.u32 %v338, %v341
      %v343 = vrot.slane %v342, 4
      %v345 = vshll.u32 %v240, 16
      %v347 = vrot.slane %v345, 5
      %v348 = vsel %vm286, %v343, %v347
      %v349 = vshrl.u32 %v240, 16
      %v351 = vrot.slane %v349, 4
      %v352 = vor.u32 %v351, %v347
      %v353 = vrot.slane %v352, 4
      %v355 = vshll.u32 %v270, 16
      %v357 = vrot.slane %v355, 5
      %v358 = vsel %vm286, %v353, %v357
      %v360 = vshrl.u32 %v241, 16
      %v362 = vrot.slane %v360, 4
      %v363 = vshll.u32 %v241, 16
      %v365 = vrot.slane %v363, 5
      %v366 = vor.u32 %v362, %v365
      %v367 = vrot.slane %v366, 4
      %v369 = vshll.u32 %v242, 16
      %v371 = vrot.slane %v369, 5
      %v372 = vsel %vm286, %v367, %v371
      %v373 = vshrl.u32 %v242, 16
      %v375 = vrot.slane %v373, 4
      %v376 = vor.u32 %v375, %v371
      %v377 = vrot.slane %v376, 4
      %v379 = vshll.u32 %v271, 16
      %v381 = vrot.slane %v379, 5
      %v382 = vsel %vm286, %v377, %v381
      %v384 = vshrl.u32 %v243, 16
      %v386 = vrot.slane %v384, 4
      %v387 = vshll.u32 %v243, 16
      %v389 = vrot.slane %v387, 5
      %v390 = vor.u32 %v386, %v389
      %v391 = vrot.slane %v390, 4
      %v393 = vshll.u32 %v244, 16
      %v395 = vrot.slane %v393, 5
      %v396 = vsel %vm286, %v391, %v395
      %v397 = vshrl.u32 %v244, 16
      %v399 = vrot.slane %v397, 4
      %v400 = vor.u32 %v399, %v395
      %v401 = vrot.slane %v400, 4
      %v403 = vshll.u32 %v272, 16
      %v405 = vrot.slane %v403, 5
      %v406 = vsel %vm286, %v401, %v405
      %v408 = vshrl.u32 %v245, 16
      %v410 = vrot.slane %v408, 4
      %v411 = vshll.u32 %v245, 16
      %v413 = vrot.slane %v411, 5
      %v414 = vor.u32 %v410, %v413
      %v415 = vrot.slane %v414, 4
      %v417 = vshll.u32 %v246, 16
      %v419 = vrot.slane %v417, 5
      %v420 = vsel %vm286, %v415, %v419
      %v421 = vshrl.u32 %v246, 16
      %v423 = vrot.slane %v421, 4
      %v424 = vor.u32 %v423, %v419
      %v425 = vrot.slane %v424, 4
      %v427 = vshll.u32 %v273, 16
      %v429 = vrot.slane %v427, 5
      %v430 = vsel %vm286, %v425, %v429
      %v432 = vshrl.u32 %v247, 16
      %v434 = vrot.slane %v432, 4
      %v435 = vshll.u32 %v247, 16
      %v437 = vrot.slane %v435, 5
      %v438 = vor.u32 %v434, %v437
      %v439 = vrot.slane %v438, 4
      %v441 = vshll.u32 %v248, 16
      %v443 = vrot.slane %v441, 5
      %v444 = vsel %vm286, %v439, %v443
      %v445 = vshrl.u32 %v248, 16
      %v447 = vrot.slane %v445, 4
      %v448 = vor.u32 %v447, %v443
      %v449 = vrot.slane %v448, 4
      %v451 = vshll.u32 %v274, 16
      %v453 = vrot.slane %v451, 5
      %v454 = vsel %vm286, %v449, %v453
      %v456 = vshrl.u32 %v249, 16
      %v458 = vrot.slane %v456, 4
      %v459 = vshll.u32 %v249, 16
      %v461 = vrot.slane %v459, 5
      %v462 = vor.u32 %v458, %v461
      %v463 = vrot.slane %v462, 4
      %v465 = vshll.u32 %v250, 16
      %v467 = vrot.slane %v465, 5
      %v468 = vsel %vm286, %v463, %v467
      %v469 = vshrl.u32 %v250, 16
      %v471 = vrot.slane %v469, 4
      %v472 = vor.u32 %v471, %v467
      %v473 = vrot.slane %v472, 4
      %v475 = vshll.u32 %v275, 16
      %v477 = vrot.slane %v475, 5
      %v478 = vsel %vm286, %v473, %v477
      %v480 = vshrl.u32 %v251, 16
      %v482 = vrot.slane %v480, 4
      %v483 = vshll.u32 %v251, 16
      %v485 = vrot.slane %v483, 5
      %v486 = vor.u32 %v482, %v485
      %v487 = vrot.slane %v486, 4
      %v489 = vshll.u32 %v252, 16
      %v491 = vrot.slane %v489, 5
      %v492 = vsel %vm286, %v487, %v491
      %v493 = vshrl.u32 %v252, 16
      %v495 = vrot.slane %v493, 4
      %v496 = vor.u32 %v495, %v491
      %v497 = vrot.slane %v496, 4
      %v499 = vshll.u32 %v276, 16
      %v501 = vrot.slane %v499, 5
      %v502 = vsel %vm286, %v497, %v501
      %v504 = vshrl.u32 %v253, 16
      %v506 = vrot.slane %v504, 4
      %v507 = vshll.u32 %v253, 16
      %v509 = vrot.slane %v507, 5
      %v510 = vor.u32 %v506, %v509
      %v511 = vrot.slane %v510, 4
      %v513 = vshll.u32 %v254, 16
      %v515 = vrot.slane %v513, 5
      %v516 = vsel %vm286, %v511, %v515
      %v517 = vshrl.u32 %v254, 16
      %v519 = vrot.slane %v517, 4
      %v520 = vor.u32 %v519, %v515
      %v521 = vrot.slane %v520, 4
      %v523 = vshll.u32 %v277, 16
      %v525 = vrot.slane %v523, 5
      %v526 = vsel %vm286, %v521, %v525
      %v528 = vshrl.u32 %v255, 16
      %v530 = vrot.slane %v528, 4
      %v531 = vshll.u32 %v255, 16
      %v533 = vrot.slane %v531, 5
      %v534 = vor.u32 %v530, %v533
      %v535 = vrot.slane %v534, 4
      %v537 = vshll.u32 %v256, 16
      %v539 = vrot.slane %v537, 5
      %v540 = vsel %vm286, %v535, %v539
      %v541 = vshrl.u32 %v256, 16
      %v543 = vrot.slane %v541, 4
      %v544 = vor.u32 %v543, %v539
      %v545 = vrot.slane %v544, 4
      %v547 = vshll.u32 %v278, 16
      %v549 = vrot.slane %v547, 5
      %v550 = vsel %vm286, %v545, %v549
      %v552 = vshrl.u32 %v257, 16
      %v554 = vrot.slane %v552, 4
      %v555 = vshll.u32 %v257, 16
      %v557 = vrot.slane %v555, 5
      %v558 = vor.u32 %v554, %v557
      %v559 = vrot.slane %v558, 4
      %v561 = vshll.u32 %v258, 16
      %v563 = vrot.slane %v561, 5
      %v564 = vsel %vm286, %v559, %v563
      %v565 = vshrl.u32 %v258, 16
      %v567 = vrot.slane %v565, 4
      %v568 = vor.u32 %v567, %v563
      %v569 = vrot.slane %v568, 4
      %v571 = vshll.u32 %v279, 16
      %v573 = vrot.slane %v571, 5
      %v574 = vsel %vm286, %v569, %v573
      %v576 = vshrl.u32 %v259, 16
      %v578 = vrot.slane %v576, 4
      %v579 = vshll.u32 %v259, 16
      %v581 = vrot.slane %v579, 5
      %v582 = vor.u32 %v578, %v581
      %v583 = vrot.slane %v582, 4
      %v585 = vshll.u32 %v260, 16
      %v587 = vrot.slane %v585, 5
      %v588 = vsel %vm286, %v583, %v587
      %v589 = vshrl.u32 %v260, 16
      %v591 = vrot.slane %v589, 4
      %v592 = vor.u32 %v591, %v587
      %v593 = vrot.slane %v592, 4
      %v595 = vshll.u32 %v280, 16
      %v597 = vrot.slane %v595, 5
      %v598 = vsel %vm286, %v593, %v597
      %v600 = vshrl.u32 %v261, 16
      %v602 = vrot.slane %v600, 4
      %v603 = vshll.u32 %v261, 16
      %v605 = vrot.slane %v603, 5
      %v606 = vor.u32 %v602, %v605
      %v607 = vrot.slane %v606, 4
      %v609 = vshll.u32 %v262, 16
      %v611 = vrot.slane %v609, 5
      %v612 = vsel %vm286, %v607, %v611
      %v613 = vshrl.u32 %v262, 16
      %v615 = vrot.slane %v613, 4
      %v616 = vor.u32 %v615, %v611
      %v617 = vrot.slane %v616, 4
      %v619 = vshll.u32 %v281, 16
      %v621 = vrot.slane %v619, 5
      %v622 = vsel %vm286, %v617, %v621
      %v624 = vshrl.u32 %v263, 16
      %v626 = vrot.slane %v624, 4
      %v627 = vshll.u32 %v263, 16
      %v629 = vrot.slane %v627, 5
      %v630 = vor.u32 %v626, %v629
      %v631 = vrot.slane %v630, 4
      %v633 = vshll.u32 %v264, 16
      %v635 = vrot.slane %v633, 5
      %v636 = vsel %vm286, %v631, %v635
      %v637 = vshrl.u32 %v264, 16
      %v639 = vrot.slane %v637, 4
      %v640 = vor.u32 %v639, %v635
      %v641 = vrot.slane %v640, 4
      %v643 = vshll.u32 %v282, 16
      %v645 = vrot.slane %v643, 5
      %v646 = vsel %vm286, %v641, %v645
      %v648 = vshrl.u32 %v265, 16
      %v650 = vrot.slane %v648, 4
      %v651 = vshll.u32 %v265, 16
      %v653 = vrot.slane %v651, 5
      %v654 = vor.u32 %v650, %v653
      %v655 = vrot.slane %v654, 4
      %v657 = vshll.u32 %v266, 16
      %v659 = vrot.slane %v657, 5
      %v660 = vsel %vm286, %v655, %v659
      %v661 = vshrl.u32 %v266, 16
      %v663 = vrot.slane %v661, 4
      %v664 = vor.u32 %v663, %v659
      %v665 = vrot.slane %v664, 4
      %v667 = vshll.u32 %v283, 16
      %v669 = vrot.slane %v667, 5
      %v670 = vsel %vm286, %v665, %v669
      %s671 = scalar_lea.vmem %s215, 2
      %v672 = vld [vmem:[%s671] sm:$0x3]
      %v673 = vunpack.c.l.b16 %v300
      %v674 = vunpack.c.l.b16 %v310
      %v675 = vunpack.c.l.b16 %v324
      %v676 = vunpack.c.l.b16 %v334
      %v677 = vunpack.c.l.b16 %v348
      %v678 = vunpack.c.l.b16 %v358
      %v679 = vunpack.c.l.b16 %v372
      %v680 = vunpack.c.l.b16 %v382
      %v681 = vunpack.c.l.b16 %v396
      %v682 = vunpack.c.l.b16 %v406
      %v683 = vunpack.c.l.b16 %v420
      %v684 = vunpack.c.l.b16 %v430
      %v685 = vunpack.c.l.b16 %v444
      %v686 = vunpack.c.l.b16 %v454
      %v687 = vunpack.c.l.b16 %v468
      %v688 = vunpack.c.l.b16 %v478
      %v689 = vunpack.c.l.b16 %v492
      %v690 = vunpack.c.l.b16 %v502
      %v691 = vunpack.c.l.b16 %v516
      %v692 = vunpack.c.l.b16 %v526
      %v693 = vunpack.c.l.b16 %v540
      %v694 = vunpack.c.l.b16 %v550
      %v695 = vunpack.c.l.b16 %v564
      %v696 = vunpack.c.l.b16 %v574
      %v697 = vunpack.c.l.b16 %v588
      %v698 = vunpack.c.l.b16 %v598
      %v699 = vunpack.c.l.b16 %v612
      %v700 = vunpack.c.l.b16 %v622
      %v701 = vunpack.c.l.b16 %v636
      %v702 = vunpack.c.l.b16 %v646
      %v703 = vunpack.c.l.b16 %v660
      %v704 = vunpack.c.l.b16 %v670
      %v705 = vpack.c.b16 %v674, %v673
      %v706 = vpack.c.b16 %v676, %v675
      %v707 = vpack.c.b16 %v678, %v677
      %v708 = vpack.c.b16 %v680, %v679
      %v709 = vpack.c.b16 %v682, %v681
      %v710 = vpack.c.b16 %v684, %v683
      %v711 = vpack.c.b16 %v686, %v685
      %v712 = vpack.c.b16 %v688, %v687
      %v713 = vpack.c.b16 %v690, %v689
      %v714 = vpack.c.b16 %v692, %v691
      %v715 = vpack.c.b16 %v694, %v693
      %v716 = vpack.c.b16 %v696, %v695
      %v717 = vpack.c.b16 %v698, %v697
      %v718 = vpack.c.b16 %v700, %v699
      %v719 = vpack.c.b16 %v702, %v701
      %v720 = vpack.c.b16 %v704, %v703
      %vm721 = vcmask 31744
      %v723 = vsel %vm721, %v705, 0
      %v726 = vsel %vm721, %v706, 0
      %v729 = vsel %vm721, %v707, 0
      %v732 = vsel %vm721, %v708, 0
      %v735 = vsel %vm721, %v709, 0
      %v738 = vsel %vm721, %v710, 0
      %v741 = vsel %vm721, %v711, 0
      %v744 = vsel %vm721, %v712, 0
      %v747 = vsel %vm721, %v713, 0
      %v750 = vsel %vm721, %v714, 0
      %v753 = vsel %vm721, %v715, 0
      %v756 = vsel %vm721, %v716, 0
      %v759 = vsel %vm721, %v717, 0
      %v762 = vsel %vm721, %v718, 0
      %v765 = vsel %vm721, %v719, 0
      %v768 = vsel %vm721, %v720, 0
      %vm770 = vcmask 1041408
      %v772 = vsel %vm770, %v672, 0
      %774 = vmatprep.subr.bf16.mxu0 0
      %775 = vmatpush1.bf16.msra.mxu0 0
      %776 = vmatprep.subr.bf16.mxu0 0
      %777 = vmatpush1.bf16.msra.mxu0 0
      %778 = vmatprep.subr.bf16.mxu0 0
      %779 = vmatpush1.bf16.msra.mxu0 0
      %780 = vmatprep.subr.bf16.mxu0 0
      %781 = vmatpush1.bf16.msra.mxu0 0
      %782 = vmatprep.subr.bf16.mxu0 0
      %783 = vmatpush1.bf16.msra.mxu0 0
      %784 = vmatprep.subr.bf16.mxu0 0
      %785 = vmatpush1.bf16.msra.mxu0 0
      %786 = vmatprep.subr.bf16.mxu0 0
      %787 = vmatpush1.bf16.msra.mxu0 0
      %788 = vmatprep.subr.bf16.mxu0 0
      %789 = vmatpush1.bf16.msra.mxu0 %v772
      %790 = vmatprep.subr.bf16.mxu0 0
      %791 = vmatpush2.bf16.msra.mxu0 0
      %792 = vmatprep.subr.bf16.mxu0 0
      %793 = vmatpush2.bf16.msra.mxu0 0
      %794 = vmatprep.subr.bf16.mxu0 0
      %795 = vmatpush2.bf16.msra.mxu0 0
      %796 = vmatprep.subr.bf16.mxu0 0
      %797 = vmatpush2.bf16.msra.mxu0 0
      %798 = vmatprep.subr.bf16.mxu0 0
      %799 = vmatpush2.bf16.msra.mxu0 0
      %800 = vmatprep.subr.bf16.mxu0 0
      %801 = vmatpush2.bf16.msra.mxu0 0
      %802 = vmatprep.subr.bf16.mxu0 0
      %803 = vmatpush2.bf16.msra.mxu0 0
      %804 = vmatprep.subr.bf16.mxu0 0
      %805 = vmatpush2.bf16.msra.mxu0 0
      %806 = vmatprep.mubr.bf16.mxu0 0
      %807 = vmatmul.mubr.bf16.gmra.mxu0 %v723
      %v808 = vpop.f32.mrf.mxu0
      %v809 = vadd.f32 0.0, %v808
      %v810 = vpop.f32.mrf.mxu0
      %v811 = vpop.f32.mrf.mxu0
      %v812 = vadd.f32 0.0, %v811
      %v813 = vpop.f32.mrf.mxu0
      %814 = vmatprep.mubr.bf16.mxu0 0
      %815 = vmatmul.mubr.bf16.gmra.mxu0 %v726
      %v816 = vpop.f32.mrf.mxu0
      %v817 = vadd.f32 0.0, %v816
      %v818 = vpop.f32.mrf.mxu0
      %v819 = vpop.f32.mrf.mxu0
      %v820 = vadd.f32 0.0, %v819
      %v821 = vpop.f32.mrf.mxu0
      %822 = vmatprep.mubr.bf16.mxu0 0
      %823 = vmatmul.mubr.bf16.gmra.mxu0 %v729
      %v824 = vpop.f32.mrf.mxu0
      %v825 = vadd.f32 0.0, %v824
      %v826 = vpop.f32.mrf.mxu0
      %v827 = vpop.f32.mrf.mxu0
      %v828 = vadd.f32 0.0, %v827
      %v829 = vpop.f32.mrf.mxu0
      %830 = vmatprep.mubr.bf16.mxu0 0
      %831 = vmatmul.mubr.bf16.gmra.mxu0 %v732
      %v832 = vpop.f32.mrf.mxu0
      %v833 = vadd.f32 0.0, %v832
      %v834 = vpop.f32.mrf.mxu0
      %v835 = vpop.f32.mrf.mxu0
      %v836 = vadd.f32 0.0, %v835
      %v837 = vpop.f32.mrf.mxu0
      %838 = vmatprep.mubr.bf16.mxu0 0
      %839 = vmatmul.mubr.bf16.gmra.mxu0 %v735
      %v840 = vpop.f32.mrf.mxu0
      %v841 = vadd.f32 0.0, %v840
      %v842 = vpop.f32.mrf.mxu0
      %v843 = vpop.f32.mrf.mxu0
      %v844 = vadd.f32 0.0, %v843
      %v845 = vpop.f32.mrf.mxu0
      %846 = vmatprep.mubr.bf16.mxu0 0
      %847 = vmatmul.mubr.bf16.gmra.mxu0 %v738
      %v848 = vpop.f32.mrf.mxu0
      %v849 = vadd.f32 0.0, %v848
      %v850 = vpop.f32.mrf.mxu0
      %v851 = vpop.f32.mrf.mxu0
      %v852 = vadd.f32 0.0, %v851
      %v853 = vpop.f32.mrf.mxu0
      %854 = vmatprep.mubr.bf16.mxu0 0
      %855 = vmatmul.mubr.bf16.gmra.mxu0 %v741
      %v856 = vpop.f32.mrf.mxu0
      %v857 = vadd.f32 0.0, %v856
      %v858 = vpop.f32.mrf.mxu0
      %v859 = vpop.f32.mrf.mxu0
      %v860 = vadd.f32 0.0, %v859
      %v861 = vpop.f32.mrf.mxu0
      %862 = vmatprep.mubr.bf16.mxu0 0
      %863 = vmatmul.mubr.bf16.gmra.mxu0 %v744
      %v864 = vpop.f32.mrf.mxu0
      %v865 = vadd.f32 0.0, %v864
      %v866 = vpop.f32.mrf.mxu0
      %v867 = vpop.f32.mrf.mxu0
      %v868 = vadd.f32 0.0, %v867
      %v869 = vpop.f32.mrf.mxu0
      %870 = vmatprep.mubr.bf16.mxu0 0
      %871 = vmatmul.mubr.bf16.gmra.mxu0 %v747
      %v872 = vpop.f32.mrf.mxu0
      %v873 = vadd.f32 0.0, %v872
      %v874 = vpop.f32.mrf.mxu0
      %v875 = vpop.f32.mrf.mxu0
      %v876 = vadd.f32 0.0, %v875
      %v877 = vpop.f32.mrf.mxu0
      %878 = vmatprep.mubr.bf16.mxu0 0
      %879 = vmatmul.mubr.bf16.gmra.mxu0 %v750
      %v880 = vpop.f32.mrf.mxu0
      %v881 = vadd.f32 0.0, %v880
      %v882 = vpop.f32.mrf.mxu0
      %v883 = vpop.f32.mrf.mxu0
      %v884 = vadd.f32 0.0, %v883
      %v885 = vpop.f32.mrf.mxu0
      %886 = vmatprep.mubr.bf16.mxu0 0
      %887 = vmatmul.mubr.bf16.gmra.mxu0 %v753
      %v888 = vpop.f32.mrf.mxu0
      %v889 = vadd.f32 0.0, %v888
      %v890 = vpop.f32.mrf.mxu0
      %v891 = vpop.f32.mrf.mxu0
      %v892 = vadd.f32 0.0, %v891
      %v893 = vpop.f32.mrf.mxu0
      %894 = vmatprep.mubr.bf16.mxu0 0
      %895 = vmatmul.mubr.bf16.gmra.mxu0 %v756
      %v896 = vpop.f32.mrf.mxu0
      %v897 = vadd.f32 0.0, %v896
      %v898 = vpop.f32.mrf.mxu0
      %v899 = vpop.f32.mrf.mxu0
      %v900 = vadd.f32 0.0, %v899
      %v901 = vpop.f32.mrf.mxu0
      %902 = vmatprep.mubr.bf16.mxu0 0
      %903 = vmatmul.mubr.bf16.gmra.mxu0 %v759
      %v904 = vpop.f32.mrf.mxu0
      %v905 = vadd.f32 0.0, %v904
      %v906 = vpop.f32.mrf.mxu0
      %v907 = vpop.f32.mrf.mxu0
      %v908 = vadd.f32 0.0, %v907
      %v909 = vpop.f32.mrf.mxu0
      %910 = vmatprep.mubr.bf16.mxu0 0
      %911 = vmatmul.mubr.bf16.gmra.mxu0 %v762
      %v912 = vpop.f32.mrf.mxu0
      %v913 = vadd.f32 0.0, %v912
      %v914 = vpop.f32.mrf.mxu0
      %v915 = vpop.f32.mrf.mxu0
      %v916 = vadd.f32 0.0, %v915
      %v917 = vpop.f32.mrf.mxu0
      %918 = vmatprep.mubr.bf16.mxu0 0
      %919 = vmatmul.mubr.bf16.gmra.mxu0 %v765
      %v920 = vpop.f32.mrf.mxu0
      %v921 = vadd.f32 0.0, %v920
      %v922 = vpop.f32.mrf.mxu0
      %v923 = vpop.f32.mrf.mxu0
      %v924 = vadd.f32 0.0, %v923
      %v925 = vpop.f32.mrf.mxu0
      %926 = vmatprep.mubr.bf16.mxu0 0
      %927 = vmatmul.mubr.bf16.gmra.mxu0 %v768
      %v928 = vpop.f32.mrf.mxu0
      %v929 = vadd.f32 0.0, %v928
      %v930 = vpop.f32.mrf.mxu0
      %v931 = vpop.f32.mrf.mxu0
      %v932 = vadd.f32 0.0, %v931
      %v933 = vpop.f32.mrf.mxu0
      %934 = vdwg.mxu0
      %v967 = vunpack.c.l.b16 %v235
      %v968 = vunpack.c.l.b16 %v236
      %v969 = vunpack.c.l.b16 %v237
      %v970 = vunpack.c.l.b16 %v238
      %v971 = vunpack.c.l.b16 %v239
      %v972 = vunpack.c.l.b16 %v240
      %v973 = vunpack.c.l.b16 %v241
      %v974 = vunpack.c.l.b16 %v242
      %v975 = vunpack.c.l.b16 %v243
      %v976 = vunpack.c.l.b16 %v244
      %v977 = vunpack.c.l.b16 %v245
      %v978 = vunpack.c.l.b16 %v246
      %v979 = vunpack.c.l.b16 %v247
      %v980 = vunpack.c.l.b16 %v248
      %v981 = vunpack.c.l.b16 %v249
      %v982 = vunpack.c.l.b16 %v250
      %v983 = vunpack.c.l.b16 %v251
      %v984 = vunpack.c.l.b16 %v252
      %v985 = vunpack.c.l.b16 %v253
      %v986 = vunpack.c.l.b16 %v254
      %v987 = vunpack.c.l.b16 %v255
      %v988 = vunpack.c.l.b16 %v256
      %v989 = vunpack.c.l.b16 %v257
      %v990 = vunpack.c.l.b16 %v258
      %v991 = vunpack.c.l.b16 %v259
      %v992 = vunpack.c.l.b16 %v260
      %v993 = vunpack.c.l.b16 %v261
      %v994 = vunpack.c.l.b16 %v262
      %v995 = vunpack.c.l.b16 %v263
      %v996 = vunpack.c.l.b16 %v264
      %v997 = vunpack.c.l.b16 %v265
      %v998 = vunpack.c.l.b16 %v266
      %v999 = vpack.c.b16 %v968, %v967
      %v1000 = vpack.c.b16 %v970, %v969
      %v1001 = vpack.c.b16 %v972, %v971
      %v1002 = vpack.c.b16 %v974, %v973
      %v1003 = vpack.c.b16 %v976, %v975
      %v1004 = vpack.c.b16 %v978, %v977
      %v1005 = vpack.c.b16 %v980, %v979
      %v1006 = vpack.c.b16 %v982, %v981
      %v1007 = vpack.c.b16 %v984, %v983
      %v1008 = vpack.c.b16 %v986, %v985
      %v1009 = vpack.c.b16 %v988, %v987
      %v1010 = vpack.c.b16 %v990, %v989
      %v1011 = vpack.c.b16 %v992, %v991
      %v1012 = vpack.c.b16 %v994, %v993
      %v1013 = vpack.c.b16 %v996, %v995
      %v1014 = vpack.c.b16 %v998, %v997
      %v1016 = vsel %vm721, %v999, 0
      %v1019 = vsel %vm721, %v1000, 0
      %v1022 = vsel %vm721, %v1001, 0
      %v1025 = vsel %vm721, %v1002, 0
      %v1028 = vsel %vm721, %v1003, 0
      %v1031 = vsel %vm721, %v1004, 0
      %v1034 = vsel %vm721, %v1005, 0
      %v1037 = vsel %vm721, %v1006, 0
      %v1040 = vsel %vm721, %v1007, 0
      %v1043 = vsel %vm721, %v1008, 0
      %v1046 = vsel %vm721, %v1009, 0
      %v1049 = vsel %vm721, %v1010, 0
      %v1052 = vsel %vm721, %v1011, 0
      %v1055 = vsel %vm721, %v1012, 0
      %v1058 = vsel %vm721, %v1013, 0
      %v1061 = vsel %vm721, %v1014, 0
      %v1064 = vsel %vm770, %v267, 0
      %1066 = vmatprep.subr.bf16.mxu0 0
      %1067 = vmatpush1.bf16.msra.mxu0 0
      %1068 = vmatprep.subr.bf16.mxu0 0
      %1069 = vmatpush1.bf16.msra.mxu0 0
      %1070 = vmatprep.subr.bf16.mxu0 0
      %1071 = vmatpush1.bf16.msra.mxu0 0
      %1072 = vmatprep.subr.bf16.mxu0 0
      %1073 = vmatpush1.bf16.msra.mxu0 0
      %1074 = vmatprep.subr.bf16.mxu0 0
      %1075 = vmatpush1.bf16.msra.mxu0 0
      %1076 = vmatprep.subr.bf16.mxu0 0
      %1077 = vmatpush1.bf16.msra.mxu0 0
      %1078 = vmatprep.subr.bf16.mxu0 0
      %1079 = vmatpush1.bf16.msra.mxu0 0
      %1080 = vmatprep.subr.bf16.mxu0 0
      %1081 = vmatpush1.bf16.msra.mxu0 %v1064
      %1082 = vmatprep.subr.bf16.mxu0 0
      %1083 = vmatpush2.bf16.msra.mxu0 0
      %1084 = vmatprep.subr.bf16.mxu0 0
      %1085 = vmatpush2.bf16.msra.mxu0 0
      %1086 = vmatprep.subr.bf16.mxu0 0
      %1087 = vmatpush2.bf16.msra.mxu0 0
      %1088 = vmatprep.subr.bf16.mxu0 0
      %1089 = vmatpush2.bf16.msra.mxu0 0
      %1090 = vmatprep.subr.bf16.mxu0 0
      %1091 = vmatpush2.bf16.msra.mxu0 0
      %1092 = vmatprep.subr.bf16.mxu0 0
      %1093 = vmatpush2.bf16.msra.mxu0 0
      %1094 = vmatprep.subr.bf16.mxu0 0
      %1095 = vmatpush2.bf16.msra.mxu0 0
      %1096 = vmatprep.subr.bf16.mxu0 0
      %1097 = vmatpush2.bf16.msra.mxu0 0
      %1098 = vmatprep.mubr.bf16.mxu0 0
      %1099 = vmatmul.mubr.bf16.gmra.mxu0 %v1016
      %v1100 = vpop.f32.mrf.mxu0
      %v1101 = vadd.f32 %v809, %v1100
      %v1102 = vpop.f32.mrf.mxu0
      %v1103 = vpop.f32.mrf.mxu0
      %v1104 = vadd.f32 %v812, %v1103
      %v1105 = vpop.f32.mrf.mxu0
      %1106 = vmatprep.mubr.bf16.mxu0 0
      %1107 = vmatmul.mubr.bf16.gmra.mxu0 %v1019
      %v1108 = vpop.f32.mrf.mxu0
      %v1109 = vadd.f32 %v817, %v1108
      %v1110 = vpop.f32.mrf.mxu0
      %v1111 = vpop.f32.mrf.mxu0
      %v1112 = vadd.f32 %v820, %v1111
      %v1113 = vpop.f32.mrf.mxu0
      %1114 = vmatprep.mubr.bf16.mxu0 0
      %1115 = vmatmul.mubr.bf16.gmra.mxu0 %v1022
      %v1116 = vpop.f32.mrf.mxu0
      %v1117 = vadd.f32 %v825, %v1116
      %v1118 = vpop.f32.mrf.mxu0
      %v1119 = vpop.f32.mrf.mxu0
      %v1120 = vadd.f32 %v828, %v1119
      %v1121 = vpop.f32.mrf.mxu0
      %1122 = vmatprep.mubr.bf16.mxu0 0
      %1123 = vmatmul.mubr.bf16.gmra.mxu0 %v1025
      %v1124 = vpop.f32.mrf.mxu0
      %v1125 = vadd.f32 %v833, %v1124
      %v1126 = vpop.f32.mrf.mxu0
      %v1127 = vpop.f32.mrf.mxu0
      %v1128 = vadd.f32 %v836, %v1127
      %v1129 = vpop.f32.mrf.mxu0
      %1130 = vmatprep.mubr.bf16.mxu0 0
      %1131 = vmatmul.mubr.bf16.gmra.mxu0 %v1028
      %v1132 = vpop.f32.mrf.mxu0
      %v1133 = vadd.f32 %v841, %v1132
      %v1134 = vpop.f32.mrf.mxu0
      %v1135 = vpop.f32.mrf.mxu0
      %v1136 = vadd.f32 %v844, %v1135
      %v1137 = vpop.f32.mrf.mxu0
      %1138 = vmatprep.mubr.bf16.mxu0 0
      %1139 = vmatmul.mubr.bf16.gmra.mxu0 %v1031
      %v1140 = vpop.f32.mrf.mxu0
      %v1141 = vadd.f32 %v849, %v1140
      %v1142 = vpop.f32.mrf.mxu0
      %v1143 = vpop.f32.mrf.mxu0
      %v1144 = vadd.f32 %v852, %v1143
      %v1145 = vpop.f32.mrf.mxu0
      %1146 = vmatprep.mubr.bf16.mxu0 0
      %1147 = vmatmul.mubr.bf16.gmra.mxu0 %v1034
      %v1148 = vpop.f32.mrf.mxu0
      %v1149 = vadd.f32 %v857, %v1148
      %v1150 = vpop.f32.mrf.mxu0
      %v1151 = vpop.f32.mrf.mxu0
      %v1152 = vadd.f32 %v860, %v1151
      %v1153 = vpop.f32.mrf.mxu0
      %1154 = vmatprep.mubr.bf16.mxu0 0
      %1155 = vmatmul.mubr.bf16.gmra.mxu0 %v1037
      %v1156 = vpop.f32.mrf.mxu0
      %v1157 = vadd.f32 %v865, %v1156
      %v1158 = vpop.f32.mrf.mxu0
      %v1159 = vpop.f32.mrf.mxu0
      %v1160 = vadd.f32 %v868, %v1159
      %v1161 = vpop.f32.mrf.mxu0
      %1162 = vmatprep.mubr.bf16.mxu0 0
      %1163 = vmatmul.mubr.bf16.gmra.mxu0 %v1040
      %v1164 = vpop.f32.mrf.mxu0
      %v1165 = vadd.f32 %v873, %v1164
      %v1166 = vpop.f32.mrf.mxu0
      %v1167 = vpop.f32.mrf.mxu0
      %v1168 = vadd.f32 %v876, %v1167
      %v1169 = vpop.f32.mrf.mxu0
      %1170 = vmatprep.mubr.bf16.mxu0 0
      %1171 = vmatmul.mubr.bf16.gmra.mxu0 %v1043
      %v1172 = vpop.f32.mrf.mxu0
      %v1173 = vadd.f32 %v881, %v1172
      %v1174 = vpop.f32.mrf.mxu0
      %v1175 = vpop.f32.mrf.mxu0
      %v1176 = vadd.f32 %v884, %v1175
      %v1177 = vpop.f32.mrf.mxu0
      %1178 = vmatprep.mubr.bf16.mxu0 0
      %1179 = vmatmul.mubr.bf16.gmra.mxu0 %v1046
      %v1180 = vpop.f32.mrf.mxu0
      %v1181 = vadd.f32 %v889, %v1180
      %v1182 = vpop.f32.mrf.mxu0
      %v1183 = vpop.f32.mrf.mxu0
      %v1184 = vadd.f32 %v892, %v1183
      %v1185 = vpop.f32.mrf.mxu0
      %1186 = vmatprep.mubr.bf16.mxu0 0
      %1187 = vmatmul.mubr.bf16.gmra.mxu0 %v1049
      %v1188 = vpop.f32.mrf.mxu0
      %v1189 = vadd.f32 %v897, %v1188
      %v1190 = vpop.f32.mrf.mxu0
      %v1191 = vpop.f32.mrf.mxu0
      %v1192 = vadd.f32 %v900, %v1191
      %v1193 = vpop.f32.mrf.mxu0
      %1194 = vmatprep.mubr.bf16.mxu0 0
      %1195 = vmatmul.mubr.bf16.gmra.mxu0 %v1052
      %v1196 = vpop.f32.mrf.mxu0
      %v1197 = vadd.f32 %v905, %v1196
      %v1198 = vpop.f32.mrf.mxu0
      %v1199 = vpop.f32.mrf.mxu0
      %v1200 = vadd.f32 %v908, %v1199
      %v1201 = vpop.f32.mrf.mxu0
      %1202 = vmatprep.mubr.bf16.mxu0 0
      %1203 = vmatmul.mubr.bf16.gmra.mxu0 %v1055
      %v1204 = vpop.f32.mrf.mxu0
      %v1205 = vadd.f32 %v913, %v1204
      %v1206 = vpop.f32.mrf.mxu0
      %v1207 = vpop.f32.mrf.mxu0
      %v1208 = vadd.f32 %v916, %v1207
      %v1209 = vpop.f32.mrf.mxu0
      %1210 = vmatprep.mubr.bf16.mxu0 0
      %1211 = vmatmul.mubr.bf16.gmra.mxu0 %v1058
      %v1212 = vpop.f32.mrf.mxu0
      %v1213 = vadd.f32 %v921, %v1212
      %v1214 = vpop.f32.mrf.mxu0
      %v1215 = vpop.f32.mrf.mxu0
      %v1216 = vadd.f32 %v924, %v1215
      %v1217 = vpop.f32.mrf.mxu0
      %1218 = vmatprep.mubr.bf16.mxu0 0
      %1219 = vmatmul.mubr.bf16.gmra.mxu0 %v1061
      %v1220 = vpop.f32.mrf.mxu0
      %v1221 = vadd.f32 %v929, %v1220
      %v1222 = vpop.f32.mrf.mxu0
      %v1223 = vpop.f32.mrf.mxu0
      %v1224 = vadd.f32 %v932, %v1223
      %v1225 = vpop.f32.mrf.mxu0
      %1226 = vdwg.mxu0
      %v1227 = vld [vmem:[%s234] sm:$0xe]
      %v1228 = vld [vmem:[%s234 + $0xc] sm:$0xe]
      %v1229 = vld [vmem:[%s234 + $0x18] sm:$0xe]
      %v1230 = vld [vmem:[%s234 + $0x24] sm:$0xe]
      %v1231 = vld [vmem:[%s234 + $0x30] sm:$0xe]
      %v1232 = vld [vmem:[%s234 + $0x3c] sm:$0xe]
      %v1233 = vld [vmem:[%s234 + $0x48] sm:$0xe]
      %v1234 = vld [vmem:[%s234 + $0x54] sm:$0xe]
      %v1235 = vld [vmem:[%s234 + $0x60] sm:$0xe]
      %v1236 = vld [vmem:[%s234 + $0x6c] sm:$0xe]
      %v1237 = vld [vmem:[%s234 + $0x78] sm:$0xe]
      %v1238 = vld [vmem:[%s234 + $0x84] sm:$0xe]
      %v1239 = vld [vmem:[%s234 + $0x90] sm:$0xe]
      %v1240 = vld [vmem:[%s234 + $0x9c] sm:$0xe]
      %v1241 = vld [vmem:[%s234 + $0xa8] sm:$0xe]
      %v1242 = vld [vmem:[%s234 + $0xb4] sm:$0xe]
      %vm1275 = vcmask 1042432
      %vm1276 = vcmask 1046532
      %vm1277 = vmor %vm1275, %vm1276
      %v1278 = vrot.slane %v1227, 5
      %v1279 = vrot.slane %v1278, 4
      %v1280 = vrot.slane %v236, 5
      %v1281 = vsel %vm1277, %v1279, %v1280
      %v1282 = vrot.slane %v1280, 4
      %v1283 = vrot.slane %v268, 5
      %v1284 = vsel %vm1277, %v1282, %v1283
      %v1285 = vrot.slane %v1228, 5
      %v1286 = vrot.slane %v1285, 4
      %v1287 = vrot.slane %v238, 5
      %v1288 = vsel %vm1277, %v1286, %v1287
      %v1289 = vrot.slane %v1287, 4
      %v1290 = vrot.slane %v269, 5
      %v1291 = vsel %vm1277, %v1289, %v1290
      %v1292 = vrot.slane %v1229, 5
      %v1293 = vrot.slane %v1292, 4
      %v1294 = vrot.slane %v240, 5
      %v1295 = vsel %vm1277, %v1293, %v1294
      %v1296 = vrot.slane %v1294, 4
      %v1297 = vrot.slane %v270, 5
      %v1298 = vsel %vm1277, %v1296, %v1297
      %v1299 = vrot.slane %v1230, 5
      %v1300 = vrot.slane %v1299, 4
      %v1301 = vrot.slane %v242, 5
      %v1302 = vsel %vm1277, %v1300, %v1301
      %v1303 = vrot.slane %v1301, 4
      %v1304 = vrot.slane %v271, 5
      %v1305 = vsel %vm1277, %v1303, %v1304
      %v1306 = vrot.slane %v1231, 5
      %v1307 = vrot.slane %v1306, 4
      %v1308 = vrot.slane %v244, 5
      %v1309 = vsel %vm1277, %v1307, %v1308
      %v1310 = vrot.slane %v1308, 4
      %v1311 = vrot.slane %v272, 5
      %v1312 = vsel %vm1277, %v1310, %v1311
      %v1313 = vrot.slane %v1232, 5
      %v1314 = vrot.slane %v1313, 4
      %v1315 = vrot.slane %v246, 5
      %v1316 = vsel %vm1277, %v1314, %v1315
      %v1317 = vrot.slane %v1315, 4
      %v1318 = vrot.slane %v273, 5
      %v1319 = vsel %vm1277, %v1317, %v1318
      %v1320 = vrot.slane %v1233, 5
      %v1321 = vrot.slane %v1320, 4
      %v1322 = vrot.slane %v248, 5
      %v1323 = vsel %vm1277, %v1321, %v1322
      %v1324 = vrot.slane %v1322, 4
      %v1325 = vrot.slane %v274, 5
      %v1326 = vsel %vm1277, %v1324, %v1325
      %v1327 = vrot.slane %v1234, 5
      %v1328 = vrot.slane %v1327, 4
      %v1329 = vrot.slane %v250, 5
      %v1330 = vsel %vm1277, %v1328, %v1329
      %v1331 = vrot.slane %v1329, 4
      %v1332 = vrot.slane %v275, 5
      %v1333 = vsel %vm1277, %v1331, %v1332
      %v1334 = vrot.slane %v1235, 5
      %v1335 = vrot.slane %v1334, 4
      %v1336 = vrot.slane %v252, 5
      %v1337 = vsel %vm1277, %v1335, %v1336
      %v1338 = vrot.slane %v1336, 4
      %v1339 = vrot.slane %v276, 5
      %v1340 = vsel %vm1277, %v1338, %v1339
      %v1341 = vrot.slane %v1236, 5
      %v1342 = vrot.slane %v1341, 4
      %v1343 = vrot.slane %v254, 5
      %v1344 = vsel %vm1277, %v1342, %v1343
      %v1345 = vrot.slane %v1343, 4
      %v1346 = vrot.slane %v277, 5
      %v1347 = vsel %vm1277, %v1345, %v1346
      %v1348 = vrot.slane %v1237, 5
      %v1349 = vrot.slane %v1348, 4
      %v1350 = vrot.slane %v256, 5
      %v1351 = vsel %vm1277, %v1349, %v1350
      %v1352 = vrot.slane %v1350, 4
      %v1353 = vrot.slane %v278, 5
      %v1354 = vsel %vm1277, %v1352, %v1353
      %v1355 = vrot.slane %v1238, 5
      %v1356 = vrot.slane %v1355, 4
      %v1357 = vrot.slane %v258, 5
      %v1358 = vsel %vm1277, %v1356, %v1357
      %v1359 = vrot.slane %v1357, 4
      %v1360 = vrot.slane %v279, 5
      %v1361 = vsel %vm1277, %v1359, %v1360
      %v1362 = vrot.slane %v1239, 5
      %v1363 = vrot.slane %v1362, 4
      %v1364 = vrot.slane %v260, 5
      %v1365 = vsel %vm1277, %v1363, %v1364
      %v1366 = vrot.slane %v1364, 4
      %v1367 = vrot.slane %v280, 5
      %v1368 = vsel %vm1277, %v1366, %v1367
      %v1369 = vrot.slane %v1240, 5
      %v1370 = vrot.slane %v1369, 4
      %v1371 = vrot.slane %v262, 5
      %v1372 = vsel %vm1277, %v1370, %v1371
      %v1373 = vrot.slane %v1371, 4
      %v1374 = vrot.slane %v281, 5
      %v1375 = vsel %vm1277, %v1373, %v1374
      %v1376 = vrot.slane %v1241, 5
      %v1377 = vrot.slane %v1376, 4
      %v1378 = vrot.slane %v264, 5
      %v1379 = vsel %vm1277, %v1377, %v1378
      %v1380 = vrot.slane %v1378, 4
      %v1381 = vrot.slane %v282, 5
      %v1382 = vsel %vm1277, %v1380, %v1381
      %v1383 = vrot.slane %v1242, 5
      %v1384 = vrot.slane %v1383, 4
      %v1385 = vrot.slane %v266, 5
      %v1386 = vsel %vm1277, %v1384, %v1385
      %v1387 = vrot.slane %v1385, 4
      %v1388 = vrot.slane %v283, 5
      %v1389 = vsel %vm1277, %v1387, %v1388
      %s1390 = scalar_lea.vmem %s215, 4
      %v1391 = vld [vmem:[%s1390] sm:$0x3]
      %v1392 = vunpack.c.l.b16 %v1281
      %v1393 = vunpack.c.l.b16 %v1284
      %v1394 = vunpack.c.l.b16 %v1288
      %v1395 = vunpack.c.l.b16 %v1291
      %v1396 = vunpack.c.l.b16 %v1295
      %v1397 = vunpack.c.l.b16 %v1298
      %v1398 = vunpack.c.l.b16 %v1302
      %v1399 = vunpack.c.l.b16 %v1305
      %v1400 = vunpack.c.l.b16 %v1309
      %v1401 = vunpack.c.l.b16 %v1312
      %v1402 = vunpack.c.l.b16 %v1316
      %v1403 = vunpack.c.l.b16 %v1319
      %v1404 = vunpack.c.l.b16 %v1323
      %v1405 = vunpack.c.l.b16 %v1326
      %v1406 = vunpack.c.l.b16 %v1330
      %v1407 = vunpack.c.l.b16 %v1333
      %v1408 = vunpack.c.l.b16 %v1337
      %v1409 = vunpack.c.l.b16 %v1340
      %v1410 = vunpack.c.l.b16 %v1344
      %v1411 = vunpack.c.l.b16 %v1347
      %v1412 = vunpack.c.l.b16 %v1351
      %v1413 = vunpack.c.l.b16 %v1354
      %v1414 = vunpack.c.l.b16 %v1358
      %v1415 = vunpack.c.l.b16 %v1361
      %v1416 = vunpack.c.l.b16 %v1365
      %v1417 = vunpack.c.l.b16 %v1368
      %v1418 = vunpack.c.l.b16 %v1372
      %v1419 = vunpack.c.l.b16 %v1375
      %v1420 = vunpack.c.l.b16 %v1379
      %v1421 = vunpack.c.l.b16 %v1382
      %v1422 = vunpack.c.l.b16 %v1386
      %v1423 = vunpack.c.l.b16 %v1389
      %v1424 = vpack.c.b16 %v1393, %v1392
      %v1425 = vpack.c.b16 %v1395, %v1394
      %v1426 = vpack.c.b16 %v1397, %v1396
      %v1427 = vpack.c.b16 %v1399, %v1398
      %v1428 = vpack.c.b16 %v1401, %v1400
      %v1429 = vpack.c.b16 %v1403, %v1402
      %v1430 = vpack.c.b16 %v1405, %v1404
      %v1431 = vpack.c.b16 %v1407, %v1406
      %v1432 = vpack.c.b16 %v1409, %v1408
      %v1433 = vpack.c.b16 %v1411, %v1410
      %v1434 = vpack.c.b16 %v1413, %v1412
      %v1435 = vpack.c.b16 %v1415, %v1414
      %v1436 = vpack.c.b16 %v1417, %v1416
      %v1437 = vpack.c.b16 %v1419, %v1418
      %v1438 = vpack.c.b16 %v1421, %v1420
      %v1439 = vpack.c.b16 %v1423, %v1422
      %v1441 = vsel %vm721, %v1424, 0
      %v1444 = vsel %vm721, %v1425, 0
      %v1447 = vsel %vm721, %v1426, 0
      %v1450 = vsel %vm721, %v1427, 0
      %v1453 = vsel %vm721, %v1428, 0
      %v1456 = vsel %vm721, %v1429, 0
      %v1459 = vsel %vm721, %v1430, 0
      %v1462 = vsel %vm721, %v1431, 0
      %v1465 = vsel %vm721, %v1432, 0
      %v1468 = vsel %vm721, %v1433, 0
      %v1471 = vsel %vm721, %v1434, 0
      %v1474 = vsel %vm721, %v1435, 0
      %v1477 = vsel %vm721, %v1436, 0
      %v1480 = vsel %vm721, %v1437, 0
      %v1483 = vsel %vm721, %v1438, 0
      %v1486 = vsel %vm721, %v1439, 0
      %v1489 = vsel %vm770, %v1391, 0
      %1491 = vmatprep.subr.bf16.mxu0 0
      %1492 = vmatpush1.bf16.msra.mxu0 0
      %1493 = vmatprep.subr.bf16.mxu0 0
      %1494 = vmatpush1.bf16.msra.mxu0 0
      %1495 = vmatprep.subr.bf16.mxu0 0
      %1496 = vmatpush1.bf16.msra.mxu0 0
      %1497 = vmatprep.subr.bf16.mxu0 0
      %1498 = vmatpush1.bf16.msra.mxu0 0
      %1499 = vmatprep.subr.bf16.mxu0 0
      %1500 = vmatpush1.bf16.msra.mxu0 0
      %1501 = vmatprep.subr.bf16.mxu0 0
      %1502 = vmatpush1.bf16.msra.mxu0 0
      %1503 = vmatprep.subr.bf16.mxu0 0
      %1504 = vmatpush1.bf16.msra.mxu0 0
      %1505 = vmatprep.subr.bf16.mxu0 0
      %1506 = vmatpush1.bf16.msra.mxu0 %v1489
      %1507 = vmatprep.subr.bf16.mxu0 0
      %1508 = vmatpush2.bf16.msra.mxu0 0
      %1509 = vmatprep.subr.bf16.mxu0 0
      %1510 = vmatpush2.bf16.msra.mxu0 0
      %1511 = vmatprep.subr.bf16.mxu0 0
      %1512 = vmatpush2.bf16.msra.mxu0 0
      %1513 = vmatprep.subr.bf16.mxu0 0
      %1514 = vmatpush2.bf16.msra.mxu0 0
      %1515 = vmatprep.subr.bf16.mxu0 0
      %1516 = vmatpush2.bf16.msra.mxu0 0
      %1517 = vmatprep.subr.bf16.mxu0 0
      %1518 = vmatpush2.bf16.msra.mxu0 0
      %1519 = vmatprep.subr.bf16.mxu0 0
      %1520 = vmatpush2.bf16.msra.mxu0 0
      %1521 = vmatprep.subr.bf16.mxu0 0
      %1522 = vmatpush2.bf16.msra.mxu0 0
      %1523 = vmatprep.mubr.bf16.mxu0 0
      %1524 = vmatmul.mubr.bf16.gmra.mxu0 %v1441
      %v1525 = vpop.f32.mrf.mxu0
      %v1526 = vadd.f32 0.0, %v1525
      %v1527 = vpop.f32.mrf.mxu0
      %v1528 = vpop.f32.mrf.mxu0
      %v1529 = vadd.f32 0.0, %v1528
      %v1530 = vpop.f32.mrf.mxu0
      %1531 = vmatprep.mubr.bf16.mxu0 0
      %1532 = vmatmul.mubr.bf16.gmra.mxu0 %v1444
      %v1533 = vpop.f32.mrf.mxu0
      %v1534 = vadd.f32 0.0, %v1533
      %v1535 = vpop.f32.mrf.mxu0
      %v1536 = vpop.f32.mrf.mxu0
      %v1537 = vadd.f32 0.0, %v1536
      %v1538 = vpop.f32.mrf.mxu0
      %1539 = vmatprep.mubr.bf16.mxu0 0
      %1540 = vmatmul.mubr.bf16.gmra.mxu0 %v1447
      %v1541 = vpop.f32.mrf.mxu0
      %v1542 = vadd.f32 0.0, %v1541
      %v1543 = vpop.f32.mrf.mxu0
      %v1544 = vpop.f32.mrf.mxu0
      %v1545 = vadd.f32 0.0, %v1544
      %v1546 = vpop.f32.mrf.mxu0
      %1547 = vmatprep.mubr.bf16.mxu0 0
      %1548 = vmatmul.mubr.bf16.gmra.mxu0 %v1450
      %v1549 = vpop.f32.mrf.mxu0
      %v1550 = vadd.f32 0.0, %v1549
      %v1551 = vpop.f32.mrf.mxu0
      %v1552 = vpop.f32.mrf.mxu0
      %v1553 = vadd.f32 0.0, %v1552
      %v1554 = vpop.f32.mrf.mxu0
      %1555 = vmatprep.mubr.bf16.mxu0 0
      %1556 = vmatmul.mubr.bf16.gmra.mxu0 %v1453
      %v1557 = vpop.f32.mrf.mxu0
      %v1558 = vadd.f32 0.0, %v1557
      %v1559 = vpop.f32.mrf.mxu0
      %v1560 = vpop.f32.mrf.mxu0
      %v1561 = vadd.f32 0.0, %v1560
      %v1562 = vpop.f32.mrf.mxu0
      %1563 = vmatprep.mubr.bf16.mxu0 0
      %1564 = vmatmul.mubr.bf16.gmra.mxu0 %v1456
      %v1565 = vpop.f32.mrf.mxu0
      %v1566 = vadd.f32 0.0, %v1565
      %v1567 = vpop.f32.mrf.mxu0
      %v1568 = vpop.f32.mrf.mxu0
      %v1569 = vadd.f32 0.0, %v1568
      %v1570 = vpop.f32.mrf.mxu0
      %1571 = vmatprep.mubr.bf16.mxu0 0
      %1572 = vmatmul.mubr.bf16.gmra.mxu0 %v1459
      %v1573 = vpop.f32.mrf.mxu0
      %v1574 = vadd.f32 0.0, %v1573
      %v1575 = vpop.f32.mrf.mxu0
      %v1576 = vpop.f32.mrf.mxu0
      %v1577 = vadd.f32 0.0, %v1576
      %v1578 = vpop.f32.mrf.mxu0
      %1579 = vmatprep.mubr.bf16.mxu0 0
      %1580 = vmatmul.mubr.bf16.gmra.mxu0 %v1462
      %v1581 = vpop.f32.mrf.mxu0
      %v1582 = vadd.f32 0.0, %v1581
      %v1583 = vpop.f32.mrf.mxu0
      %v1584 = vpop.f32.mrf.mxu0
      %v1585 = vadd.f32 0.0, %v1584
      %v1586 = vpop.f32.mrf.mxu0
      %1587 = vmatprep.mubr.bf16.mxu0 0
      %1588 = vmatmul.mubr.bf16.gmra.mxu0 %v1465
      %v1589 = vpop.f32.mrf.mxu0
      %v1590 = vadd.f32 0.0, %v1589
      %v1591 = vpop.f32.mrf.mxu0
      %v1592 = vpop.f32.mrf.mxu0
      %v1593 = vadd.f32 0.0, %v1592
      %v1594 = vpop.f32.mrf.mxu0
      %1595 = vmatprep.mubr.bf16.mxu0 0
      %1596 = vmatmul.mubr.bf16.gmra.mxu0 %v1468
      %v1597 = vpop.f32.mrf.mxu0
      %v1598 = vadd.f32 0.0, %v1597
      %v1599 = vpop.f32.mrf.mxu0
      %v1600 = vpop.f32.mrf.mxu0
      %v1601 = vadd.f32 0.0, %v1600
      %v1602 = vpop.f32.mrf.mxu0
      %1603 = vmatprep.mubr.bf16.mxu0 0
      %1604 = vmatmul.mubr.bf16.gmra.mxu0 %v1471
      %v1605 = vpop.f32.mrf.mxu0
      %v1606 = vadd.f32 0.0, %v1605
      %v1607 = vpop.f32.mrf.mxu0
      %v1608 = vpop.f32.mrf.mxu0
      %v1609 = vadd.f32 0.0, %v1608
      %v1610 = vpop.f32.mrf.mxu0
      %1611 = vmatprep.mubr.bf16.mxu0 0
      %1612 = vmatmul.mubr.bf16.gmra.mxu0 %v1474
      %v1613 = vpop.f32.mrf.mxu0
      %v1614 = vadd.f32 0.0, %v1613
      %v1615 = vpop.f32.mrf.mxu0
      %v1616 = vpop.f32.mrf.mxu0
      %v1617 = vadd.f32 0.0, %v1616
      %v1618 = vpop.f32.mrf.mxu0
      %1619 = vmatprep.mubr.bf16.mxu0 0
      %1620 = vmatmul.mubr.bf16.gmra.mxu0 %v1477
      %v1621 = vpop.f32.mrf.mxu0
      %v1622 = vadd.f32 0.0, %v1621
      %v1623 = vpop.f32.mrf.mxu0
      %v1624 = vpop.f32.mrf.mxu0
      %v1625 = vadd.f32 0.0, %v1624
      %v1626 = vpop.f32.mrf.mxu0
      %1627 = vmatprep.mubr.bf16.mxu0 0
      %1628 = vmatmul.mubr.bf16.gmra.mxu0 %v1480
      %v1629 = vpop.f32.mrf.mxu0
      %v1630 = vadd.f32 0.0, %v1629
      %v1631 = vpop.f32.mrf.mxu0
      %v1632 = vpop.f32.mrf.mxu0
      %v1633 = vadd.f32 0.0, %v1632
      %v1634 = vpop.f32.mrf.mxu0
      %1635 = vmatprep.mubr.bf16.mxu0 0
      %1636 = vmatmul.mubr.bf16.gmra.mxu0 %v1483
      %v1637 = vpop.f32.mrf.mxu0
      %v1638 = vadd.f32 0.0, %v1637
      %v1639 = vpop.f32.mrf.mxu0
      %v1640 = vpop.f32.mrf.mxu0
      %v1641 = vadd.f32 0.0, %v1640
      %v1642 = vpop.f32.mrf.mxu0
      %1643 = vmatprep.mubr.bf16.mxu0 0
      %1644 = vmatmul.mubr.bf16.gmra.mxu0 %v1486
      %v1645 = vpop.f32.mrf.mxu0
      %v1646 = vadd.f32 0.0, %v1645
      %v1647 = vpop.f32.mrf.mxu0
      %v1648 = vpop.f32.mrf.mxu0
      %v1649 = vadd.f32 0.0, %v1648
      %v1650 = vpop.f32.mrf.mxu0
      %1651 = vdwg.mxu0
      %v1652 = vadd.f32 %v1101, %v1526
      %v1653 = vadd.f32 %v1104, %v1529
      %v1654 = vadd.f32 %v1109, %v1534
      %v1655 = vadd.f32 %v1112, %v1537
      %v1656 = vadd.f32 %v1117, %v1542
      %v1657 = vadd.f32 %v1120, %v1545
      %v1658 = vadd.f32 %v1125, %v1550
      %v1659 = vadd.f32 %v1128, %v1553
      %v1660 = vadd.f32 %v1133, %v1558
      %v1661 = vadd.f32 %v1136, %v1561
      %v1662 = vadd.f32 %v1141, %v1566
      %v1663 = vadd.f32 %v1144, %v1569
      %v1664 = vadd.f32 %v1149, %v1574
      %v1665 = vadd.f32 %v1152, %v1577
      %v1666 = vadd.f32 %v1157, %v1582
      %v1667 = vadd.f32 %v1160, %v1585
      %v1668 = vadd.f32 %v1165, %v1590
      %v1669 = vadd.f32 %v1168, %v1593
      %v1670 = vadd.f32 %v1173, %v1598
      %v1671 = vadd.f32 %v1176, %v1601
      %v1672 = vadd.f32 %v1181, %v1606
      %v1673 = vadd.f32 %v1184, %v1609
      %v1674 = vadd.f32 %v1189, %v1614
      %v1675 = vadd.f32 %v1192, %v1617
      %v1676 = vadd.f32 %v1197, %v1622
      %v1677 = vadd.f32 %v1200, %v1625
      %v1678 = vadd.f32 %v1205, %v1630
      %v1679 = vadd.f32 %v1208, %v1633
      %v1680 = vadd.f32 %v1213, %v1638
      %v1681 = vadd.f32 %v1216, %v1641
      %v1682 = vadd.f32 %v1221, %v1646
      %v1683 = vadd.f32 %v1224, %v1649
      %s1684 = sadd.s32 %s231, 1
      %s1685 = smul.u32 %s1684, 3
      %s1686 = smul.addr %s1685, 4
      %s1687 = scalar_lea.vmem %s210, %s1686
      %v1688 = vld [vmem:[%s1687] sm:$0xf]
      %v1689 = vld [vmem:[%s1687 + $0x4] sm:$0xf]
      %v1690 = vld [vmem:[%s1687 + $0xc] sm:$0xf]
      %v1691 = vld [vmem:[%s1687 + $0x10] sm:$0xf]
      %v1692 = vld [vmem:[%s1687 + $0x18] sm:$0xf]
      %v1693 = vld [vmem:[%s1687 + $0x1c] sm:$0xf]
      %v1694 = vld [vmem:[%s1687 + $0x24] sm:$0xf]
      %v1695 = vld [vmem:[%s1687 + $0x28] sm:$0xf]
      %v1696 = vld [vmem:[%s1687 + $0x30] sm:$0xf]
      %v1697 = vld [vmem:[%s1687 + $0x34] sm:$0xf]
      %v1698 = vld [vmem:[%s1687 + $0x3c] sm:$0xf]
      %v1699 = vld [vmem:[%s1687 + $0x40] sm:$0xf]
      %v1700 = vld [vmem:[%s1687 + $0x48] sm:$0xf]
      %v1701 = vld [vmem:[%s1687 + $0x4c] sm:$0xf]
      %v1702 = vld [vmem:[%s1687 + $0x54] sm:$0xf]
      %v1703 = vld [vmem:[%s1687 + $0x58] sm:$0xf]
      %v1704 = vld [vmem:[%s1687 + $0x60] sm:$0xf]
      %v1705 = vld [vmem:[%s1687 + $0x64] sm:$0xf]
      %v1706 = vld [vmem:[%s1687 + $0x6c] sm:$0xf]
      %v1707 = vld [vmem:[%s1687 + $0x70] sm:$0xf]
      %v1708 = vld [vmem:[%s1687 + $0x78] sm:$0xf]
      %v1709 = vld [vmem:[%s1687 + $0x7c] sm:$0xf]
      %v1710 = vld [vmem:[%s1687 + $0x84] sm:$0xf]
      %v1711 = vld [vmem:[%s1687 + $0x88] sm:$0xf]
      %v1712 = vld [vmem:[%s1687 + $0x90] sm:$0xf]
      %v1713 = vld [vmem:[%s1687 + $0x94] sm:$0xf]
      %v1714 = vld [vmem:[%s1687 + $0x9c] sm:$0xf]
      %v1715 = vld [vmem:[%s1687 + $0xa0] sm:$0xf]
      %v1716 = vld [vmem:[%s1687 + $0xa8] sm:$0xf]
      %v1717 = vld [vmem:[%s1687 + $0xac] sm:$0xf]
      %v1718 = vld [vmem:[%s1687 + $0xb4] sm:$0xf]
      %v1719 = vld [vmem:[%s1687 + $0xb8] sm:$0xf]
      %s1720 = scalar_lea.vmem %s215, 6
      %v1721 = vld [vmem:[%s1720] sm:$0x3]
      %v1754 = vunpack.c.l.b16 %v1688
      %v1755 = vunpack.c.l.b16 %v1689
      %v1756 = vunpack.c.l.b16 %v1690
      %v1757 = vunpack.c.l.b16 %v1691
      %v1758 = vunpack.c.l.b16 %v1692
      %v1759 = vunpack.c.l.b16 %v1693
      %v1760 = vunpack.c.l.b16 %v1694
      %v1761 = vunpack.c.l.b16 %v1695
      %v1762 = vunpack.c.l.b16 %v1696
      %v1763 = vunpack.c.l.b16 %v1697
      %v1764 = vunpack.c.l.b16 %v1698
      %v1765 = vunpack.c.l.b16 %v1699
      %v1766 = vunpack.c.l.b16 %v1700
      %v1767 = vunpack.c.l.b16 %v1701
      %v1768 = vunpack.c.l.b16 %v1702
      %v1769 = vunpack.c.l.b16 %v1703
      %v1770 = vunpack.c.l.b16 %v1704
      %v1771 = vunpack.c.l.b16 %v1705
      %v1772 = vunpack.c.l.b16 %v1706
      %v1773 = vunpack.c.l.b16 %v1707
      %v1774 = vunpack.c.l.b16 %v1708
      %v1775 = vunpack.c.l.b16 %v1709
      %v1776 = vunpack.c.l.b16 %v1710
      %v1777 = vunpack.c.l.b16 %v1711
      %v1778 = vunpack.c.l.b16 %v1712
      %v1779 = vunpack.c.l.b16 %v1713
      %v1780 = vunpack.c.l.b16 %v1714
      %v1781 = vunpack.c.l.b16 %v1715
      %v1782 = vunpack.c.l.b16 %v1716
      %v1783 = vunpack.c.l.b16 %v1717
      %v1784 = vunpack.c.l.b16 %v1718
      %v1785 = vunpack.c.l.b16 %v1719
      %v1786 = vpack.c.b16 %v1755, %v1754
      %v1787 = vpack.c.b16 %v1757, %v1756
      %v1788 = vpack.c.b16 %v1759, %v1758
      %v1789 = vpack.c.b16 %v1761, %v1760
      %v1790 = vpack.c.b16 %v1763, %v1762
      %v1791 = vpack.c.b16 %v1765, %v1764
      %v1792 = vpack.c.b16 %v1767, %v1766
      %v1793 = vpack.c.b16 %v1769, %v1768
      %v1794 = vpack.c.b16 %v1771, %v1770
      %v1795 = vpack.c.b16 %v1773, %v1772
      %v1796 = vpack.c.b16 %v1775, %v1774
      %v1797 = vpack.c.b16 %v1777, %v1776
      %v1798 = vpack.c.b16 %v1779, %v1778
      %v1799 = vpack.c.b16 %v1781, %v1780
      %v1800 = vpack.c.b16 %v1783, %v1782
      %v1801 = vpack.c.b16 %v1785, %v1784
      %v1803 = vsel %vm721, %v1786, 0
      %v1806 = vsel %vm721, %v1787, 0
      %v1809 = vsel %vm721, %v1788, 0
      %v1812 = vsel %vm721, %v1789, 0
      %v1815 = vsel %vm721, %v1790, 0
      %v1818 = vsel %vm721, %v1791, 0
      %v1821 = vsel %vm721, %v1792, 0
      %v1824 = vsel %vm721, %v1793, 0
      %v1827 = vsel %vm721, %v1794, 0
      %v1830 = vsel %vm721, %v1795, 0
      %v1833 = vsel %vm721, %v1796, 0
      %v1836 = vsel %vm721, %v1797, 0
      %v1839 = vsel %vm721, %v1798, 0
      %v1842 = vsel %vm721, %v1799, 0
      %v1845 = vsel %vm721, %v1800, 0
      %v1848 = vsel %vm721, %v1801, 0
      %v1851 = vsel %vm770, %v1721, 0
      %1853 = vmatprep.subr.bf16.mxu0 0
      %1854 = vmatpush1.bf16.msra.mxu0 0
      %1855 = vmatprep.subr.bf16.mxu0 0
      %1856 = vmatpush1.bf16.msra.mxu0 0
      %1857 = vmatprep.subr.bf16.mxu0 0
      %1858 = vmatpush1.bf16.msra.mxu0 0
      %1859 = vmatprep.subr.bf16.mxu0 0
      %1860 = vmatpush1.bf16.msra.mxu0 0
      %1861 = vmatprep.subr.bf16.mxu0 0
      %1862 = vmatpush1.bf16.msra.mxu0 0
      %1863 = vmatprep.subr.bf16.mxu0 0
      %1864 = vmatpush1.bf16.msra.mxu0 0
      %1865 = vmatprep.subr.bf16.mxu0 0
      %1866 = vmatpush1.bf16.msra.mxu0 0
      %1867 = vmatprep.subr.bf16.mxu0 0
      %1868 = vmatpush1.bf16.msra.mxu0 %v1851
      %1869 = vmatprep.subr.bf16.mxu0 0
      %1870 = vmatpush2.bf16.msra.mxu0 0
      %1871 = vmatprep.subr.bf16.mxu0 0
      %1872 = vmatpush2.bf16.msra.mxu0 0
      %1873 = vmatprep.subr.bf16.mxu0 0
      %1874 = vmatpush2.bf16.msra.mxu0 0
      %1875 = vmatprep.subr.bf16.mxu0 0
      %1876 = vmatpush2.bf16.msra.mxu0 0
      %1877 = vmatprep.subr.bf16.mxu0 0
      %1878 = vmatpush2.bf16.msra.mxu0 0
      %1879 = vmatprep.subr.bf16.mxu0 0
      %1880 = vmatpush2.bf16.msra.mxu0 0
      %1881 = vmatprep.subr.bf16.mxu0 0
      %1882 = vmatpush2.bf16.msra.mxu0 0
      %1883 = vmatprep.subr.bf16.mxu0 0
      %1884 = vmatpush2.bf16.msra.mxu0 0
      %1885 = vmatprep.mubr.bf16.mxu0 0
      %1886 = vmatmul.mubr.bf16.gmra.mxu0 %v1803
      %v1887 = vpop.f32.mrf.mxu0
      %v1888 = vadd.f32 0.0, %v1887
      %v1889 = vpop.f32.mrf.mxu0
      %v1890 = vpop.f32.mrf.mxu0
      %v1891 = vadd.f32 0.0, %v1890
      %v1892 = vpop.f32.mrf.mxu0
      %1893 = vmatprep.mubr.bf16.mxu0 0
      %1894 = vmatmul.mubr.bf16.gmra.mxu0 %v1806
      %v1895 = vpop.f32.mrf.mxu0
      %v1896 = vadd.f32 0.0, %v1895
      %v1897 = vpop.f32.mrf.mxu0
      %v1898 = vpop.f32.mrf.mxu0
      %v1899 = vadd.f32 0.0, %v1898
      %v1900 = vpop.f32.mrf.mxu0
      %1901 = vmatprep.mubr.bf16.mxu0 0
      %1902 = vmatmul.mubr.bf16.gmra.mxu0 %v1809
      %v1903 = vpop.f32.mrf.mxu0
      %v1904 = vadd.f32 0.0, %v1903
      %v1905 = vpop.f32.mrf.mxu0
      %v1906 = vpop.f32.mrf.mxu0
      %v1907 = vadd.f32 0.0, %v1906
      %v1908 = vpop.f32.mrf.mxu0
      %1909 = vmatprep.mubr.bf16.mxu0 0
      %1910 = vmatmul.mubr.bf16.gmra.mxu0 %v1812
      %v1911 = vpop.f32.mrf.mxu0
      %v1912 = vadd.f32 0.0, %v1911
      %v1913 = vpop.f32.mrf.mxu0
      %v1914 = vpop.f32.mrf.mxu0
      %v1915 = vadd.f32 0.0, %v1914
      %v1916 = vpop.f32.mrf.mxu0
      %1917 = vmatprep.mubr.bf16.mxu0 0
      %1918 = vmatmul.mubr.bf16.gmra.mxu0 %v1815
      %v1919 = vpop.f32.mrf.mxu0
      %v1920 = vadd.f32 0.0, %v1919
      %v1921 = vpop.f32.mrf.mxu0
      %v1922 = vpop.f32.mrf.mxu0
      %v1923 = vadd.f32 0.0, %v1922
      %v1924 = vpop.f32.mrf.mxu0
      %1925 = vmatprep.mubr.bf16.mxu0 0
      %1926 = vmatmul.mubr.bf16.gmra.mxu0 %v1818
      %v1927 = vpop.f32.mrf.mxu0
      %v1928 = vadd.f32 0.0, %v1927
      %v1929 = vpop.f32.mrf.mxu0
      %v1930 = vpop.f32.mrf.mxu0
      %v1931 = vadd.f32 0.0, %v1930
      %v1932 = vpop.f32.mrf.mxu0
      %1933 = vmatprep.mubr.bf16.mxu0 0
      %1934 = vmatmul.mubr.bf16.gmra.mxu0 %v1821
      %v1935 = vpop.f32.mrf.mxu0
      %v1936 = vadd.f32 0.0, %v1935
      %v1937 = vpop.f32.mrf.mxu0
      %v1938 = vpop.f32.mrf.mxu0
      %v1939 = vadd.f32 0.0, %v1938
      %v1940 = vpop.f32.mrf.mxu0
      %1941 = vmatprep.mubr.bf16.mxu0 0
      %1942 = vmatmul.mubr.bf16.gmra.mxu0 %v1824
      %v1943 = vpop.f32.mrf.mxu0
      %v1944 = vadd.f32 0.0, %v1943
      %v1945 = vpop.f32.mrf.mxu0
      %v1946 = vpop.f32.mrf.mxu0
      %v1947 = vadd.f32 0.0, %v1946
      %v1948 = vpop.f32.mrf.mxu0
      %1949 = vmatprep.mubr.bf16.mxu0 0
      %1950 = vmatmul.mubr.bf16.gmra.mxu0 %v1827
      %v1951 = vpop.f32.mrf.mxu0
      %v1952 = vadd.f32 0.0, %v1951
      %v1953 = vpop.f32.mrf.mxu0
      %v1954 = vpop.f32.mrf.mxu0
      %v1955 = vadd.f32 0.0, %v1954
      %v1956 = vpop.f32.mrf.mxu0
      %1957 = vmatprep.mubr.bf16.mxu0 0
      %1958 = vmatmul.mubr.bf16.gmra.mxu0 %v1830
      %v1959 = vpop.f32.mrf.mxu0
      %v1960 = vadd.f32 0.0, %v1959
      %v1961 = vpop.f32.mrf.mxu0
      %v1962 = vpop.f32.mrf.mxu0
      %v1963 = vadd.f32 0.0, %v1962
      %v1964 = vpop.f32.mrf.mxu0
      %1965 = vmatprep.mubr.bf16.mxu0 0
      %1966 = vmatmul.mubr.bf16.gmra.mxu0 %v1833
      %v1967 = vpop.f32.mrf.mxu0
      %v1968 = vadd.f32 0.0, %v1967
      %v1969 = vpop.f32.mrf.mxu0
      %v1970 = vpop.f32.mrf.mxu0
      %v1971 = vadd.f32 0.0, %v1970
      %v1972 = vpop.f32.mrf.mxu0
      %1973 = vmatprep.mubr.bf16.mxu0 0
      %1974 = vmatmul.mubr.bf16.gmra.mxu0 %v1836
      %v1975 = vpop.f32.mrf.mxu0
      %v1976 = vadd.f32 0.0, %v1975
      %v1977 = vpop.f32.mrf.mxu0
      %v1978 = vpop.f32.mrf.mxu0
      %v1979 = vadd.f32 0.0, %v1978
      %v1980 = vpop.f32.mrf.mxu0
      %1981 = vmatprep.mubr.bf16.mxu0 0
      %1982 = vmatmul.mubr.bf16.gmra.mxu0 %v1839
      %v1983 = vpop.f32.mrf.mxu0
      %v1984 = vadd.f32 0.0, %v1983
      %v1985 = vpop.f32.mrf.mxu0
      %v1986 = vpop.f32.mrf.mxu0
      %v1987 = vadd.f32 0.0, %v1986
      %v1988 = vpop.f32.mrf.mxu0
      %1989 = vmatprep.mubr.bf16.mxu0 0
      %1990 = vmatmul.mubr.bf16.gmra.mxu0 %v1842
      %v1991 = vpop.f32.mrf.mxu0
      %v1992 = vadd.f32 0.0, %v1991
      %v1993 = vpop.f32.mrf.mxu0
      %v1994 = vpop.f32.mrf.mxu0
      %v1995 = vadd.f32 0.0, %v1994
      %v1996 = vpop.f32.mrf.mxu0
      %1997 = vmatprep.mubr.bf16.mxu0 0
      %1998 = vmatmul.mubr.bf16.gmra.mxu0 %v1845
      %v1999 = vpop.f32.mrf.mxu0
      %v2000 = vadd.f32 0.0, %v1999
      %v2001 = vpop.f32.mrf.mxu0
      %v2002 = vpop.f32.mrf.mxu0
      %v2003 = vadd.f32 0.0, %v2002
      %v2004 = vpop.f32.mrf.mxu0
      %2005 = vmatprep.mubr.bf16.mxu0 0
      %2006 = vmatmul.mubr.bf16.gmra.mxu0 %v1848
      %v2007 = vpop.f32.mrf.mxu0
      %v2008 = vadd.f32 0.0, %v2007
      %v2009 = vpop.f32.mrf.mxu0
      %v2010 = vpop.f32.mrf.mxu0
      %v2011 = vadd.f32 0.0, %v2010
      %v2012 = vpop.f32.mrf.mxu0
      %2013 = vdwg.mxu0
      %v2014 = vadd.f32 %v1652, %v1888
      %v2015 = vadd.f32 %v1653, %v1891
      %v2016 = vadd.f32 %v1654, %v1896
      %v2017 = vadd.f32 %v1655, %v1899
      %v2018 = vadd.f32 %v1656, %v1904
      %v2019 = vadd.f32 %v1657, %v1907
      %v2020 = vadd.f32 %v1658, %v1912
      %v2021 = vadd.f32 %v1659, %v1915
      %v2022 = vadd.f32 %v1660, %v1920
      %v2023 = vadd.f32 %v1661, %v1923
      %v2024 = vadd.f32 %v1662, %v1928
      %v2025 = vadd.f32 %v1663, %v1931
      %v2026 = vadd.f32 %v1664, %v1936
      %v2027 = vadd.f32 %v1665, %v1939
      %v2028 = vadd.f32 %v1666, %v1944
      %v2029 = vadd.f32 %v1667, %v1947
      %v2030 = vadd.f32 %v1668, %v1952
      %v2031 = vadd.f32 %v1669, %v1955
      %v2032 = vadd.f32 %v1670, %v1960
      %v2033 = vadd.f32 %v1671, %v1963
      %v2034 = vadd.f32 %v1672, %v1968
      %v2035 = vadd.f32 %v1673, %v1971
      %v2036 = vadd.f32 %v1674, %v1976
      %v2037 = vadd.f32 %v1675, %v1979
      %v2038 = vadd.f32 %v1676, %v1984
      %v2039 = vadd.f32 %v1677, %v1987
      %v2040 = vadd.f32 %v1678, %v1992
      %v2041 = vadd.f32 %v1679, %v1995
      %v2042 = vadd.f32 %v1680, %v2000
      %v2043 = vadd.f32 %v1681, %v2003
      %v2044 = vadd.f32 %v1682, %v2008
      %v2045 = vadd.f32 %v1683, %v2011
      %v2046 = vld [vmem:[%s1687] sm:$0xf]
      %v2047 = vld [vmem:[%s1687 + $0x4] sm:$0xf]
      %v2048 = vld [vmem:[%s1687 + $0x8] sm:$0x1]
      %v2049 = vld [vmem:[%s1687 + $0xc] sm:$0xf]
      %v2050 = vld [vmem:[%s1687 + $0x10] sm:$0xf]
      %v2051 = vld [vmem:[%s1687 + $0x14] sm:$0x1]
      %v2052 = vld [vmem:[%s1687 + $0x18] sm:$0xf]
      %v2053 = vld [vmem:[%s1687 + $0x1c] sm:$0xf]
      %v2054 = vld [vmem:[%s1687 + $0x20] sm:$0x1]
      %v2055 = vld [vmem:[%s1687 + $0x24] sm:$0xf]
      %v2056 = vld [vmem:[%s1687 + $0x28] sm:$0xf]
      %v2057 = vld [vmem:[%s1687 + $0x2c] sm:$0x1]
      %v2058 = vld [vmem:[%s1687 + $0x30] sm:$0xf]
      %v2059 = vld [vmem:[%s1687 + $0x34] sm:$0xf]
      %v2060 = vld [vmem:[%s1687 + $0x38] sm:$0x1]
      %v2061 = vld [vmem:[%s1687 + $0x3c] sm:$0xf]
      %v2062 = vld [vmem:[%s1687 + $0x40] sm:$0xf]
      %v2063 = vld [vmem:[%s1687 + $0x44] sm:$0x1]
      %v2064 = vld [vmem:[%s1687 + $0x48] sm:$0xf]
      %v2065 = vld [vmem:[%s1687 + $0x4c] sm:$0xf]
      %v2066 = vld [vmem:[%s1687 + $0x50] sm:$0x1]
      %v2067 = vld [vmem:[%s1687 + $0x54] sm:$0xf]
      %v2068 = vld [vmem:[%s1687 + $0x58] sm:$0xf]
      %v2069 = vld [vmem:[%s1687 + $0x5c] sm:$0x1]
      %v2070 = vld [vmem:[%s1687 + $0x60] sm:$0xf]
      %v2071 = vld [vmem:[%s1687 + $0x64] sm:$0xf]
      %v2072 = vld [vmem:[%s1687 + $0x68] sm:$0x1]
      %v2073 = vld [vmem:[%s1687 + $0x6c] sm:$0xf]
      %v2074 = vld [vmem:[%s1687 + $0x70] sm:$0xf]
      %v2075 = vld [vmem:[%s1687 + $0x74] sm:$0x1]
      %v2076 = vld [vmem:[%s1687 + $0x78] sm:$0xf]
      %v2077 = vld [vmem:[%s1687 + $0x7c] sm:$0xf]
      %v2078 = vld [vmem:[%s1687 + $0x80] sm:$0x1]
      %v2079 = vld [vmem:[%s1687 + $0x84] sm:$0xf]
      %v2080 = vld [vmem:[%s1687 + $0x88] sm:$0xf]
      %v2081 = vld [vmem:[%s1687 + $0x8c] sm:$0x1]
      %v2082 = vld [vmem:[%s1687 + $0x90] sm:$0xf]
      %v2083 = vld [vmem:[%s1687 + $0x94] sm:$0xf]
      %v2084 = vld [vmem:[%s1687 + $0x98] sm:$0x1]
      %v2085 = vld [vmem:[%s1687 + $0x9c] sm:$0xf]
      %v2086 = vld [vmem:[%s1687 + $0xa0] sm:$0xf]
      %v2087 = vld [vmem:[%s1687 + $0xa4] sm:$0x1]
      %v2088 = vld [vmem:[%s1687 + $0xa8] sm:$0xf]
      %v2089 = vld [vmem:[%s1687 + $0xac] sm:$0xf]
      %v2090 = vld [vmem:[%s1687 + $0xb0] sm:$0x1]
      %v2091 = vld [vmem:[%s1687 + $0xb4] sm:$0xf]
      %v2092 = vld [vmem:[%s1687 + $0xb8] sm:$0xf]
      %v2093 = vld [vmem:[%s1687 + $0xbc] sm:$0x1]
      %v2095 = vshrl.u32 %v2046, 16
      %v2097 = vrot.slane %v2095, 4
      %v2098 = vshll.u32 %v2046, 16
      %v2100 = vrot.slane %v2098, 5
      %v2101 = vor.u32 %v2097, %v2100
      %v2102 = vrot.slane %v2101, 4
      %v2104 = vshll.u32 %v2047, 16
      %v2106 = vrot.slane %v2104, 5
      %v2107 = vsel %vm286, %v2102, %v2106
      %v2108 = vshrl.u32 %v2047, 16
      %v2110 = vrot.slane %v2108, 4
      %v2111 = vor.u32 %v2110, %v2106
      %v2112 = vrot.slane %v2111, 4
      %v2114 = vshll.u32 %v2048, 16
      %v2116 = vrot.slane %v2114, 5
      %v2117 = vsel %vm286, %v2112, %v2116
      %v2119 = vshrl.u32 %v2049, 16
      %v2121 = vrot.slane %v2119, 4
      %v2122 = vshll.u32 %v2049, 16
      %v2124 = vrot.slane %v2122, 5
      %v2125 = vor.u32 %v2121, %v2124
      %v2126 = vrot.slane %v2125, 4
      %v2128 = vshll.u32 %v2050, 16
      %v2130 = vrot.slane %v2128, 5
      %v2131 = vsel %vm286, %v2126, %v2130
      %v2132 = vshrl.u32 %v2050, 16
      %v2134 = vrot.slane %v2132, 4
      %v2135 = vor.u32 %v2134, %v2130
      %v2136 = vrot.slane %v2135, 4
      %v2138 = vshll.u32 %v2051, 16
      %v2140 = vrot.slane %v2138, 5
      %v2141 = vsel %vm286, %v2136, %v2140
      %v2143 = vshrl.u32 %v2052, 16
      %v2145 = vrot.slane %v2143, 4
      %v2146 = vshll.u32 %v2052, 16
      %v2148 = vrot.slane %v2146, 5
      %v2149 = vor.u32 %v2145, %v2148
      %v2150 = vrot.slane %v2149, 4
      %v2152 = vshll.u32 %v2053, 16
      %v2154 = vrot.slane %v2152, 5
      %v2155 = vsel %vm286, %v2150, %v2154
      %v2156 = vshrl.u32 %v2053, 16
      %v2158 = vrot.slane %v2156, 4
      %v2159 = vor.u32 %v2158, %v2154
      %v2160 = vrot.slane %v2159, 4
      %v2162 = vshll.u32 %v2054, 16
      %v2164 = vrot.slane %v2162, 5
      %v2165 = vsel %vm286, %v2160, %v2164
      %v2167 = vshrl.u32 %v2055, 16
      %v2169 = vrot.slane %v2167, 4
      %v2170 = vshll.u32 %v2055, 16
      %v2172 = vrot.slane %v2170, 5
      %v2173 = vor.u32 %v2169, %v2172
      %v2174 = vrot.slane %v2173, 4
      %v2176 = vshll.u32 %v2056, 16
      %v2178 = vrot.slane %v2176, 5
      %v2179 = vsel %vm286, %v2174, %v2178
      %v2180 = vshrl.u32 %v2056, 16
      %v2182 = vrot.slane %v2180, 4
      %v2183 = vor.u32 %v2182, %v2178
      %v2184 = vrot.slane %v2183, 4
      %v2186 = vshll.u32 %v2057, 16
      %v2188 = vrot.slane %v2186, 5
      %v2189 = vsel %vm286, %v2184, %v2188
      %v2191 = vshrl.u32 %v2058, 16
      %v2193 = vrot.slane %v2191, 4
      %v2194 = vshll.u32 %v2058, 16
      %v2196 = vrot.slane %v2194, 5
      %v2197 = vor.u32 %v2193, %v2196
      %v2198 = vrot.slane %v2197, 4
      %v2200 = vshll.u32 %v2059, 16
      %v2202 = vrot.slane %v2200, 5
      %v2203 = vsel %vm286, %v2198, %v2202
      %v2204 = vshrl.u32 %v2059, 16
      %v2206 = vrot.slane %v2204, 4
      %v2207 = vor.u32 %v2206, %v2202
      %v2208 = vrot.slane %v2207, 4
      %v2210 = vshll.u32 %v2060, 16
      %v2212 = vrot.slane %v2210, 5
      %v2213 = vsel %vm286, %v2208, %v2212
      %v2215 = vshrl.u32 %v2061, 16
      %v2217 = vrot.slane %v2215, 4
      %v2218 = vshll.u32 %v2061, 16
      %v2220 = vrot.slane %v2218, 5
      %v2221 = vor.u32 %v2217, %v2220
      %v2222 = vrot.slane %v2221, 4
      %v2224 = vshll.u32 %v2062, 16
      %v2226 = vrot.slane %v2224, 5
      %v2227 = vsel %vm286, %v2222, %v2226
      %v2228 = vshrl.u32 %v2062, 16
      %v2230 = vrot.slane %v2228, 4
      %v2231 = vor.u32 %v2230, %v2226
      %v2232 = vrot.slane %v2231, 4
      %v2234 = vshll.u32 %v2063, 16
      %v2236 = vrot.slane %v2234, 5
      %v2237 = vsel %vm286, %v2232, %v2236
      %v2239 = vshrl.u32 %v2064, 16
      %v2241 = vrot.slane %v2239, 4
      %v2242 = vshll.u32 %v2064, 16
      %v2244 = vrot.slane %v2242, 5
      %v2245 = vor.u32 %v2241, %v2244
      %v2246 = vrot.slane %v2245, 4
      %v2248 = vshll.u32 %v2065, 16
      %v2250 = vrot.slane %v2248, 5
      %v2251 = vsel %vm286, %v2246, %v2250
      %v2252 = vshrl.u32 %v2065, 16
      %v2254 = vrot.slane %v2252, 4
      %v2255 = vor.u32 %v2254, %v2250
      %v2256 = vrot.slane %v2255, 4
      %v2258 = vshll.u32 %v2066, 16
      %v2260 = vrot.slane %v2258, 5
      %v2261 = vsel %vm286, %v2256, %v2260
      %v2263 = vshrl.u32 %v2067, 16
      %v2265 = vrot.slane %v2263, 4
      %v2266 = vshll.u32 %v2067, 16
      %v2268 = vrot.slane %v2266, 5
      %v2269 = vor.u32 %v2265, %v2268
      %v2270 = vrot.slane %v2269, 4
      %v2272 = vshll.u32 %v2068, 16
      %v2274 = vrot.slane %v2272, 5
      %v2275 = vsel %vm286, %v2270, %v2274
      %v2276 = vshrl.u32 %v2068, 16
      %v2278 = vrot.slane %v2276, 4
      %v2279 = vor.u32 %v2278, %v2274
      %v2280 = vrot.slane %v2279, 4
      %v2282 = vshll.u32 %v2069, 16
      %v2284 = vrot.slane %v2282, 5
      %v2285 = vsel %vm286, %v2280, %v2284
      %v2287 = vshrl.u32 %v2070, 16
      %v2289 = vrot.slane %v2287, 4
      %v2290 = vshll.u32 %v2070, 16
      %v2292 = vrot.slane %v2290, 5
      %v2293 = vor.u32 %v2289, %v2292
      %v2294 = vrot.slane %v2293, 4
      %v2296 = vshll.u32 %v2071, 16
      %v2298 = vrot.slane %v2296, 5
      %v2299 = vsel %vm286, %v2294, %v2298
      %v2300 = vshrl.u32 %v2071, 16
      %v2302 = vrot.slane %v2300, 4
      %v2303 = vor.u32 %v2302, %v2298
      %v2304 = vrot.slane %v2303, 4
      %v2306 = vshll.u32 %v2072, 16
      %v2308 = vrot.slane %v2306, 5
      %v2309 = vsel %vm286, %v2304, %v2308
      %v2311 = vshrl.u32 %v2073, 16
      %v2313 = vrot.slane %v2311, 4
      %v2314 = vshll.u32 %v2073, 16
      %v2316 = vrot.slane %v2314, 5
      %v2317 = vor.u32 %v2313, %v2316
      %v2318 = vrot.slane %v2317, 4
      %v2320 = vshll.u32 %v2074, 16
      %v2322 = vrot.slane %v2320, 5
      %v2323 = vsel %vm286, %v2318, %v2322
      %v2324 = vshrl.u32 %v2074, 16
      %v2326 = vrot.slane %v2324, 4
      %v2327 = vor.u32 %v2326, %v2322
      %v2328 = vrot.slane %v2327, 4
      %v2330 = vshll.u32 %v2075, 16
      %v2332 = vrot.slane %v2330, 5
      %v2333 = vsel %vm286, %v2328, %v2332
      %v2335 = vshrl.u32 %v2076, 16
      %v2337 = vrot.slane %v2335, 4
      %v2338 = vshll.u32 %v2076, 16
      %v2340 = vrot.slane %v2338, 5
      %v2341 = vor.u32 %v2337, %v2340
      %v2342 = vrot.slane %v2341, 4
      %v2344 = vshll.u32 %v2077, 16
      %v2346 = vrot.slane %v2344, 5
      %v2347 = vsel %vm286, %v2342, %v2346
      %v2348 = vshrl.u32 %v2077, 16
      %v2350 = vrot.slane %v2348, 4
      %v2351 = vor.u32 %v2350, %v2346
      %v2352 = vrot.slane %v2351, 4
      %v2354 = vshll.u32 %v2078, 16
      %v2356 = vrot.slane %v2354, 5
      %v2357 = vsel %vm286, %v2352, %v2356
      %v2359 = vshrl.u32 %v2079, 16
      %v2361 = vrot.slane %v2359, 4
      %v2362 = vshll.u32 %v2079, 16
      %v2364 = vrot.slane %v2362, 5
      %v2365 = vor.u32 %v2361, %v2364
      %v2366 = vrot.slane %v2365, 4
      %v2368 = vshll.u32 %v2080, 16
      %v2370 = vrot.slane %v2368, 5
      %v2371 = vsel %vm286, %v2366, %v2370
      %v2372 = vshrl.u32 %v2080, 16
      %v2374 = vrot.slane %v2372, 4
      %v2375 = vor.u32 %v2374, %v2370
      %v2376 = vrot.slane %v2375, 4
      %v2378 = vshll.u32 %v2081, 16
      %v2380 = vrot.slane %v2378, 5
      %v2381 = vsel %vm286, %v2376, %v2380
      %v2383 = vshrl.u32 %v2082, 16
      %v2385 = vrot.slane %v2383, 4
      %v2386 = vshll.u32 %v2082, 16
      %v2388 = vrot.slane %v2386, 5
      %v2389 = vor.u32 %v2385, %v2388
      %v2390 = vrot.slane %v2389, 4
      %v2392 = vshll.u32 %v2083, 16
      %v2394 = vrot.slane %v2392, 5
      %v2395 = vsel %vm286, %v2390, %v2394
      %v2396 = vshrl.u32 %v2083, 16
      %v2398 = vrot.slane %v2396, 4
      %v2399 = vor.u32 %v2398, %v2394
      %v2400 = vrot.slane %v2399, 4
      %v2402 = vshll.u32 %v2084, 16
      %v2404 = vrot.slane %v2402, 5
      %v2405 = vsel %vm286, %v2400, %v2404
      %v2407 = vshrl.u32 %v2085, 16
      %v2409 = vrot.slane %v2407, 4
      %v2410 = vshll.u32 %v2085, 16
      %v2412 = vrot.slane %v2410, 5
      %v2413 = vor.u32 %v2409, %v2412
      %v2414 = vrot.slane %v2413, 4
      %v2416 = vshll.u32 %v2086, 16
      %v2418 = vrot.slane %v2416, 5
      %v2419 = vsel %vm286, %v2414, %v2418
      %v2420 = vshrl.u32 %v2086, 16
      %v2422 = vrot.slane %v2420, 4
      %v2423 = vor.u32 %v2422, %v2418
      %v2424 = vrot.slane %v2423, 4
      %v2426 = vshll.u32 %v2087, 16
      %v2428 = vrot.slane %v2426, 5
      %v2429 = vsel %vm286, %v2424, %v2428
      %v2431 = vshrl.u32 %v2088, 16
      %v2433 = vrot.slane %v2431, 4
      %v2434 = vshll.u32 %v2088, 16
      %v2436 = vrot.slane %v2434, 5
      %v2437 = vor.u32 %v2433, %v2436
      %v2438 = vrot.slane %v2437, 4
      %v2440 = vshll.u32 %v2089, 16
      %v2442 = vrot.slane %v2440, 5
      %v2443 = vsel %vm286, %v2438, %v2442
      %v2444 = vshrl.u32 %v2089, 16
      %v2446 = vrot.slane %v2444, 4
      %v2447 = vor.u32 %v2446, %v2442
      %v2448 = vrot.slane %v2447, 4
      %v2450 = vshll.u32 %v2090, 16
      %v2452 = vrot.slane %v2450, 5
      %v2453 = vsel %vm286, %v2448, %v2452
      %v2455 = vshrl.u32 %v2091, 16
      %v2457 = vrot.slane %v2455, 4
      %v2458 = vshll.u32 %v2091, 16
      %v2460 = vrot.slane %v2458, 5
      %v2461 = vor.u32 %v2457, %v2460
      %v2462 = vrot.slane %v2461, 4
      %v2464 = vshll.u32 %v2092, 16
      %v2466 = vrot.slane %v2464, 5
      %v2467 = vsel %vm286, %v2462, %v2466
      %v2468 = vshrl.u32 %v2092, 16
      %v2470 = vrot.slane %v2468, 4
      %v2471 = vor.u32 %v2470, %v2466
      %v2472 = vrot.slane %v2471, 4
      %v2474 = vshll.u32 %v2093, 16
      %v2476 = vrot.slane %v2474, 5
      %v2477 = vsel %vm286, %v2472, %v2476
      %s2478 = scalar_lea.vmem %s215, 8
      %v2479 = vld [vmem:[%s2478] sm:$0x3]
      %v2480 = vunpack.c.l.b16 %v2107
      %v2481 = vunpack.c.l.b16 %v2117
      %v2482 = vunpack.c.l.b16 %v2131
      %v2483 = vunpack.c.l.b16 %v2141
      %v2484 = vunpack.c.l.b16 %v2155
      %v2485 = vunpack.c.l.b16 %v2165
      %v2486 = vunpack.c.l.b16 %v2179
      %v2487 = vunpack.c.l.b16 %v2189
      %v2488 = vunpack.c.l.b16 %v2203
      %v2489 = vunpack.c.l.b16 %v2213
      %v2490 = vunpack.c.l.b16 %v2227
      %v2491 = vunpack.c.l.b16 %v2237
      %v2492 = vunpack.c.l.b16 %v2251
      %v2493 = vunpack.c.l.b16 %v2261
      %v2494 = vunpack.c.l.b16 %v2275
      %v2495 = vunpack.c.l.b16 %v2285
      %v2496 = vunpack.c.l.b16 %v2299
      %v2497 = vunpack.c.l.b16 %v2309
      %v2498 = vunpack.c.l.b16 %v2323
      %v2499 = vunpack.c.l.b16 %v2333
      %v2500 = vunpack.c.l.b16 %v2347
      %v2501 = vunpack.c.l.b16 %v2357
      %v2502 = vunpack.c.l.b16 %v2371
      %v2503 = vunpack.c.l.b16 %v2381
      %v2504 = vunpack.c.l.b16 %v2395
      %v2505 = vunpack.c.l.b16 %v2405
      %v2506 = vunpack.c.l.b16 %v2419
      %v2507 = vunpack.c.l.b16 %v2429
      %v2508 = vunpack.c.l.b16 %v2443
      %v2509 = vunpack.c.l.b16 %v2453
      %v2510 = vunpack.c.l.b16 %v2467
      %v2511 = vunpack.c.l.b16 %v2477
      %v2512 = vpack.c.b16 %v2481, %v2480
      %v2513 = vpack.c.b16 %v2483, %v2482
      %v2514 = vpack.c.b16 %v2485, %v2484
      %v2515 = vpack.c.b16 %v2487, %v2486
      %v2516 = vpack.c.b16 %v2489, %v2488
      %v2517 = vpack.c.b16 %v2491, %v2490
      %v2518 = vpack.c.b16 %v2493, %v2492
      %v2519 = vpack.c.b16 %v2495, %v2494
      %v2520 = vpack.c.b16 %v2497, %v2496
      %v2521 = vpack.c.b16 %v2499, %v2498
      %v2522 = vpack.c.b16 %v2501, %v2500
      %v2523 = vpack.c.b16 %v2503, %v2502
      %v2524 = vpack.c.b16 %v2505, %v2504
      %v2525 = vpack.c.b16 %v2507, %v2506
      %v2526 = vpack.c.b16 %v2509, %v2508
      %v2527 = vpack.c.b16 %v2511, %v2510
      %v2529 = vsel %vm721, %v2512, 0
      %v2532 = vsel %vm721, %v2513, 0
      %v2535 = vsel %vm721, %v2514, 0
      %v2538 = vsel %vm721, %v2515, 0
      %v2541 = vsel %vm721, %v2516, 0
      %v2544 = vsel %vm721, %v2517, 0
      %v2547 = vsel %vm721, %v2518, 0
      %v2550 = vsel %vm721, %v2519, 0
      %v2553 = vsel %vm721, %v2520, 0
      %v2556 = vsel %vm721, %v2521, 0
      %v2559 = vsel %vm721, %v2522, 0
      %v2562 = vsel %vm721, %v2523, 0
      %v2565 = vsel %vm721, %v2524, 0
      %v2568 = vsel %vm721, %v2525, 0
      %v2571 = vsel %vm721, %v2526, 0
      %v2574 = vsel %vm721, %v2527, 0
      %v2577 = vsel %vm770, %v2479, 0
      %2579 = vmatprep.subr.bf16.mxu0 0
      %2580 = vmatpush1.bf16.msra.mxu0 0
      %2581 = vmatprep.subr.bf16.mxu0 0
      %2582 = vmatpush1.bf16.msra.mxu0 0
      %2583 = vmatprep.subr.bf16.mxu0 0
      %2584 = vmatpush1.bf16.msra.mxu0 0
      %2585 = vmatprep.subr.bf16.mxu0 0
      %2586 = vmatpush1.bf16.msra.mxu0 0
      %2587 = vmatprep.subr.bf16.mxu0 0
      %2588 = vmatpush1.bf16.msra.mxu0 0
      %2589 = vmatprep.subr.bf16.mxu0 0
      %2590 = vmatpush1.bf16.msra.mxu0 0
      %2591 = vmatprep.subr.bf16.mxu0 0
      %2592 = vmatpush1.bf16.msra.mxu0 0
      %2593 = vmatprep.subr.bf16.mxu0 0
      %2594 = vmatpush1.bf16.msra.mxu0 %v2577
      %2595 = vmatprep.subr.bf16.mxu0 0
      %2596 = vmatpush2.bf16.msra.mxu0 0
      %2597 = vmatprep.subr.bf16.mxu0 0
      %2598 = vmatpush2.bf16.msra.mxu0 0
      %2599 = vmatprep.subr.bf16.mxu0 0
      %2600 = vmatpush2.bf16.msra.mxu0 0
      %2601 = vmatprep.subr.bf16.mxu0 0
      %2602 = vmatpush2.bf16.msra.mxu0 0
      %2603 = vmatprep.subr.bf16.mxu0 0
      %2604 = vmatpush2.bf16.msra.mxu0 0
      %2605 = vmatprep.subr.bf16.mxu0 0
      %2606 = vmatpush2.bf16.msra.mxu0 0
      %2607 = vmatprep.subr.bf16.mxu0 0
      %2608 = vmatpush2.bf16.msra.mxu0 0
      %2609 = vmatprep.subr.bf16.mxu0 0
      %2610 = vmatpush2.bf16.msra.mxu0 0
      %2611 = vmatprep.mubr.bf16.mxu0 0
      %2612 = vmatmul.mubr.bf16.gmra.mxu0 %v2529
      %v2613 = vpop.f32.mrf.mxu0
      %v2614 = vadd.f32 0.0, %v2613
      %v2615 = vpop.f32.mrf.mxu0
      %v2616 = vpop.f32.mrf.mxu0
      %v2617 = vadd.f32 0.0, %v2616
      %v2618 = vpop.f32.mrf.mxu0
      %2619 = vmatprep.mubr.bf16.mxu0 0
      %2620 = vmatmul.mubr.bf16.gmra.mxu0 %v2532
      %v2621 = vpop.f32.mrf.mxu0
      %v2622 = vadd.f32 0.0, %v2621
      %v2623 = vpop.f32.mrf.mxu0
      %v2624 = vpop.f32.mrf.mxu0
      %v2625 = vadd.f32 0.0, %v2624
      %v2626 = vpop.f32.mrf.mxu0
      %2627 = vmatprep.mubr.bf16.mxu0 0
      %2628 = vmatmul.mubr.bf16.gmra.mxu0 %v2535
      %v2629 = vpop.f32.mrf.mxu0
      %v2630 = vadd.f32 0.0, %v2629
      %v2631 = vpop.f32.mrf.mxu0
      %v2632 = vpop.f32.mrf.mxu0
      %v2633 = vadd.f32 0.0, %v2632
      %v2634 = vpop.f32.mrf.mxu0
      %2635 = vmatprep.mubr.bf16.mxu0 0
      %2636 = vmatmul.mubr.bf16.gmra.mxu0 %v2538
      %v2637 = vpop.f32.mrf.mxu0
      %v2638 = vadd.f32 0.0, %v2637
      %v2639 = vpop.f32.mrf.mxu0
      %v2640 = vpop.f32.mrf.mxu0
      %v2641 = vadd.f32 0.0, %v2640
      %v2642 = vpop.f32.mrf.mxu0
      %2643 = vmatprep.mubr.bf16.mxu0 0
      %2644 = vmatmul.mubr.bf16.gmra.mxu0 %v2541
      %v2645 = vpop.f32.mrf.mxu0
      %v2646 = vadd.f32 0.0, %v2645
      %v2647 = vpop.f32.mrf.mxu0
      %v2648 = vpop.f32.mrf.mxu0
      %v2649 = vadd.f32 0.0, %v2648
      %v2650 = vpop.f32.mrf.mxu0
      %2651 = vmatprep.mubr.bf16.mxu0 0
      %2652 = vmatmul.mubr.bf16.gmra.mxu0 %v2544
      %v2653 = vpop.f32.mrf.mxu0
      %v2654 = vadd.f32 0.0, %v2653
      %v2655 = vpop.f32.mrf.mxu0
      %v2656 = vpop.f32.mrf.mxu0
      %v2657 = vadd.f32 0.0, %v2656
      %v2658 = vpop.f32.mrf.mxu0
      %2659 = vmatprep.mubr.bf16.mxu0 0
      %2660 = vmatmul.mubr.bf16.gmra.mxu0 %v2547
      %v2661 = vpop.f32.mrf.mxu0
      %v2662 = vadd.f32 0.0, %v2661
      %v2663 = vpop.f32.mrf.mxu0
      %v2664 = vpop.f32.mrf.mxu0
      %v2665 = vadd.f32 0.0, %v2664
      %v2666 = vpop.f32.mrf.mxu0
      %2667 = vmatprep.mubr.bf16.mxu0 0
      %2668 = vmatmul.mubr.bf16.gmra.mxu0 %v2550
      %v2669 = vpop.f32.mrf.mxu0
      %v2670 = vadd.f32 0.0, %v2669
      %v2671 = vpop.f32.mrf.mxu0
      %v2672 = vpop.f32.mrf.mxu0
      %v2673 = vadd.f32 0.0, %v2672
      %v2674 = vpop.f32.mrf.mxu0
      %2675 = vmatprep.mubr.bf16.mxu0 0
      %2676 = vmatmul.mubr.bf16.gmra.mxu0 %v2553
      %v2677 = vpop.f32.mrf.mxu0
      %v2678 = vadd.f32 0.0, %v2677
      %v2679 = vpop.f32.mrf.mxu0
      %v2680 = vpop.f32.mrf.mxu0
      %v2681 = vadd.f32 0.0, %v2680
      %v2682 = vpop.f32.mrf.mxu0
      %2683 = vmatprep.mubr.bf16.mxu0 0
      %2684 = vmatmul.mubr.bf16.gmra.mxu0 %v2556
      %v2685 = vpop.f32.mrf.mxu0
      %v2686 = vadd.f32 0.0, %v2685
      %v2687 = vpop.f32.mrf.mxu0
      %v2688 = vpop.f32.mrf.mxu0
      %v2689 = vadd.f32 0.0, %v2688
      %v2690 = vpop.f32.mrf.mxu0
      %2691 = vmatprep.mubr.bf16.mxu0 0
      %2692 = vmatmul.mubr.bf16.gmra.mxu0 %v2559
      %v2693 = vpop.f32.mrf.mxu0
      %v2694 = vadd.f32 0.0, %v2693
      %v2695 = vpop.f32.mrf.mxu0
      %v2696 = vpop.f32.mrf.mxu0
      %v2697 = vadd.f32 0.0, %v2696
      %v2698 = vpop.f32.mrf.mxu0
      %2699 = vmatprep.mubr.bf16.mxu0 0
      %2700 = vmatmul.mubr.bf16.gmra.mxu0 %v2562
      %v2701 = vpop.f32.mrf.mxu0
      %v2702 = vadd.f32 0.0, %v2701
      %v2703 = vpop.f32.mrf.mxu0
      %v2704 = vpop.f32.mrf.mxu0
      %v2705 = vadd.f32 0.0, %v2704
      %v2706 = vpop.f32.mrf.mxu0
      %2707 = vmatprep.mubr.bf16.mxu0 0
      %2708 = vmatmul.mubr.bf16.gmra.mxu0 %v2565
      %v2709 = vpop.f32.mrf.mxu0
      %v2710 = vadd.f32 0.0, %v2709
      %v2711 = vpop.f32.mrf.mxu0
      %v2712 = vpop.f32.mrf.mxu0
      %v2713 = vadd.f32 0.0, %v2712
      %v2714 = vpop.f32.mrf.mxu0
      %2715 = vmatprep.mubr.bf16.mxu0 0
      %2716 = vmatmul.mubr.bf16.gmra.mxu0 %v2568
      %v2717 = vpop.f32.mrf.mxu0
      %v2718 = vadd.f32 0.0, %v2717
      %v2719 = vpop.f32.mrf.mxu0
      %v2720 = vpop.f32.mrf.mxu0
      %v2721 = vadd.f32 0.0, %v2720
      %v2722 = vpop.f32.mrf.mxu0
      %2723 = vmatprep.mubr.bf16.mxu0 0
      %2724 = vmatmul.mubr.bf16.gmra.mxu0 %v2571
      %v2725 = vpop.f32.mrf.mxu0
      %v2726 = vadd.f32 0.0, %v2725
      %v2727 = vpop.f32.mrf.mxu0
      %v2728 = vpop.f32.mrf.mxu0
      %v2729 = vadd.f32 0.0, %v2728
      %v2730 = vpop.f32.mrf.mxu0
      %2731 = vmatprep.mubr.bf16.mxu0 0
      %2732 = vmatmul.mubr.bf16.gmra.mxu0 %v2574
      %v2733 = vpop.f32.mrf.mxu0
      %v2734 = vadd.f32 0.0, %v2733
      %v2735 = vpop.f32.mrf.mxu0
      %v2736 = vpop.f32.mrf.mxu0
      %v2737 = vadd.f32 0.0, %v2736
      %v2738 = vpop.f32.mrf.mxu0
      %2739 = vdwg.mxu0
      %v2740 = vadd.f32 %v2014, %v2614
      %v2741 = vadd.f32 %v2015, %v2617
      %v2742 = vadd.f32 %v2016, %v2622
      %v2743 = vadd.f32 %v2017, %v2625
      %v2744 = vadd.f32 %v2018, %v2630
      %v2745 = vadd.f32 %v2019, %v2633
      %v2746 = vadd.f32 %v2020, %v2638
      %v2747 = vadd.f32 %v2021, %v2641
      %v2748 = vadd.f32 %v2022, %v2646
      %v2749 = vadd.f32 %v2023, %v2649
      %v2750 = vadd.f32 %v2024, %v2654
      %v2751 = vadd.f32 %v2025, %v2657
      %v2752 = vadd.f32 %v2026, %v2662
      %v2753 = vadd.f32 %v2027, %v2665
      %v2754 = vadd.f32 %v2028, %v2670
      %v2755 = vadd.f32 %v2029, %v2673
      %v2756 = vadd.f32 %v2030, %v2678
      %v2757 = vadd.f32 %v2031, %v2681
      %v2758 = vadd.f32 %v2032, %v2686
      %v2759 = vadd.f32 %v2033, %v2689
      %v2760 = vadd.f32 %v2034, %v2694
      %v2761 = vadd.f32 %v2035, %v2697
      %v2762 = vadd.f32 %v2036, %v2702
      %v2763 = vadd.f32 %v2037, %v2705
      %v2764 = vadd.f32 %v2038, %v2710
      %v2765 = vadd.f32 %v2039, %v2713
      %v2766 = vadd.f32 %v2040, %v2718
      %v2767 = vadd.f32 %v2041, %v2721
      %v2768 = vadd.f32 %v2042, %v2726
      %v2769 = vadd.f32 %v2043, %v2729
      %v2770 = vadd.f32 %v2044, %v2734
      %v2771 = vadd.f32 %v2045, %v2737
      %v2772 = vld [vmem:[%s1687] sm:$0xe]
      %v2773 = vld [vmem:[%s1687 + $0xc] sm:$0xe]
      %v2774 = vld [vmem:[%s1687 + $0x18] sm:$0xe]
      %v2775 = vld [vmem:[%s1687 + $0x24] sm:$0xe]
      %v2776 = vld [vmem:[%s1687 + $0x30] sm:$0xe]
      %v2777 = vld [vmem:[%s1687 + $0x3c] sm:$0xe]
      %v2778 = vld [vmem:[%s1687 + $0x48] sm:$0xe]
      %v2779 = vld [vmem:[%s1687 + $0x54] sm:$0xe]
      %v2780 = vld [vmem:[%s1687 + $0x60] sm:$0xe]
      %v2781 = vld [vmem:[%s1687 + $0x6c] sm:$0xe]
      %v2782 = vld [vmem:[%s1687 + $0x78] sm:$0xe]
      %v2783 = vld [vmem:[%s1687 + $0x84] sm:$0xe]
      %v2784 = vld [vmem:[%s1687 + $0x90] sm:$0xe]
      %v2785 = vld [vmem:[%s1687 + $0x9c] sm:$0xe]
      %v2786 = vld [vmem:[%s1687 + $0xa8] sm:$0xe]
      %v2787 = vld [vmem:[%s1687 + $0xb4] sm:$0xe]
      %v2836 = vrot.slane %v2772, 5
      %v2837 = vrot.slane %v2836, 4
      %v2838 = vrot.slane %v2047, 5
      %v2839 = vsel %vm1277, %v2837, %v2838
      %v2840 = vrot.slane %v2838, 4
      %v2841 = vrot.slane %v2048, 5
      %v2842 = vsel %vm1277, %v2840, %v2841
      %v2843 = vrot.slane %v2773, 5
      %v2844 = vrot.slane %v2843, 4
      %v2845 = vrot.slane %v2050, 5
      %v2846 = vsel %vm1277, %v2844, %v2845
      %v2847 = vrot.slane %v2845, 4
      %v2848 = vrot.slane %v2051, 5
      %v2849 = vsel %vm1277, %v2847, %v2848
      %v2850 = vrot.slane %v2774, 5
      %v2851 = vrot.slane %v2850, 4
      %v2852 = vrot.slane %v2053, 5
      %v2853 = vsel %vm1277, %v2851, %v2852
      %v2854 = vrot.slane %v2852, 4
      %v2855 = vrot.slane %v2054, 5
      %v2856 = vsel %vm1277, %v2854, %v2855
      %v2857 = vrot.slane %v2775, 5
      %v2858 = vrot.slane %v2857, 4
      %v2859 = vrot.slane %v2056, 5
      %v2860 = vsel %vm1277, %v2858, %v2859
      %v2861 = vrot.slane %v2859, 4
      %v2862 = vrot.slane %v2057, 5
      %v2863 = vsel %vm1277, %v2861, %v2862
      %v2864 = vrot.slane %v2776, 5
      %v2865 = vrot.slane %v2864, 4
      %v2866 = vrot.slane %v2059, 5
      %v2867 = vsel %vm1277, %v2865, %v2866
      %v2868 = vrot.slane %v2866, 4
      %v2869 = vrot.slane %v2060, 5
      %v2870 = vsel %vm1277, %v2868, %v2869
      %v2871 = vrot.slane %v2777, 5
      %v2872 = vrot.slane %v2871, 4
      %v2873 = vrot.slane %v2062, 5
      %v2874 = vsel %vm1277, %v2872, %v2873
      %v2875 = vrot.slane %v2873, 4
      %v2876 = vrot.slane %v2063, 5
      %v2877 = vsel %vm1277, %v2875, %v2876
      %v2878 = vrot.slane %v2778, 5
      %v2879 = vrot.slane %v2878, 4
      %v2880 = vrot.slane %v2065, 5
      %v2881 = vsel %vm1277, %v2879, %v2880
      %v2882 = vrot.slane %v2880, 4
      %v2883 = vrot.slane %v2066, 5
      %v2884 = vsel %vm1277, %v2882, %v2883
      %v2885 = vrot.slane %v2779, 5
      %v2886 = vrot.slane %v2885, 4
      %v2887 = vrot.slane %v2068, 5
      %v2888 = vsel %vm1277, %v2886, %v2887
      %v2889 = vrot.slane %v2887, 4
      %v2890 = vrot.slane %v2069, 5
      %v2891 = vsel %vm1277, %v2889, %v2890
      %v2892 = vrot.slane %v2780, 5
      %v2893 = vrot.slane %v2892, 4
      %v2894 = vrot.slane %v2071, 5
      %v2895 = vsel %vm1277, %v2893, %v2894
      %v2896 = vrot.slane %v2894, 4
      %v2897 = vrot.slane %v2072, 5
      %v2898 = vsel %vm1277, %v2896, %v2897
      %v2899 = vrot.slane %v2781, 5
      %v2900 = vrot.slane %v2899, 4
      %v2901 = vrot.slane %v2074, 5
      %v2902 = vsel %vm1277, %v2900, %v2901
      %v2903 = vrot.slane %v2901, 4
      %v2904 = vrot.slane %v2075, 5
      %v2905 = vsel %vm1277, %v2903, %v2904
      %v2906 = vrot.slane %v2782, 5
      %v2907 = vrot.slane %v2906, 4
      %v2908 = vrot.slane %v2077, 5
      %v2909 = vsel %vm1277, %v2907, %v2908
      %v2910 = vrot.slane %v2908, 4
      %v2911 = vrot.slane %v2078, 5
      %v2912 = vsel %vm1277, %v2910, %v2911
      %v2913 = vrot.slane %v2783, 5
      %v2914 = vrot.slane %v2913, 4
      %v2915 = vrot.slane %v2080, 5
      %v2916 = vsel %vm1277, %v2914, %v2915
      %v2917 = vrot.slane %v2915, 4
      %v2918 = vrot.slane %v2081, 5
      %v2919 = vsel %vm1277, %v2917, %v2918
      %v2920 = vrot.slane %v2784, 5
      %v2921 = vrot.slane %v2920, 4
      %v2922 = vrot.slane %v2083, 5
      %v2923 = vsel %vm1277, %v2921, %v2922
      %v2924 = vrot.slane %v2922, 4
      %v2925 = vrot.slane %v2084, 5
      %v2926 = vsel %vm1277, %v2924, %v2925
      %v2927 = vrot.slane %v2785, 5
      %v2928 = vrot.slane %v2927, 4
      %v2929 = vrot.slane %v2086, 5
      %v2930 = vsel %vm1277, %v2928, %v2929
      %v2931 = vrot.slane %v2929, 4
      %v2932 = vrot.slane %v2087, 5
      %v2933 = vsel %vm1277, %v2931, %v2932
      %v2934 = vrot.slane %v2786, 5
      %v2935 = vrot.slane %v2934, 4
      %v2936 = vrot.slane %v2089, 5
      %v2937 = vsel %vm1277, %v2935, %v2936
      %v2938 = vrot.slane %v2936, 4
      %v2939 = vrot.slane %v2090, 5
      %v2940 = vsel %vm1277, %v2938, %v2939
      %v2941 = vrot.slane %v2787, 5
      %v2942 = vrot.slane %v2941, 4
      %v2943 = vrot.slane %v2092, 5
      %v2944 = vsel %vm1277, %v2942, %v2943
      %v2945 = vrot.slane %v2943, 4
      %v2946 = vrot.slane %v2093, 5
      %v2947 = vsel %vm1277, %v2945, %v2946
      %s2948 = scalar_lea.vmem %s215, 10
      %v2949 = vld [vmem:[%s2948] sm:$0x3]
      %v2950 = vunpack.c.l.b16 %v2839
      %v2951 = vunpack.c.l.b16 %v2842
      %v2952 = vunpack.c.l.b16 %v2846
      %v2953 = vunpack.c.l.b16 %v2849
      %v2954 = vunpack.c.l.b16 %v2853
      %v2955 = vunpack.c.l.b16 %v2856
      %v2956 = vunpack.c.l.b16 %v2860
      %v2957 = vunpack.c.l.b16 %v2863
      %v2958 = vunpack.c.l.b16 %v2867
      %v2959 = vunpack.c.l.b16 %v2870
      %v2960 = vunpack.c.l.b16 %v2874
      %v2961 = vunpack.c.l.b16 %v2877
      %v2962 = vunpack.c.l.b16 %v2881
      %v2963 = vunpack.c.l.b16 %v2884
      %v2964 = vunpack.c.l.b16 %v2888
      %v2965 = vunpack.c.l.b16 %v2891
      %v2966 = vunpack.c.l.b16 %v2895
      %v2967 = vunpack.c.l.b16 %v2898
      %v2968 = vunpack.c.l.b16 %v2902
      %v2969 = vunpack.c.l.b16 %v2905
      %v2970 = vunpack.c.l.b16 %v2909
      %v2971 = vunpack.c.l.b16 %v2912
      %v2972 = vunpack.c.l.b16 %v2916
      %v2973 = vunpack.c.l.b16 %v2919
      %v2974 = vunpack.c.l.b16 %v2923
      %v2975 = vunpack.c.l.b16 %v2926
      %v2976 = vunpack.c.l.b16 %v2930
      %v2977 = vunpack.c.l.b16 %v2933
      %v2978 = vunpack.c.l.b16 %v2937
      %v2979 = vunpack.c.l.b16 %v2940
      %v2980 = vunpack.c.l.b16 %v2944
      %v2981 = vunpack.c.l.b16 %v2947
      %v2982 = vpack.c.b16 %v2951, %v2950
      %v2983 = vpack.c.b16 %v2953, %v2952
      %v2984 = vpack.c.b16 %v2955, %v2954
      %v2985 = vpack.c.b16 %v2957, %v2956
      %v2986 = vpack.c.b16 %v2959, %v2958
      %v2987 = vpack.c.b16 %v2961, %v2960
      %v2988 = vpack.c.b16 %v2963, %v2962
      %v2989 = vpack.c.b16 %v2965, %v2964
      %v2990 = vpack.c.b16 %v2967, %v2966
      %v2991 = vpack.c.b16 %v2969, %v2968
      %v2992 = vpack.c.b16 %v2971, %v2970
      %v2993 = vpack.c.b16 %v2973, %v2972
      %v2994 = vpack.c.b16 %v2975, %v2974
      %v2995 = vpack.c.b16 %v2977, %v2976
      %v2996 = vpack.c.b16 %v2979, %v2978
      %v2997 = vpack.c.b16 %v2981, %v2980
      %v2999 = vsel %vm721, %v2982, 0
      %v3002 = vsel %vm721, %v2983, 0
      %v3005 = vsel %vm721, %v2984, 0
      %v3008 = vsel %vm721, %v2985, 0
      %v3011 = vsel %vm721, %v2986, 0
      %v3014 = vsel %vm721, %v2987, 0
      %v3017 = vsel %vm721, %v2988, 0
      %v3020 = vsel %vm721, %v2989, 0
      %v3023 = vsel %vm721, %v2990, 0
      %v3026 = vsel %vm721, %v2991, 0
      %v3029 = vsel %vm721, %v2992, 0
      %v3032 = vsel %vm721, %v2993, 0
      %v3035 = vsel %vm721, %v2994, 0
      %v3038 = vsel %vm721, %v2995, 0
      %v3041 = vsel %vm721, %v2996, 0
      %v3044 = vsel %vm721, %v2997, 0
      %v3047 = vsel %vm770, %v2949, 0
      %3049 = vmatprep.subr.bf16.mxu0 0
      %3050 = vmatpush1.bf16.msra.mxu0 0
      %3051 = vmatprep.subr.bf16.mxu0 0
      %3052 = vmatpush1.bf16.msra.mxu0 0
      %3053 = vmatprep.subr.bf16.mxu0 0
      %3054 = vmatpush1.bf16.msra.mxu0 0
      %3055 = vmatprep.subr.bf16.mxu0 0
      %3056 = vmatpush1.bf16.msra.mxu0 0
      %3057 = vmatprep.subr.bf16.mxu0 0
      %3058 = vmatpush1.bf16.msra.mxu0 0
      %3059 = vmatprep.subr.bf16.mxu0 0
      %3060 = vmatpush1.bf16.msra.mxu0 0
      %3061 = vmatprep.subr.bf16.mxu0 0
      %3062 = vmatpush1.bf16.msra.mxu0 0
      %3063 = vmatprep.subr.bf16.mxu0 0
      %3064 = vmatpush1.bf16.msra.mxu0 %v3047
      %3065 = vmatprep.subr.bf16.mxu0 0
      %3066 = vmatpush2.bf16.msra.mxu0 0
      %3067 = vmatprep.subr.bf16.mxu0 0
      %3068 = vmatpush2.bf16.msra.mxu0 0
      %3069 = vmatprep.subr.bf16.mxu0 0
      %3070 = vmatpush2.bf16.msra.mxu0 0
      %3071 = vmatprep.subr.bf16.mxu0 0
      %3072 = vmatpush2.bf16.msra.mxu0 0
      %3073 = vmatprep.subr.bf16.mxu0 0
      %3074 = vmatpush2.bf16.msra.mxu0 0
      %3075 = vmatprep.subr.bf16.mxu0 0
      %3076 = vmatpush2.bf16.msra.mxu0 0
      %3077 = vmatprep.subr.bf16.mxu0 0
      %3078 = vmatpush2.bf16.msra.mxu0 0
      %3079 = vmatprep.subr.bf16.mxu0 0
      %3080 = vmatpush2.bf16.msra.mxu0 0
      %3081 = vmatprep.mubr.bf16.mxu0 0
      %3082 = vmatmul.mubr.bf16.gmra.mxu0 %v2999
      %v3083 = vpop.f32.mrf.mxu0
      %v3084 = vadd.f32 0.0, %v3083
      %v3085 = vpop.f32.mrf.mxu0
      %v3086 = vpop.f32.mrf.mxu0
      %v3087 = vadd.f32 0.0, %v3086
      %v3088 = vpop.f32.mrf.mxu0
      %3089 = vmatprep.mubr.bf16.mxu0 0
      %3090 = vmatmul.mubr.bf16.gmra.mxu0 %v3002
      %v3091 = vpop.f32.mrf.mxu0
      %v3092 = vadd.f32 0.0, %v3091
      %v3093 = vpop.f32.mrf.mxu0
      %v3094 = vpop.f32.mrf.mxu0
      %v3095 = vadd.f32 0.0, %v3094
      %v3096 = vpop.f32.mrf.mxu0
      %3097 = vmatprep.mubr.bf16.mxu0 0
      %3098 = vmatmul.mubr.bf16.gmra.mxu0 %v3005
      %v3099 = vpop.f32.mrf.mxu0
      %v3100 = vadd.f32 0.0, %v3099
      %v3101 = vpop.f32.mrf.mxu0
      %v3102 = vpop.f32.mrf.mxu0
      %v3103 = vadd.f32 0.0, %v3102
      %v3104 = vpop.f32.mrf.mxu0
      %3105 = vmatprep.mubr.bf16.mxu0 0
      %3106 = vmatmul.mubr.bf16.gmra.mxu0 %v3008
      %v3107 = vpop.f32.mrf.mxu0
      %v3108 = vadd.f32 0.0, %v3107
      %v3109 = vpop.f32.mrf.mxu0
      %v3110 = vpop.f32.mrf.mxu0
      %v3111 = vadd.f32 0.0, %v3110
      %v3112 = vpop.f32.mrf.mxu0
      %3113 = vmatprep.mubr.bf16.mxu0 0
      %3114 = vmatmul.mubr.bf16.gmra.mxu0 %v3011
      %v3115 = vpop.f32.mrf.mxu0
      %v3116 = vadd.f32 0.0, %v3115
      %v3117 = vpop.f32.mrf.mxu0
      %v3118 = vpop.f32.mrf.mxu0
      %v3119 = vadd.f32 0.0, %v3118
      %v3120 = vpop.f32.mrf.mxu0
      %3121 = vmatprep.mubr.bf16.mxu0 0
      %3122 = vmatmul.mubr.bf16.gmra.mxu0 %v3014
      %v3123 = vpop.f32.mrf.mxu0
      %v3124 = vadd.f32 0.0, %v3123
      %v3125 = vpop.f32.mrf.mxu0
      %v3126 = vpop.f32.mrf.mxu0
      %v3127 = vadd.f32 0.0, %v3126
      %v3128 = vpop.f32.mrf.mxu0
      %3129 = vmatprep.mubr.bf16.mxu0 0
      %3130 = vmatmul.mubr.bf16.gmra.mxu0 %v3017
      %v3131 = vpop.f32.mrf.mxu0
      %v3132 = vadd.f32 0.0, %v3131
      %v3133 = vpop.f32.mrf.mxu0
      %v3134 = vpop.f32.mrf.mxu0
      %v3135 = vadd.f32 0.0, %v3134
      %v3136 = vpop.f32.mrf.mxu0
      %3137 = vmatprep.mubr.bf16.mxu0 0
      %3138 = vmatmul.mubr.bf16.gmra.mxu0 %v3020
      %v3139 = vpop.f32.mrf.mxu0
      %v3140 = vadd.f32 0.0, %v3139
      %v3141 = vpop.f32.mrf.mxu0
      %v3142 = vpop.f32.mrf.mxu0
      %v3143 = vadd.f32 0.0, %v3142
      %v3144 = vpop.f32.mrf.mxu0
      %3145 = vmatprep.mubr.bf16.mxu0 0
      %3146 = vmatmul.mubr.bf16.gmra.mxu0 %v3023
      %v3147 = vpop.f32.mrf.mxu0
      %v3148 = vadd.f32 0.0, %v3147
      %v3149 = vpop.f32.mrf.mxu0
      %v3150 = vpop.f32.mrf.mxu0
      %v3151 = vadd.f32 0.0, %v3150
      %v3152 = vpop.f32.mrf.mxu0
      %3153 = vmatprep.mubr.bf16.mxu0 0
      %3154 = vmatmul.mubr.bf16.gmra.mxu0 %v3026
      %v3155 = vpop.f32.mrf.mxu0
      %v3156 = vadd.f32 0.0, %v3155
      %v3157 = vpop.f32.mrf.mxu0
      %v3158 = vpop.f32.mrf.mxu0
      %v3159 = vadd.f32 0.0, %v3158
      %v3160 = vpop.f32.mrf.mxu0
      %3161 = vmatprep.mubr.bf16.mxu0 0
      %3162 = vmatmul.mubr.bf16.gmra.mxu0 %v3029
      %v3163 = vpop.f32.mrf.mxu0
      %v3164 = vadd.f32 0.0, %v3163
      %v3165 = vpop.f32.mrf.mxu0
      %v3166 = vpop.f32.mrf.mxu0
      %v3167 = vadd.f32 0.0, %v3166
      %v3168 = vpop.f32.mrf.mxu0
      %3169 = vmatprep.mubr.bf16.mxu0 0
      %3170 = vmatmul.mubr.bf16.gmra.mxu0 %v3032
      %v3171 = vpop.f32.mrf.mxu0
      %v3172 = vadd.f32 0.0, %v3171
      %v3173 = vpop.f32.mrf.mxu0
      %v3174 = vpop.f32.mrf.mxu0
      %v3175 = vadd.f32 0.0, %v3174
      %v3176 = vpop.f32.mrf.mxu0
      %3177 = vmatprep.mubr.bf16.mxu0 0
      %3178 = vmatmul.mubr.bf16.gmra.mxu0 %v3035
      %v3179 = vpop.f32.mrf.mxu0
      %v3180 = vadd.f32 0.0, %v3179
      %v3181 = vpop.f32.mrf.mxu0
      %v3182 = vpop.f32.mrf.mxu0
      %v3183 = vadd.f32 0.0, %v3182
      %v3184 = vpop.f32.mrf.mxu0
      %3185 = vmatprep.mubr.bf16.mxu0 0
      %3186 = vmatmul.mubr.bf16.gmra.mxu0 %v3038
      %v3187 = vpop.f32.mrf.mxu0
      %v3188 = vadd.f32 0.0, %v3187
      %v3189 = vpop.f32.mrf.mxu0
      %v3190 = vpop.f32.mrf.mxu0
      %v3191 = vadd.f32 0.0, %v3190
      %v3192 = vpop.f32.mrf.mxu0
      %3193 = vmatprep.mubr.bf16.mxu0 0
      %3194 = vmatmul.mubr.bf16.gmra.mxu0 %v3041
      %v3195 = vpop.f32.mrf.mxu0
      %v3196 = vadd.f32 0.0, %v3195
      %v3197 = vpop.f32.mrf.mxu0
      %v3198 = vpop.f32.mrf.mxu0
      %v3199 = vadd.f32 0.0, %v3198
      %v3200 = vpop.f32.mrf.mxu0
      %3201 = vmatprep.mubr.bf16.mxu0 0
      %3202 = vmatmul.mubr.bf16.gmra.mxu0 %v3044
      %v3203 = vpop.f32.mrf.mxu0
      %v3204 = vadd.f32 0.0, %v3203
      %v3205 = vpop.f32.mrf.mxu0
      %v3206 = vpop.f32.mrf.mxu0
      %v3207 = vadd.f32 0.0, %v3206
      %v3208 = vpop.f32.mrf.mxu0
      %3209 = vdwg.mxu0
      %v3210 = vadd.f32 %v2740, %v3084
      %v3211 = vadd.f32 %v2741, %v3087
      %v3212 = vadd.f32 %v2742, %v3092
      %v3213 = vadd.f32 %v2743, %v3095
      %v3214 = vadd.f32 %v2744, %v3100
      %v3215 = vadd.f32 %v2745, %v3103
      %v3216 = vadd.f32 %v2746, %v3108
      %v3217 = vadd.f32 %v2747, %v3111
      %v3218 = vadd.f32 %v2748, %v3116
      %v3219 = vadd.f32 %v2749, %v3119
      %v3220 = vadd.f32 %v2750, %v3124
      %v3221 = vadd.f32 %v2751, %v3127
      %v3222 = vadd.f32 %v2752, %v3132
      %v3223 = vadd.f32 %v2753, %v3135
      %v3224 = vadd.f32 %v2754, %v3140
      %v3225 = vadd.f32 %v2755, %v3143
      %v3226 = vadd.f32 %v2756, %v3148
      %v3227 = vadd.f32 %v2757, %v3151
      %v3228 = vadd.f32 %v2758, %v3156
      %v3229 = vadd.f32 %v2759, %v3159
      %v3230 = vadd.f32 %v2760, %v3164
      %v3231 = vadd.f32 %v2761, %v3167
      %v3232 = vadd.f32 %v2762, %v3172
      %v3233 = vadd.f32 %v2763, %v3175
      %v3234 = vadd.f32 %v2764, %v3180
      %v3235 = vadd.f32 %v2765, %v3183
      %v3236 = vadd.f32 %v2766, %v3188
      %v3237 = vadd.f32 %v2767, %v3191
      %v3238 = vadd.f32 %v2768, %v3196
      %v3239 = vadd.f32 %v2769, %v3199
      %v3240 = vadd.f32 %v2770, %v3204
      %v3241 = vadd.f32 %v2771, %v3207
      %s3242 = sadd.s32 %s231, 2
      %s3243 = smul.u32 %s3242, 3
      %s3244 = smul.addr %s3243, 4
      %s3245 = scalar_lea.vmem %s210, %s3244
      %v3246 = vld [vmem:[%s3245] sm:$0xf]
      %v3247 = vld [vmem:[%s3245 + $0x4] sm:$0xf]
      %v3248 = vld [vmem:[%s3245 + $0xc] sm:$0xf]
      %v3249 = vld [vmem:[%s3245 + $0x10] sm:$0xf]
      %v3250 = vld [vmem:[%s3245 + $0x18] sm:$0xf]
      %v3251 = vld [vmem:[%s3245 + $0x1c] sm:$0xf]
      %v3252 = vld [vmem:[%s3245 + $0x24] sm:$0xf]
      %v3253 = vld [vmem:[%s3245 + $0x28] sm:$0xf]
      %v3254 = vld [vmem:[%s3245 + $0x30] sm:$0xf]
      %v3255 = vld [vmem:[%s3245 + $0x34] sm:$0xf]
      %v3256 = vld [vmem:[%s3245 + $0x3c] sm:$0xf]
      %v3257 = vld [vmem:[%s3245 + $0x40] sm:$0xf]
      %v3258 = vld [vmem:[%s3245 + $0x48] sm:$0xf]
      %v3259 = vld [vmem:[%s3245 + $0x4c] sm:$0xf]
      %v3260 = vld [vmem:[%s3245 + $0x54] sm:$0xf]
      %v3261 = vld [vmem:[%s3245 + $0x58] sm:$0xf]
      %v3262 = vld [vmem:[%s3245 + $0x60] sm:$0xf]
      %v3263 = vld [vmem:[%s3245 + $0x64] sm:$0xf]
      %v3264 = vld [vmem:[%s3245 + $0x6c] sm:$0xf]
      %v3265 = vld [vmem:[%s3245 + $0x70] sm:$0xf]
      %v3266 = vld [vmem:[%s3245 + $0x78] sm:$0xf]
      %v3267 = vld [vmem:[%s3245 + $0x7c] sm:$0xf]
      %v3268 = vld [vmem:[%s3245 + $0x84] sm:$0xf]
      %v3269 = vld [vmem:[%s3245 + $0x88] sm:$0xf]
      %v3270 = vld [vmem:[%s3245 + $0x90] sm:$0xf]
      %v3271 = vld [vmem:[%s3245 + $0x94] sm:$0xf]
      %v3272 = vld [vmem:[%s3245 + $0x9c] sm:$0xf]
      %v3273 = vld [vmem:[%s3245 + $0xa0] sm:$0xf]
      %v3274 = vld [vmem:[%s3245 + $0xa8] sm:$0xf]
      %v3275 = vld [vmem:[%s3245 + $0xac] sm:$0xf]
      %v3276 = vld [vmem:[%s3245 + $0xb4] sm:$0xf]
      %v3277 = vld [vmem:[%s3245 + $0xb8] sm:$0xf]
      %s3278 = scalar_lea.vmem %s215, 12
      %v3279 = vld [vmem:[%s3278] sm:$0x3]
      %v3312 = vunpack.c.l.b16 %v3246
      %v3313 = vunpack.c.l.b16 %v3247
      %v3314 = vunpack.c.l.b16 %v3248
      %v3315 = vunpack.c.l.b16 %v3249
      %v3316 = vunpack.c.l.b16 %v3250
      %v3317 = vunpack.c.l.b16 %v3251
      %v3318 = vunpack.c.l.b16 %v3252
      %v3319 = vunpack.c.l.b16 %v3253
      %v3320 = vunpack.c.l.b16 %v3254
      %v3321 = vunpack.c.l.b16 %v3255
      %v3322 = vunpack.c.l.b16 %v3256
      %v3323 = vunpack.c.l.b16 %v3257
      %v3324 = vunpack.c.l.b16 %v3258
      %v3325 = vunpack.c.l.b16 %v3259
      %v3326 = vunpack.c.l.b16 %v3260
      %v3327 = vunpack.c.l.b16 %v3261
      %v3328 = vunpack.c.l.b16 %v3262
      %v3329 = vunpack.c.l.b16 %v3263
      %v3330 = vunpack.c.l.b16 %v3264
      %v3331 = vunpack.c.l.b16 %v3265
      %v3332 = vunpack.c.l.b16 %v3266
      %v3333 = vunpack.c.l.b16 %v3267
      %v3334 = vunpack.c.l.b16 %v3268
      %v3335 = vunpack.c.l.b16 %v3269
      %v3336 = vunpack.c.l.b16 %v3270
      %v3337 = vunpack.c.l.b16 %v3271
      %v3338 = vunpack.c.l.b16 %v3272
      %v3339 = vunpack.c.l.b16 %v3273
      %v3340 = vunpack.c.l.b16 %v3274
      %v3341 = vunpack.c.l.b16 %v3275
      %v3342 = vunpack.c.l.b16 %v3276
      %v3343 = vunpack.c.l.b16 %v3277
      %v3344 = vpack.c.b16 %v3313, %v3312
      %v3345 = vpack.c.b16 %v3315, %v3314
      %v3346 = vpack.c.b16 %v3317, %v3316
      %v3347 = vpack.c.b16 %v3319, %v3318
      %v3348 = vpack.c.b16 %v3321, %v3320
      %v3349 = vpack.c.b16 %v3323, %v3322
      %v3350 = vpack.c.b16 %v3325, %v3324
      %v3351 = vpack.c.b16 %v3327, %v3326
      %v3352 = vpack.c.b16 %v3329, %v3328
      %v3353 = vpack.c.b16 %v3331, %v3330
      %v3354 = vpack.c.b16 %v3333, %v3332
      %v3355 = vpack.c.b16 %v3335, %v3334
      %v3356 = vpack.c.b16 %v3337, %v3336
      %v3357 = vpack.c.b16 %v3339, %v3338
      %v3358 = vpack.c.b16 %v3341, %v3340
      %v3359 = vpack.c.b16 %v3343, %v3342
      %v3361 = vsel %vm721, %v3344, 0
      %v3364 = vsel %vm721, %v3345, 0
      %v3367 = vsel %vm721, %v3346, 0
      %v3370 = vsel %vm721, %v3347, 0
      %v3373 = vsel %vm721, %v3348, 0
      %v3376 = vsel %vm721, %v3349, 0
      %v3379 = vsel %vm721, %v3350, 0
      %v3382 = vsel %vm721, %v3351, 0
      %v3385 = vsel %vm721, %v3352, 0
      %v3388 = vsel %vm721, %v3353, 0
      %v3391 = vsel %vm721, %v3354, 0
      %v3394 = vsel %vm721, %v3355, 0
      %v3397 = vsel %vm721, %v3356, 0
      %v3400 = vsel %vm721, %v3357, 0
      %v3403 = vsel %vm721, %v3358, 0
      %v3406 = vsel %vm721, %v3359, 0
      %v3409 = vsel %vm770, %v3279, 0
      %3411 = vmatprep.subr.bf16.mxu0 0
      %3412 = vmatpush1.bf16.msra.mxu0 0
      %3413 = vmatprep.subr.bf16.mxu0 0
      %3414 = vmatpush1.bf16.msra.mxu0 0
      %3415 = vmatprep.subr.bf16.mxu0 0
      %3416 = vmatpush1.bf16.msra.mxu0 0
      %3417 = vmatprep.subr.bf16.mxu0 0
      %3418 = vmatpush1.bf16.msra.mxu0 0
      %3419 = vmatprep.subr.bf16.mxu0 0
      %3420 = vmatpush1.bf16.msra.mxu0 0
      %3421 = vmatprep.subr.bf16.mxu0 0
      %3422 = vmatpush1.bf16.msra.mxu0 0
      %3423 = vmatprep.subr.bf16.mxu0 0
      %3424 = vmatpush1.bf16.msra.mxu0 0
      %3425 = vmatprep.subr.bf16.mxu0 0
      %3426 = vmatpush1.bf16.msra.mxu0 %v3409
      %3427 = vmatprep.subr.bf16.mxu0 0
      %3428 = vmatpush2.bf16.msra.mxu0 0
      %3429 = vmatprep.subr.bf16.mxu0 0
      %3430 = vmatpush2.bf16.msra.mxu0 0
      %3431 = vmatprep.subr.bf16.mxu0 0
      %3432 = vmatpush2.bf16.msra.mxu0 0
      %3433 = vmatprep.subr.bf16.mxu0 0
      %3434 = vmatpush2.bf16.msra.mxu0 0
      %3435 = vmatprep.subr.bf16.mxu0 0
      %3436 = vmatpush2.bf16.msra.mxu0 0
      %3437 = vmatprep.subr.bf16.mxu0 0
      %3438 = vmatpush2.bf16.msra.mxu0 0
      %3439 = vmatprep.subr.bf16.mxu0 0
      %3440 = vmatpush2.bf16.msra.mxu0 0
      %3441 = vmatprep.subr.bf16.mxu0 0
      %3442 = vmatpush2.bf16.msra.mxu0 0
      %3443 = vmatprep.mubr.bf16.mxu0 0
      %3444 = vmatmul.mubr.bf16.gmra.mxu0 %v3361
      %v3445 = vpop.f32.mrf.mxu0
      %v3446 = vadd.f32 0.0, %v3445
      %v3447 = vpop.f32.mrf.mxu0
      %v3448 = vpop.f32.mrf.mxu0
      %v3449 = vadd.f32 0.0, %v3448
      %v3450 = vpop.f32.mrf.mxu0
      %3451 = vmatprep.mubr.bf16.mxu0 0
      %3452 = vmatmul.mubr.bf16.gmra.mxu0 %v3364
      %v3453 = vpop.f32.mrf.mxu0
      %v3454 = vadd.f32 0.0, %v3453
      %v3455 = vpop.f32.mrf.mxu0
      %v3456 = vpop.f32.mrf.mxu0
      %v3457 = vadd.f32 0.0, %v3456
      %v3458 = vpop.f32.mrf.mxu0
      %3459 = vmatprep.mubr.bf16.mxu0 0
      %3460 = vmatmul.mubr.bf16.gmra.mxu0 %v3367
      %v3461 = vpop.f32.mrf.mxu0
      %v3462 = vadd.f32 0.0, %v3461
      %v3463 = vpop.f32.mrf.mxu0
      %v3464 = vpop.f32.mrf.mxu0
      %v3465 = vadd.f32 0.0, %v3464
      %v3466 = vpop.f32.mrf.mxu0
      %3467 = vmatprep.mubr.bf16.mxu0 0
      %3468 = vmatmul.mubr.bf16.gmra.mxu0 %v3370
      %v3469 = vpop.f32.mrf.mxu0
      %v3470 = vadd.f32 0.0, %v3469
      %v3471 = vpop.f32.mrf.mxu0
      %v3472 = vpop.f32.mrf.mxu0
      %v3473 = vadd.f32 0.0, %v3472
      %v3474 = vpop.f32.mrf.mxu0
      %3475 = vmatprep.mubr.bf16.mxu0 0
      %3476 = vmatmul.mubr.bf16.gmra.mxu0 %v3373
      %v3477 = vpop.f32.mrf.mxu0
      %v3478 = vadd.f32 0.0, %v3477
      %v3479 = vpop.f32.mrf.mxu0
      %v3480 = vpop.f32.mrf.mxu0
      %v3481 = vadd.f32 0.0, %v3480
      %v3482 = vpop.f32.mrf.mxu0
      %3483 = vmatprep.mubr.bf16.mxu0 0
      %3484 = vmatmul.mubr.bf16.gmra.mxu0 %v3376
      %v3485 = vpop.f32.mrf.mxu0
      %v3486 = vadd.f32 0.0, %v3485
      %v3487 = vpop.f32.mrf.mxu0
      %v3488 = vpop.f32.mrf.mxu0
      %v3489 = vadd.f32 0.0, %v3488
      %v3490 = vpop.f32.mrf.mxu0
      %3491 = vmatprep.mubr.bf16.mxu0 0
      %3492 = vmatmul.mubr.bf16.gmra.mxu0 %v3379
      %v3493 = vpop.f32.mrf.mxu0
      %v3494 = vadd.f32 0.0, %v3493
      %v3495 = vpop.f32.mrf.mxu0
      %v3496 = vpop.f32.mrf.mxu0
      %v3497 = vadd.f32 0.0, %v3496
      %v3498 = vpop.f32.mrf.mxu0
      %3499 = vmatprep.mubr.bf16.mxu0 0
      %3500 = vmatmul.mubr.bf16.gmra.mxu0 %v3382
      %v3501 = vpop.f32.mrf.mxu0
      %v3502 = vadd.f32 0.0, %v3501
      %v3503 = vpop.f32.mrf.mxu0
      %v3504 = vpop.f32.mrf.mxu0
      %v3505 = vadd.f32 0.0, %v3504
      %v3506 = vpop.f32.mrf.mxu0
      %3507 = vmatprep.mubr.bf16.mxu0 0
      %3508 = vmatmul.mubr.bf16.gmra.mxu0 %v3385
      %v3509 = vpop.f32.mrf.mxu0
      %v3510 = vadd.f32 0.0, %v3509
      %v3511 = vpop.f32.mrf.mxu0
      %v3512 = vpop.f32.mrf.mxu0
      %v3513 = vadd.f32 0.0, %v3512
      %v3514 = vpop.f32.mrf.mxu0
      %3515 = vmatprep.mubr.bf16.mxu0 0
      %3516 = vmatmul.mubr.bf16.gmra.mxu0 %v3388
      %v3517 = vpop.f32.mrf.mxu0
      %v3518 = vadd.f32 0.0, %v3517
      %v3519 = vpop.f32.mrf.mxu0
      %v3520 = vpop.f32.mrf.mxu0
      %v3521 = vadd.f32 0.0, %v3520
      %v3522 = vpop.f32.mrf.mxu0
      %3523 = vmatprep.mubr.bf16.mxu0 0
      %3524 = vmatmul.mubr.bf16.gmra.mxu0 %v3391
      %v3525 = vpop.f32.mrf.mxu0
      %v3526 = vadd.f32 0.0, %v3525
      %v3527 = vpop.f32.mrf.mxu0
      %v3528 = vpop.f32.mrf.mxu0
      %v3529 = vadd.f32 0.0, %v3528
      %v3530 = vpop.f32.mrf.mxu0
      %3531 = vmatprep.mubr.bf16.mxu0 0
      %3532 = vmatmul.mubr.bf16.gmra.mxu0 %v3394
      %v3533 = vpop.f32.mrf.mxu0
      %v3534 = vadd.f32 0.0, %v3533
      %v3535 = vpop.f32.mrf.mxu0
      %v3536 = vpop.f32.mrf.mxu0
      %v3537 = vadd.f32 0.0, %v3536
      %v3538 = vpop.f32.mrf.mxu0
      %3539 = vmatprep.mubr.bf16.mxu0 0
      %3540 = vmatmul.mubr.bf16.gmra.mxu0 %v3397
      %v3541 = vpop.f32.mrf.mxu0
      %v3542 = vadd.f32 0.0, %v3541
      %v3543 = vpop.f32.mrf.mxu0
      %v3544 = vpop.f32.mrf.mxu0
      %v3545 = vadd.f32 0.0, %v3544
      %v3546 = vpop.f32.mrf.mxu0
      %3547 = vmatprep.mubr.bf16.mxu0 0
      %3548 = vmatmul.mubr.bf16.gmra.mxu0 %v3400
      %v3549 = vpop.f32.mrf.mxu0
      %v3550 = vadd.f32 0.0, %v3549
      %v3551 = vpop.f32.mrf.mxu0
      %v3552 = vpop.f32.mrf.mxu0
      %v3553 = vadd.f32 0.0, %v3552
      %v3554 = vpop.f32.mrf.mxu0
      %3555 = vmatprep.mubr.bf16.mxu0 0
      %3556 = vmatmul.mubr.bf16.gmra.mxu0 %v3403
      %v3557 = vpop.f32.mrf.mxu0
      %v3558 = vadd.f32 0.0, %v3557
      %v3559 = vpop.f32.mrf.mxu0
      %v3560 = vpop.f32.mrf.mxu0
      %v3561 = vadd.f32 0.0, %v3560
      %v3562 = vpop.f32.mrf.mxu0
      %3563 = vmatprep.mubr.bf16.mxu0 0
      %3564 = vmatmul.mubr.bf16.gmra.mxu0 %v3406
      %v3565 = vpop.f32.mrf.mxu0
      %v3566 = vadd.f32 0.0, %v3565
      %v3567 = vpop.f32.mrf.mxu0
      %v3568 = vpop.f32.mrf.mxu0
      %v3569 = vadd.f32 0.0, %v3568
      %v3570 = vpop.f32.mrf.mxu0
      %3571 = vdwg.mxu0
      %v3572 = vadd.f32 %v3210, %v3446
      %v3573 = vadd.f32 %v3211, %v3449
      %v3574 = vadd.f32 %v3212, %v3454
      %v3575 = vadd.f32 %v3213, %v3457
      %v3576 = vadd.f32 %v3214, %v3462
      %v3577 = vadd.f32 %v3215, %v3465
      %v3578 = vadd.f32 %v3216, %v3470
      %v3579 = vadd.f32 %v3217, %v3473
      %v3580 = vadd.f32 %v3218, %v3478
      %v3581 = vadd.f32 %v3219, %v3481
      %v3582 = vadd.f32 %v3220, %v3486
      %v3583 = vadd.f32 %v3221, %v3489
      %v3584 = vadd.f32 %v3222, %v3494
      %v3585 = vadd.f32 %v3223, %v3497
      %v3586 = vadd.f32 %v3224, %v3502
      %v3587 = vadd.f32 %v3225, %v3505
      %v3588 = vadd.f32 %v3226, %v3510
      %v3589 = vadd.f32 %v3227, %v3513
      %v3590 = vadd.f32 %v3228, %v3518
      %v3591 = vadd.f32 %v3229, %v3521
      %v3592 = vadd.f32 %v3230, %v3526
      %v3593 = vadd.f32 %v3231, %v3529
      %v3594 = vadd.f32 %v3232, %v3534
      %v3595 = vadd.f32 %v3233, %v3537
      %v3596 = vadd.f32 %v3234, %v3542
      %v3597 = vadd.f32 %v3235, %v3545
      %v3598 = vadd.f32 %v3236, %v3550
      %v3599 = vadd.f32 %v3237, %v3553
      %v3600 = vadd.f32 %v3238, %v3558
      %v3601 = vadd.f32 %v3239, %v3561
      %v3602 = vadd.f32 %v3240, %v3566
      %v3603 = vadd.f32 %v3241, %v3569
      %v3604 = vld [vmem:[%s3245] sm:$0xf]
      %v3605 = vld [vmem:[%s3245 + $0x4] sm:$0xf]
      %v3606 = vld [vmem:[%s3245 + $0x8] sm:$0x1]
      %v3607 = vld [vmem:[%s3245 + $0xc] sm:$0xf]
      %v3608 = vld [vmem:[%s3245 + $0x10] sm:$0xf]
      %v3609 = vld [vmem:[%s3245 + $0x14] sm:$0x1]
      %v3610 = vld [vmem:[%s3245 + $0x18] sm:$0xf]
      %v3611 = vld [vmem:[%s3245 + $0x1c] sm:$0xf]
      %v3612 = vld [vmem:[%s3245 + $0x20] sm:$0x1]
      %v3613 = vld [vmem:[%s3245 + $0x24] sm:$0xf]
      %v3614 = vld [vmem:[%s3245 + $0x28] sm:$0xf]
      %v3615 = vld [vmem:[%s3245 + $0x2c] sm:$0x1]
      %v3616 = vld [vmem:[%s3245 + $0x30] sm:$0xf]
      %v3617 = vld [vmem:[%s3245 + $0x34] sm:$0xf]
      %v3618 = vld [vmem:[%s3245 + $0x38] sm:$0x1]
      %v3619 = vld [vmem:[%s3245 + $0x3c] sm:$0xf]
      %v3620 = vld [vmem:[%s3245 + $0x40] sm:$0xf]
      %v3621 = vld [vmem:[%s3245 + $0x44] sm:$0x1]
      %v3622 = vld [vmem:[%s3245 + $0x48] sm:$0xf]
      %v3623 = vld [vmem:[%s3245 + $0x4c] sm:$0xf]
      %v3624 = vld [vmem:[%s3245 + $0x50] sm:$0x1]
      %v3625 = vld [vmem:[%s3245 + $0x54] sm:$0xf]
      %v3626 = vld [vmem:[%s3245 + $0x58] sm:$0xf]
      %v3627 = vld [vmem:[%s3245 + $0x5c] sm:$0x1]
      %v3628 = vld [vmem:[%s3245 + $0x60] sm:$0xf]
      %v3629 = vld [vmem:[%s3245 + $0x64] sm:$0xf]
      %v3630 = vld [vmem:[%s3245 + $0x68] sm:$0x1]
      %v3631 = vld [vmem:[%s3245 + $0x6c] sm:$0xf]
      %v3632 = vld [vmem:[%s3245 + $0x70] sm:$0xf]
      %v3633 = vld [vmem:[%s3245 + $0x74] sm:$0x1]
      %v3634 = vld [vmem:[%s3245 + $0x78] sm:$0xf]
      %v3635 = vld [vmem:[%s3245 + $0x7c] sm:$0xf]
      %v3636 = vld [vmem:[%s3245 + $0x80] sm:$0x1]
      %v3637 = vld [vmem:[%s3245 + $0x84] sm:$0xf]
      %v3638 = vld [vmem:[%s3245 + $0x88] sm:$0xf]
      %v3639 = vld [vmem:[%s3245 + $0x8c] sm:$0x1]
      %v3640 = vld [vmem:[%s3245 + $0x90] sm:$0xf]
      %v3641 = vld [vmem:[%s3245 + $0x94] sm:$0xf]
      %v3642 = vld [vmem:[%s3245 + $0x98] sm:$0x1]
      %v3643 = vld [vmem:[%s3245 + $0x9c] sm:$0xf]
      %v3644 = vld [vmem:[%s3245 + $0xa0] sm:$0xf]
      %v3645 = vld [vmem:[%s3245 + $0xa4] sm:$0x1]
      %v3646 = vld [vmem:[%s3245 + $0xa8] sm:$0xf]
      %v3647 = vld [vmem:[%s3245 + $0xac] sm:$0xf]
      %v3648 = vld [vmem:[%s3245 + $0xb0] sm:$0x1]
      %v3649 = vld [vmem:[%s3245 + $0xb4] sm:$0xf]
      %v3650 = vld [vmem:[%s3245 + $0xb8] sm:$0xf]
      %v3651 = vld [vmem:[%s3245 + $0xbc] sm:$0x1]
      %v3653 = vshrl.u32 %v3604, 16
      %v3655 = vrot.slane %v3653, 4
      %v3656 = vshll.u32 %v3604, 16
      %v3658 = vrot.slane %v3656, 5
      %v3659 = vor.u32 %v3655, %v3658
      %v3660 = vrot.slane %v3659, 4
      %v3662 = vshll.u32 %v3605, 16
      %v3664 = vrot.slane %v3662, 5
      %v3665 = vsel %vm286, %v3660, %v3664
      %v3666 = vshrl.u32 %v3605, 16
      %v3668 = vrot.slane %v3666, 4
      %v3669 = vor.u32 %v3668, %v3664
      %v3670 = vrot.slane %v3669, 4
      %v3672 = vshll.u32 %v3606, 16
      %v3674 = vrot.slane %v3672, 5
      %v3675 = vsel %vm286, %v3670, %v3674
      %v3677 = vshrl.u32 %v3607, 16
      %v3679 = vrot.slane %v3677, 4
      %v3680 = vshll.u32 %v3607, 16
      %v3682 = vrot.slane %v3680, 5
      %v3683 = vor.u32 %v3679, %v3682
      %v3684 = vrot.slane %v3683, 4
      %v3686 = vshll.u32 %v3608, 16
      %v3688 = vrot.slane %v3686, 5
      %v3689 = vsel %vm286, %v3684, %v3688
      %v3690 = vshrl.u32 %v3608, 16
      %v3692 = vrot.slane %v3690, 4
      %v3693 = vor.u32 %v3692, %v3688
      %v3694 = vrot.slane %v3693, 4
      %v3696 = vshll.u32 %v3609, 16
      %v3698 = vrot.slane %v3696, 5
      %v3699 = vsel %vm286, %v3694, %v3698
      %v3701 = vshrl.u32 %v3610, 16
      %v3703 = vrot.slane %v3701, 4
      %v3704 = vshll.u32 %v3610, 16
      %v3706 = vrot.slane %v3704, 5
      %v3707 = vor.u32 %v3703, %v3706
      %v3708 = vrot.slane %v3707, 4
      %v3710 = vshll.u32 %v3611, 16
      %v3712 = vrot.slane %v3710, 5
      %v3713 = vsel %vm286, %v3708, %v3712
      %v3714 = vshrl.u32 %v3611, 16
      %v3716 = vrot.slane %v3714, 4
      %v3717 = vor.u32 %v3716, %v3712
      %v3718 = vrot.slane %v3717, 4
      %v3720 = vshll.u32 %v3612, 16
      %v3722 = vrot.slane %v3720, 5
      %v3723 = vsel %vm286, %v3718, %v3722
      %v3725 = vshrl.u32 %v3613, 16
      %v3727 = vrot.slane %v3725, 4
      %v3728 = vshll.u32 %v3613, 16
      %v3730 = vrot.slane %v3728, 5
      %v3731 = vor.u32 %v3727, %v3730
      %v3732 = vrot.slane %v3731, 4
      %v3734 = vshll.u32 %v3614, 16
      %v3736 = vrot.slane %v3734, 5
      %v3737 = vsel %vm286, %v3732, %v3736
      %v3738 = vshrl.u32 %v3614, 16
      %v3740 = vrot.slane %v3738, 4
      %v3741 = vor.u32 %v3740, %v3736
      %v3742 = vrot.slane %v3741, 4
      %v3744 = vshll.u32 %v3615, 16
      %v3746 = vrot.slane %v3744, 5
      %v3747 = vsel %vm286, %v3742, %v3746
      %v3749 = vshrl.u32 %v3616, 16
      %v3751 = vrot.slane %v3749, 4
      %v3752 = vshll.u32 %v3616, 16
      %v3754 = vrot.slane %v3752, 5
      %v3755 = vor.u32 %v3751, %v3754
      %v3756 = vrot.slane %v3755, 4
      %v3758 = vshll.u32 %v3617, 16
      %v3760 = vrot.slane %v3758, 5
      %v3761 = vsel %vm286, %v3756, %v3760
      %v3762 = vshrl.u32 %v3617, 16
      %v3764 = vrot.slane %v3762, 4
      %v3765 = vor.u32 %v3764, %v3760
      %v3766 = vrot.slane %v3765, 4
      %v3768 = vshll.u32 %v3618, 16
      %v3770 = vrot.slane %v3768, 5
      %v3771 = vsel %vm286, %v3766, %v3770
      %v3773 = vshrl.u32 %v3619, 16
      %v3775 = vrot.slane %v3773, 4
      %v3776 = vshll.u32 %v3619, 16
      %v3778 = vrot.slane %v3776, 5
      %v3779 = vor.u32 %v3775, %v3778
      %v3780 = vrot.slane %v3779, 4
      %v3782 = vshll.u32 %v3620, 16
      %v3784 = vrot.slane %v3782, 5
      %v3785 = vsel %vm286, %v3780, %v3784
      %v3786 = vshrl.u32 %v3620, 16
      %v3788 = vrot.slane %v3786, 4
      %v3789 = vor.u32 %v3788, %v3784
      %v3790 = vrot.slane %v3789, 4
      %v3792 = vshll.u32 %v3621, 16
      %v3794 = vrot.slane %v3792, 5
      %v3795 = vsel %vm286, %v3790, %v3794
      %v3797 = vshrl.u32 %v3622, 16
      %v3799 = vrot.slane %v3797, 4
      %v3800 = vshll.u32 %v3622, 16
      %v3802 = vrot.slane %v3800, 5
      %v3803 = vor.u32 %v3799, %v3802
      %v3804 = vrot.slane %v3803, 4
      %v3806 = vshll.u32 %v3623, 16
      %v3808 = vrot.slane %v3806, 5
      %v3809 = vsel %vm286, %v3804, %v3808
      %v3810 = vshrl.u32 %v3623, 16
      %v3812 = vrot.slane %v3810, 4
      %v3813 = vor.u32 %v3812, %v3808
      %v3814 = vrot.slane %v3813, 4
      %v3816 = vshll.u32 %v3624, 16
      %v3818 = vrot.slane %v3816, 5
      %v3819 = vsel %vm286, %v3814, %v3818
      %v3821 = vshrl.u32 %v3625, 16
      %v3823 = vrot.slane %v3821, 4
      %v3824 = vshll.u32 %v3625, 16
      %v3826 = vrot.slane %v3824, 5
      %v3827 = vor.u32 %v3823, %v3826
      %v3828 = vrot.slane %v3827, 4
      %v3830 = vshll.u32 %v3626, 16
      %v3832 = vrot.slane %v3830, 5
      %v3833 = vsel %vm286, %v3828, %v3832
      %v3834 = vshrl.u32 %v3626, 16
      %v3836 = vrot.slane %v3834, 4
      %v3837 = vor.u32 %v3836, %v3832
      %v3838 = vrot.slane %v3837, 4
      %v3840 = vshll.u32 %v3627, 16
      %v3842 = vrot.slane %v3840, 5
      %v3843 = vsel %vm286, %v3838, %v3842
      %v3845 = vshrl.u32 %v3628, 16
      %v3847 = vrot.slane %v3845, 4
      %v3848 = vshll.u32 %v3628, 16
      %v3850 = vrot.slane %v3848, 5
      %v3851 = vor.u32 %v3847, %v3850
      %v3852 = vrot.slane %v3851, 4
      %v3854 = vshll.u32 %v3629, 16
      %v3856 = vrot.slane %v3854, 5
      %v3857 = vsel %vm286, %v3852, %v3856
      %v3858 = vshrl.u32 %v3629, 16
      %v3860 = vrot.slane %v3858, 4
      %v3861 = vor.u32 %v3860, %v3856
      %v3862 = vrot.slane %v3861, 4
      %v3864 = vshll.u32 %v3630, 16
      %v3866 = vrot.slane %v3864, 5
      %v3867 = vsel %vm286, %v3862, %v3866
      %v3869 = vshrl.u32 %v3631, 16
      %v3871 = vrot.slane %v3869, 4
      %v3872 = vshll.u32 %v3631, 16
      %v3874 = vrot.slane %v3872, 5
      %v3875 = vor.u32 %v3871, %v3874
      %v3876 = vrot.slane %v3875, 4
      %v3878 = vshll.u32 %v3632, 16
      %v3880 = vrot.slane %v3878, 5
      %v3881 = vsel %vm286, %v3876, %v3880
      %v3882 = vshrl.u32 %v3632, 16
      %v3884 = vrot.slane %v3882, 4
      %v3885 = vor.u32 %v3884, %v3880
      %v3886 = vrot.slane %v3885, 4
      %v3888 = vshll.u32 %v3633, 16
      %v3890 = vrot.slane %v3888, 5
      %v3891 = vsel %vm286, %v3886, %v3890
      %v3893 = vshrl.u32 %v3634, 16
      %v3895 = vrot.slane %v3893, 4
      %v3896 = vshll.u32 %v3634, 16
      %v3898 = vrot.slane %v3896, 5
      %v3899 = vor.u32 %v3895, %v3898
      %v3900 = vrot.slane %v3899, 4
      %v3902 = vshll.u32 %v3635, 16
      %v3904 = vrot.slane %v3902, 5
      %v3905 = vsel %vm286, %v3900, %v3904
      %v3906 = vshrl.u32 %v3635, 16
      %v3908 = vrot.slane %v3906, 4
      %v3909 = vor.u32 %v3908, %v3904
      %v3910 = vrot.slane %v3909, 4
      %v3912 = vshll.u32 %v3636, 16
      %v3914 = vrot.slane %v3912, 5
      %v3915 = vsel %vm286, %v3910, %v3914
      %v3917 = vshrl.u32 %v3637, 16
      %v3919 = vrot.slane %v3917, 4
      %v3920 = vshll.u32 %v3637, 16
      %v3922 = vrot.slane %v3920, 5
      %v3923 = vor.u32 %v3919, %v3922
      %v3924 = vrot.slane %v3923, 4
      %v3926 = vshll.u32 %v3638, 16
      %v3928 = vrot.slane %v3926, 5
      %v3929 = vsel %vm286, %v3924, %v3928
      %v3930 = vshrl.u32 %v3638, 16
      %v3932 = vrot.slane %v3930, 4
      %v3933 = vor.u32 %v3932, %v3928
      %v3934 = vrot.slane %v3933, 4
      %v3936 = vshll.u32 %v3639, 16
      %v3938 = vrot.slane %v3936, 5
      %v3939 = vsel %vm286, %v3934, %v3938
      %v3941 = vshrl.u32 %v3640, 16
      %v3943 = vrot.slane %v3941, 4
      %v3944 = vshll.u32 %v3640, 16
      %v3946 = vrot.slane %v3944, 5
      %v3947 = vor.u32 %v3943, %v3946
      %v3948 = vrot.slane %v3947, 4
      %v3950 = vshll.u32 %v3641, 16
      %v3952 = vrot.slane %v3950, 5
      %v3953 = vsel %vm286, %v3948, %v3952
      %v3954 = vshrl.u32 %v3641, 16
      %v3956 = vrot.slane %v3954, 4
      %v3957 = vor.u32 %v3956, %v3952
      %v3958 = vrot.slane %v3957, 4
      %v3960 = vshll.u32 %v3642, 16
      %v3962 = vrot.slane %v3960, 5
      %v3963 = vsel %vm286, %v3958, %v3962
      %v3965 = vshrl.u32 %v3643, 16
      %v3967 = vrot.slane %v3965, 4
      %v3968 = vshll.u32 %v3643, 16
      %v3970 = vrot.slane %v3968, 5
      %v3971 = vor.u32 %v3967, %v3970
      %v3972 = vrot.slane %v3971, 4
      %v3974 = vshll.u32 %v3644, 16
      %v3976 = vrot.slane %v3974, 5
      %v3977 = vsel %vm286, %v3972, %v3976
      %v3978 = vshrl.u32 %v3644, 16
      %v3980 = vrot.slane %v3978, 4
      %v3981 = vor.u32 %v3980, %v3976
      %v3982 = vrot.slane %v3981, 4
      %v3984 = vshll.u32 %v3645, 16
      %v3986 = vrot.slane %v3984, 5
      %v3987 = vsel %vm286, %v3982, %v3986
      %v3989 = vshrl.u32 %v3646, 16
      %v3991 = vrot.slane %v3989, 4
      %v3992 = vshll.u32 %v3646, 16
      %v3994 = vrot.slane %v3992, 5
      %v3995 = vor.u32 %v3991, %v3994
      %v3996 = vrot.slane %v3995, 4
      %v3998 = vshll.u32 %v3647, 16
      %v4000 = vrot.slane %v3998, 5
      %v4001 = vsel %vm286, %v3996, %v4000
      %v4002 = vshrl.u32 %v3647, 16
      %v4004 = vrot.slane %v4002, 4
      %v4005 = vor.u32 %v4004, %v4000
      %v4006 = vrot.slane %v4005, 4
      %v4008 = vshll.u32 %v3648, 16
      %v4010 = vrot.slane %v4008, 5
      %v4011 = vsel %vm286, %v4006, %v4010
      %v4013 = vshrl.u32 %v3649, 16
      %v4015 = vrot.slane %v4013, 4
      %v4016 = vshll.u32 %v3649, 16
      %v4018 = vrot.slane %v4016, 5
      %v4019 = vor.u32 %v4015, %v4018
      %v4020 = vrot.slane %v4019, 4
      %v4022 = vshll.u32 %v3650, 16
      %v4024 = vrot.slane %v4022, 5
      %v4025 = vsel %vm286, %v4020, %v4024
      %v4026 = vshrl.u32 %v3650, 16
      %v4028 = vrot.slane %v4026, 4
      %v4029 = vor.u32 %v4028, %v4024
      %v4030 = vrot.slane %v4029, 4
      %v4032 = vshll.u32 %v3651, 16
      %v4034 = vrot.slane %v4032, 5
      %v4035 = vsel %vm286, %v4030, %v4034
      %s4036 = scalar_lea.vmem %s215, 14
      %v4037 = vld [vmem:[%s4036] sm:$0x3]
      %v4038 = vunpack.c.l.b16 %v3665
      %v4039 = vunpack.c.l.b16 %v3675
      %v4040 = vunpack.c.l.b16 %v3689
      %v4041 = vunpack.c.l.b16 %v3699
      %v4042 = vunpack.c.l.b16 %v3713
      %v4043 = vunpack.c.l.b16 %v3723
      %v4044 = vunpack.c.l.b16 %v3737
      %v4045 = vunpack.c.l.b16 %v3747
      %v4046 = vunpack.c.l.b16 %v3761
      %v4047 = vunpack.c.l.b16 %v3771
      %v4048 = vunpack.c.l.b16 %v3785
      %v4049 = vunpack.c.l.b16 %v3795
      %v4050 = vunpack.c.l.b16 %v3809
      %v4051 = vunpack.c.l.b16 %v3819
      %v4052 = vunpack.c.l.b16 %v3833
      %v4053 = vunpack.c.l.b16 %v3843
      %v4054 = vunpack.c.l.b16 %v3857
      %v4055 = vunpack.c.l.b16 %v3867
      %v4056 = vunpack.c.l.b16 %v3881
      %v4057 = vunpack.c.l.b16 %v3891
      %v4058 = vunpack.c.l.b16 %v3905
      %v4059 = vunpack.c.l.b16 %v3915
      %v4060 = vunpack.c.l.b16 %v3929
      %v4061 = vunpack.c.l.b16 %v3939
      %v4062 = vunpack.c.l.b16 %v3953
      %v4063 = vunpack.c.l.b16 %v3963
      %v4064 = vunpack.c.l.b16 %v3977
      %v4065 = vunpack.c.l.b16 %v3987
      %v4066 = vunpack.c.l.b16 %v4001
      %v4067 = vunpack.c.l.b16 %v4011
      %v4068 = vunpack.c.l.b16 %v4025
      %v4069 = vunpack.c.l.b16 %v4035
      %v4070 = vpack.c.b16 %v4039, %v4038
      %v4071 = vpack.c.b16 %v4041, %v4040
      %v4072 = vpack.c.b16 %v4043, %v4042
      %v4073 = vpack.c.b16 %v4045, %v4044
      %v4074 = vpack.c.b16 %v4047, %v4046
      %v4075 = vpack.c.b16 %v4049, %v4048
      %v4076 = vpack.c.b16 %v4051, %v4050
      %v4077 = vpack.c.b16 %v4053, %v4052
      %v4078 = vpack.c.b16 %v4055, %v4054
      %v4079 = vpack.c.b16 %v4057, %v4056
      %v4080 = vpack.c.b16 %v4059, %v4058
      %v4081 = vpack.c.b16 %v4061, %v4060
      %v4082 = vpack.c.b16 %v4063, %v4062
      %v4083 = vpack.c.b16 %v4065, %v4064
      %v4084 = vpack.c.b16 %v4067, %v4066
      %v4085 = vpack.c.b16 %v4069, %v4068
      %v4087 = vsel %vm721, %v4070, 0
      %v4090 = vsel %vm721, %v4071, 0
      %v4093 = vsel %vm721, %v4072, 0
      %v4096 = vsel %vm721, %v4073, 0
      %v4099 = vsel %vm721, %v4074, 0
      %v4102 = vsel %vm721, %v4075, 0
      %v4105 = vsel %vm721, %v4076, 0
      %v4108 = vsel %vm721, %v4077, 0
      %v4111 = vsel %vm721, %v4078, 0
      %v4114 = vsel %vm721, %v4079, 0
      %v4117 = vsel %vm721, %v4080, 0
      %v4120 = vsel %vm721, %v4081, 0
      %v4123 = vsel %vm721, %v4082, 0
      %v4126 = vsel %vm721, %v4083, 0
      %v4129 = vsel %vm721, %v4084, 0
      %v4132 = vsel %vm721, %v4085, 0
      %v4135 = vsel %vm770, %v4037, 0
      %4137 = vmatprep.subr.bf16.mxu0 0
      %4138 = vmatpush1.bf16.msra.mxu0 0
      %4139 = vmatprep.subr.bf16.mxu0 0
      %4140 = vmatpush1.bf16.msra.mxu0 0
      %4141 = vmatprep.subr.bf16.mxu0 0
      %4142 = vmatpush1.bf16.msra.mxu0 0
      %4143 = vmatprep.subr.bf16.mxu0 0
      %4144 = vmatpush1.bf16.msra.mxu0 0
      %4145 = vmatprep.subr.bf16.mxu0 0
      %4146 = vmatpush1.bf16.msra.mxu0 0
      %4147 = vmatprep.subr.bf16.mxu0 0
      %4148 = vmatpush1.bf16.msra.mxu0 0
      %4149 = vmatprep.subr.bf16.mxu0 0
      %4150 = vmatpush1.bf16.msra.mxu0 0
      %4151 = vmatprep.subr.bf16.mxu0 0
      %4152 = vmatpush1.bf16.msra.mxu0 %v4135
      %4153 = vmatprep.subr.bf16.mxu0 0
      %4154 = vmatpush2.bf16.msra.mxu0 0
      %4155 = vmatprep.subr.bf16.mxu0 0
      %4156 = vmatpush2.bf16.msra.mxu0 0
      %4157 = vmatprep.subr.bf16.mxu0 0
      %4158 = vmatpush2.bf16.msra.mxu0 0
      %4159 = vmatprep.subr.bf16.mxu0 0
      %4160 = vmatpush2.bf16.msra.mxu0 0
      %4161 = vmatprep.subr.bf16.mxu0 0
      %4162 = vmatpush2.bf16.msra.mxu0 0
      %4163 = vmatprep.subr.bf16.mxu0 0
      %4164 = vmatpush2.bf16.msra.mxu0 0
      %4165 = vmatprep.subr.bf16.mxu0 0
      %4166 = vmatpush2.bf16.msra.mxu0 0
      %4167 = vmatprep.subr.bf16.mxu0 0
      %4168 = vmatpush2.bf16.msra.mxu0 0
      %4169 = vmatprep.mubr.bf16.mxu0 0
      %4170 = vmatmul.mubr.bf16.gmra.mxu0 %v4087
      %v4171 = vpop.f32.mrf.mxu0
      %v4172 = vadd.f32 0.0, %v4171
      %v4173 = vpop.f32.mrf.mxu0
      %v4174 = vpop.f32.mrf.mxu0
      %v4175 = vadd.f32 0.0, %v4174
      %v4176 = vpop.f32.mrf.mxu0
      %4177 = vmatprep.mubr.bf16.mxu0 0
      %4178 = vmatmul.mubr.bf16.gmra.mxu0 %v4090
      %v4179 = vpop.f32.mrf.mxu0
      %v4180 = vadd.f32 0.0, %v4179
      %v4181 = vpop.f32.mrf.mxu0
      %v4182 = vpop.f32.mrf.mxu0
      %v4183 = vadd.f32 0.0, %v4182
      %v4184 = vpop.f32.mrf.mxu0
      %4185 = vmatprep.mubr.bf16.mxu0 0
      %4186 = vmatmul.mubr.bf16.gmra.mxu0 %v4093
      %v4187 = vpop.f32.mrf.mxu0
      %v4188 = vadd.f32 0.0, %v4187
      %v4189 = vpop.f32.mrf.mxu0
      %v4190 = vpop.f32.mrf.mxu0
      %v4191 = vadd.f32 0.0, %v4190
      %v4192 = vpop.f32.mrf.mxu0
      %4193 = vmatprep.mubr.bf16.mxu0 0
      %4194 = vmatmul.mubr.bf16.gmra.mxu0 %v4096
      %v4195 = vpop.f32.mrf.mxu0
      %v4196 = vadd.f32 0.0, %v4195
      %v4197 = vpop.f32.mrf.mxu0
      %v4198 = vpop.f32.mrf.mxu0
      %v4199 = vadd.f32 0.0, %v4198
      %v4200 = vpop.f32.mrf.mxu0
      %4201 = vmatprep.mubr.bf16.mxu0 0
      %4202 = vmatmul.mubr.bf16.gmra.mxu0 %v4099
      %v4203 = vpop.f32.mrf.mxu0
      %v4204 = vadd.f32 0.0, %v4203
      %v4205 = vpop.f32.mrf.mxu0
      %v4206 = vpop.f32.mrf.mxu0
      %v4207 = vadd.f32 0.0, %v4206
      %v4208 = vpop.f32.mrf.mxu0
      %4209 = vmatprep.mubr.bf16.mxu0 0
      %4210 = vmatmul.mubr.bf16.gmra.mxu0 %v4102
      %v4211 = vpop.f32.mrf.mxu0
      %v4212 = vadd.f32 0.0, %v4211
      %v4213 = vpop.f32.mrf.mxu0
      %v4214 = vpop.f32.mrf.mxu0
      %v4215 = vadd.f32 0.0, %v4214
      %v4216 = vpop.f32.mrf.mxu0
      %4217 = vmatprep.mubr.bf16.mxu0 0
      %4218 = vmatmul.mubr.bf16.gmra.mxu0 %v4105
      %v4219 = vpop.f32.mrf.mxu0
      %v4220 = vadd.f32 0.0, %v4219
      %v4221 = vpop.f32.mrf.mxu0
      %v4222 = vpop.f32.mrf.mxu0
      %v4223 = vadd.f32 0.0, %v4222
      %v4224 = vpop.f32.mrf.mxu0
      %4225 = vmatprep.mubr.bf16.mxu0 0
      %4226 = vmatmul.mubr.bf16.gmra.mxu0 %v4108
      %v4227 = vpop.f32.mrf.mxu0
      %v4228 = vadd.f32 0.0, %v4227
      %v4229 = vpop.f32.mrf.mxu0
      %v4230 = vpop.f32.mrf.mxu0
      %v4231 = vadd.f32 0.0, %v4230
      %v4232 = vpop.f32.mrf.mxu0
      %4233 = vmatprep.mubr.bf16.mxu0 0
      %4234 = vmatmul.mubr.bf16.gmra.mxu0 %v4111
      %v4235 = vpop.f32.mrf.mxu0
      %v4236 = vadd.f32 0.0, %v4235
      %v4237 = vpop.f32.mrf.mxu0
      %v4238 = vpop.f32.mrf.mxu0
      %v4239 = vadd.f32 0.0, %v4238
      %v4240 = vpop.f32.mrf.mxu0
      %4241 = vmatprep.mubr.bf16.mxu0 0
      %4242 = vmatmul.mubr.bf16.gmra.mxu0 %v4114
      %v4243 = vpop.f32.mrf.mxu0
      %v4244 = vadd.f32 0.0, %v4243
      %v4245 = vpop.f32.mrf.mxu0
      %v4246 = vpop.f32.mrf.mxu0
      %v4247 = vadd.f32 0.0, %v4246
      %v4248 = vpop.f32.mrf.mxu0
      %4249 = vmatprep.mubr.bf16.mxu0 0
      %4250 = vmatmul.mubr.bf16.gmra.mxu0 %v4117
      %v4251 = vpop.f32.mrf.mxu0
      %v4252 = vadd.f32 0.0, %v4251
      %v4253 = vpop.f32.mrf.mxu0
      %v4254 = vpop.f32.mrf.mxu0
      %v4255 = vadd.f32 0.0, %v4254
      %v4256 = vpop.f32.mrf.mxu0
      %4257 = vmatprep.mubr.bf16.mxu0 0
      %4258 = vmatmul.mubr.bf16.gmra.mxu0 %v4120
      %v4259 = vpop.f32.mrf.mxu0
      %v4260 = vadd.f32 0.0, %v4259
      %v4261 = vpop.f32.mrf.mxu0
      %v4262 = vpop.f32.mrf.mxu0
      %v4263 = vadd.f32 0.0, %v4262
      %v4264 = vpop.f32.mrf.mxu0
      %4265 = vmatprep.mubr.bf16.mxu0 0
      %4266 = vmatmul.mubr.bf16.gmra.mxu0 %v4123
      %v4267 = vpop.f32.mrf.mxu0
      %v4268 = vadd.f32 0.0, %v4267
      %v4269 = vpop.f32.mrf.mxu0
      %v4270 = vpop.f32.mrf.mxu0
      %v4271 = vadd.f32 0.0, %v4270
      %v4272 = vpop.f32.mrf.mxu0
      %4273 = vmatprep.mubr.bf16.mxu0 0
      %4274 = vmatmul.mubr.bf16.gmra.mxu0 %v4126
      %v4275 = vpop.f32.mrf.mxu0
      %v4276 = vadd.f32 0.0, %v4275
      %v4277 = vpop.f32.mrf.mxu0
      %v4278 = vpop.f32.mrf.mxu0
      %v4279 = vadd.f32 0.0, %v4278
      %v4280 = vpop.f32.mrf.mxu0
      %4281 = vmatprep.mubr.bf16.mxu0 0
      %4282 = vmatmul.mubr.bf16.gmra.mxu0 %v4129
      %v4283 = vpop.f32.mrf.mxu0
      %v4284 = vadd.f32 0.0, %v4283
      %v4285 = vpop.f32.mrf.mxu0
      %v4286 = vpop.f32.mrf.mxu0
      %v4287 = vadd.f32 0.0, %v4286
      %v4288 = vpop.f32.mrf.mxu0
      %4289 = vmatprep.mubr.bf16.mxu0 0
      %4290 = vmatmul.mubr.bf16.gmra.mxu0 %v4132
      %v4291 = vpop.f32.mrf.mxu0
      %v4292 = vadd.f32 0.0, %v4291
      %v4293 = vpop.f32.mrf.mxu0
      %v4294 = vpop.f32.mrf.mxu0
      %v4295 = vadd.f32 0.0, %v4294
      %v4296 = vpop.f32.mrf.mxu0
      %4297 = vdwg.mxu0
      %v4298 = vadd.f32 %v3572, %v4172
      %v4299 = vadd.f32 %v3573, %v4175
      %v4300 = vadd.f32 %v3574, %v4180
      %v4301 = vadd.f32 %v3575, %v4183
      %v4302 = vadd.f32 %v3576, %v4188
      %v4303 = vadd.f32 %v3577, %v4191
      %v4304 = vadd.f32 %v3578, %v4196
      %v4305 = vadd.f32 %v3579, %v4199
      %v4306 = vadd.f32 %v3580, %v4204
      %v4307 = vadd.f32 %v3581, %v4207
      %v4308 = vadd.f32 %v3582, %v4212
      %v4309 = vadd.f32 %v3583, %v4215
      %v4310 = vadd.f32 %v3584, %v4220
      %v4311 = vadd.f32 %v3585, %v4223
      %v4312 = vadd.f32 %v3586, %v4228
      %v4313 = vadd.f32 %v3587, %v4231
      %v4314 = vadd.f32 %v3588, %v4236
      %v4315 = vadd.f32 %v3589, %v4239
      %v4316 = vadd.f32 %v3590, %v4244
      %v4317 = vadd.f32 %v3591, %v4247
      %v4318 = vadd.f32 %v3592, %v4252
      %v4319 = vadd.f32 %v3593, %v4255
      %v4320 = vadd.f32 %v3594, %v4260
      %v4321 = vadd.f32 %v3595, %v4263
      %v4322 = vadd.f32 %v3596, %v4268
      %v4323 = vadd.f32 %v3597, %v4271
      %v4324 = vadd.f32 %v3598, %v4276
      %v4325 = vadd.f32 %v3599, %v4279
      %v4326 = vadd.f32 %v3600, %v4284
      %v4327 = vadd.f32 %v3601, %v4287
      %v4328 = vadd.f32 %v3602, %v4292
      %v4329 = vadd.f32 %v3603, %v4295
      %v4330 = vld [vmem:[%s3245] sm:$0xe]
      %v4331 = vld [vmem:[%s3245 + $0xc] sm:$0xe]
      %v4332 = vld [vmem:[%s3245 + $0x18] sm:$0xe]
      %v4333 = vld [vmem:[%s3245 + $0x24] sm:$0xe]
      %v4334 = vld [vmem:[%s3245 + $0x30] sm:$0xe]
      %v4335 = vld [vmem:[%s3245 + $0x3c] sm:$0xe]
      %v4336 = vld [vmem:[%s3245 + $0x48] sm:$0xe]
      %v4337 = vld [vmem:[%s3245 + $0x54] sm:$0xe]
      %v4338 = vld [vmem:[%s3245 + $0x60] sm:$0xe]
      %v4339 = vld [vmem:[%s3245 + $0x6c] sm:$0xe]
      %v4340 = vld [vmem:[%s3245 + $0x78] sm:$0xe]
      %v4341 = vld [vmem:[%s3245 + $0x84] sm:$0xe]
      %v4342 = vld [vmem:[%s3245 + $0x90] sm:$0xe]
      %v4343 = vld [vmem:[%s3245 + $0x9c] sm:$0xe]
      %v4344 = vld [vmem:[%s3245 + $0xa8] sm:$0xe]
      %v4345 = vld [vmem:[%s3245 + $0xb4] sm:$0xe]
      %v4394 = vrot.slane %v4330, 5
      %v4395 = vrot.slane %v4394, 4
      %v4396 = vrot.slane %v3605, 5
      %v4397 = vsel %vm1277, %v4395, %v4396
      %v4398 = vrot.slane %v4396, 4
      %v4399 = vrot.slane %v3606, 5
      %v4400 = vsel %vm1277, %v4398, %v4399
      %v4401 = vrot.slane %v4331, 5
      %v4402 = vrot.slane %v4401, 4
      %v4403 = vrot.slane %v3608, 5
      %v4404 = vsel %vm1277, %v4402, %v4403
      %v4405 = vrot.slane %v4403, 4
      %v4406 = vrot.slane %v3609, 5
      %v4407 = vsel %vm1277, %v4405, %v4406
      %v4408 = vrot.slane %v4332, 5
      %v4409 = vrot.slane %v4408, 4
      %v4410 = vrot.slane %v3611, 5
      %v4411 = vsel %vm1277, %v4409, %v4410
      %v4412 = vrot.slane %v4410, 4
      %v4413 = vrot.slane %v3612, 5
      %v4414 = vsel %vm1277, %v4412, %v4413
      %v4415 = vrot.slane %v4333, 5
      %v4416 = vrot.slane %v4415, 4
      %v4417 = vrot.slane %v3614, 5
      %v4418 = vsel %vm1277, %v4416, %v4417
      %v4419 = vrot.slane %v4417, 4
      %v4420 = vrot.slane %v3615, 5
      %v4421 = vsel %vm1277, %v4419, %v4420
      %v4422 = vrot.slane %v4334, 5
      %v4423 = vrot.slane %v4422, 4
      %v4424 = vrot.slane %v3617, 5
      %v4425 = vsel %vm1277, %v4423, %v4424
      %v4426 = vrot.slane %v4424, 4
      %v4427 = vrot.slane %v3618, 5
      %v4428 = vsel %vm1277, %v4426, %v4427
      %v4429 = vrot.slane %v4335, 5
      %v4430 = vrot.slane %v4429, 4
      %v4431 = vrot.slane %v3620, 5
      %v4432 = vsel %vm1277, %v4430, %v4431
      %v4433 = vrot.slane %v4431, 4
      %v4434 = vrot.slane %v3621, 5
      %v4435 = vsel %vm1277, %v4433, %v4434
      %v4436 = vrot.slane %v4336, 5
      %v4437 = vrot.slane %v4436, 4
      %v4438 = vrot.slane %v3623, 5
      %v4439 = vsel %vm1277, %v4437, %v4438
      %v4440 = vrot.slane %v4438, 4
      %v4441 = vrot.slane %v3624, 5
      %v4442 = vsel %vm1277, %v4440, %v4441
      %v4443 = vrot.slane %v4337, 5
      %v4444 = vrot.slane %v4443, 4
      %v4445 = vrot.slane %v3626, 5
      %v4446 = vsel %vm1277, %v4444, %v4445
      %v4447 = vrot.slane %v4445, 4
      %v4448 = vrot.slane %v3627, 5
      %v4449 = vsel %vm1277, %v4447, %v4448
      %v4450 = vrot.slane %v4338, 5
      %v4451 = vrot.slane %v4450, 4
      %v4452 = vrot.slane %v3629, 5
      %v4453 = vsel %vm1277, %v4451, %v4452
      %v4454 = vrot.slane %v4452, 4
      %v4455 = vrot.slane %v3630, 5
      %v4456 = vsel %vm1277, %v4454, %v4455
      %v4457 = vrot.slane %v4339, 5
      %v4458 = vrot.slane %v4457, 4
      %v4459 = vrot.slane %v3632, 5
      %v4460 = vsel %vm1277, %v4458, %v4459
      %v4461 = vrot.slane %v4459, 4
      %v4462 = vrot.slane %v3633, 5
      %v4463 = vsel %vm1277, %v4461, %v4462
      %v4464 = vrot.slane %v4340, 5
      %v4465 = vrot.slane %v4464, 4
      %v4466 = vrot.slane %v3635, 5
      %v4467 = vsel %vm1277, %v4465, %v4466
      %v4468 = vrot.slane %v4466, 4
      %v4469 = vrot.slane %v3636, 5
      %v4470 = vsel %vm1277, %v4468, %v4469
      %v4471 = vrot.slane %v4341, 5
      %v4472 = vrot.slane %v4471, 4
      %v4473 = vrot.slane %v3638, 5
      %v4474 = vsel %vm1277, %v4472, %v4473
      %v4475 = vrot.slane %v4473, 4
      %v4476 = vrot.slane %v3639, 5
      %v4477 = vsel %vm1277, %v4475, %v4476
      %v4478 = vrot.slane %v4342, 5
      %v4479 = vrot.slane %v4478, 4
      %v4480 = vrot.slane %v3641, 5
      %v4481 = vsel %vm1277, %v4479, %v4480
      %v4482 = vrot.slane %v4480, 4
      %v4483 = vrot.slane %v3642, 5
      %v4484 = vsel %vm1277, %v4482, %v4483
      %v4485 = vrot.slane %v4343, 5
      %v4486 = vrot.slane %v4485, 4
      %v4487 = vrot.slane %v3644, 5
      %v4488 = vsel %vm1277, %v4486, %v4487
      %v4489 = vrot.slane %v4487, 4
      %v4490 = vrot.slane %v3645, 5
      %v4491 = vsel %vm1277, %v4489, %v4490
      %v4492 = vrot.slane %v4344, 5
      %v4493 = vrot.slane %v4492, 4
      %v4494 = vrot.slane %v3647, 5
      %v4495 = vsel %vm1277, %v4493, %v4494
      %v4496 = vrot.slane %v4494, 4
      %v4497 = vrot.slane %v3648, 5
      %v4498 = vsel %vm1277, %v4496, %v4497
      %v4499 = vrot.slane %v4345, 5
      %v4500 = vrot.slane %v4499, 4
      %v4501 = vrot.slane %v3650, 5
      %v4502 = vsel %vm1277, %v4500, %v4501
      %v4503 = vrot.slane %v4501, 4
      %v4504 = vrot.slane %v3651, 5
      %v4505 = vsel %vm1277, %v4503, %v4504
      %s4506 = scalar_lea.vmem %s215, 16
      %v4507 = vld [vmem:[%s4506] sm:$0x3]
      %v4508 = vunpack.c.l.b16 %v4397
      %v4509 = vunpack.c.l.b16 %v4400
      %v4510 = vunpack.c.l.b16 %v4404
      %v4511 = vunpack.c.l.b16 %v4407
      %v4512 = vunpack.c.l.b16 %v4411
      %v4513 = vunpack.c.l.b16 %v4414
      %v4514 = vunpack.c.l.b16 %v4418
      %v4515 = vunpack.c.l.b16 %v4421
      %v4516 = vunpack.c.l.b16 %v4425
      %v4517 = vunpack.c.l.b16 %v4428
      %v4518 = vunpack.c.l.b16 %v4432
      %v4519 = vunpack.c.l.b16 %v4435
      %v4520 = vunpack.c.l.b16 %v4439
      %v4521 = vunpack.c.l.b16 %v4442
      %v4522 = vunpack.c.l.b16 %v4446
      %v4523 = vunpack.c.l.b16 %v4449
      %v4524 = vunpack.c.l.b16 %v4453
      %v4525 = vunpack.c.l.b16 %v4456
      %v4526 = vunpack.c.l.b16 %v4460
      %v4527 = vunpack.c.l.b16 %v4463
      %v4528 = vunpack.c.l.b16 %v4467
      %v4529 = vunpack.c.l.b16 %v4470
      %v4530 = vunpack.c.l.b16 %v4474
      %v4531 = vunpack.c.l.b16 %v4477
      %v4532 = vunpack.c.l.b16 %v4481
      %v4533 = vunpack.c.l.b16 %v4484
      %v4534 = vunpack.c.l.b16 %v4488
      %v4535 = vunpack.c.l.b16 %v4491
      %v4536 = vunpack.c.l.b16 %v4495
      %v4537 = vunpack.c.l.b16 %v4498
      %v4538 = vunpack.c.l.b16 %v4502
      %v4539 = vunpack.c.l.b16 %v4505
      %v4540 = vpack.c.b16 %v4509, %v4508
      %v4541 = vpack.c.b16 %v4511, %v4510
      %v4542 = vpack.c.b16 %v4513, %v4512
      %v4543 = vpack.c.b16 %v4515, %v4514
      %v4544 = vpack.c.b16 %v4517, %v4516
      %v4545 = vpack.c.b16 %v4519, %v4518
      %v4546 = vpack.c.b16 %v4521, %v4520
      %v4547 = vpack.c.b16 %v4523, %v4522
      %v4548 = vpack.c.b16 %v4525, %v4524
      %v4549 = vpack.c.b16 %v4527, %v4526
      %v4550 = vpack.c.b16 %v4529, %v4528
      %v4551 = vpack.c.b16 %v4531, %v4530
      %v4552 = vpack.c.b16 %v4533, %v4532
      %v4553 = vpack.c.b16 %v4535, %v4534
      %v4554 = vpack.c.b16 %v4537, %v4536
      %v4555 = vpack.c.b16 %v4539, %v4538
      %v4557 = vsel %vm721, %v4540, 0
      %v4560 = vsel %vm721, %v4541, 0
      %v4563 = vsel %vm721, %v4542, 0
      %v4566 = vsel %vm721, %v4543, 0
      %v4569 = vsel %vm721, %v4544, 0
      %v4572 = vsel %vm721, %v4545, 0
      %v4575 = vsel %vm721, %v4546, 0
      %v4578 = vsel %vm721, %v4547, 0
      %v4581 = vsel %vm721, %v4548, 0
      %v4584 = vsel %vm721, %v4549, 0
      %v4587 = vsel %vm721, %v4550, 0
      %v4590 = vsel %vm721, %v4551, 0
      %v4593 = vsel %vm721, %v4552, 0
      %v4596 = vsel %vm721, %v4553, 0
      %v4599 = vsel %vm721, %v4554, 0
      %v4602 = vsel %vm721, %v4555, 0
      %v4605 = vsel %vm770, %v4507, 0
      %4607 = vmatprep.subr.bf16.mxu0 0
      %4608 = vmatpush1.bf16.msra.mxu0 0
      %4609 = vmatprep.subr.bf16.mxu0 0
      %4610 = vmatpush1.bf16.msra.mxu0 0
      %4611 = vmatprep.subr.bf16.mxu0 0
      %4612 = vmatpush1.bf16.msra.mxu0 0
      %4613 = vmatprep.subr.bf16.mxu0 0
      %4614 = vmatpush1.bf16.msra.mxu0 0
      %4615 = vmatprep.subr.bf16.mxu0 0
      %4616 = vmatpush1.bf16.msra.mxu0 0
      %4617 = vmatprep.subr.bf16.mxu0 0
      %4618 = vmatpush1.bf16.msra.mxu0 0
      %4619 = vmatprep.subr.bf16.mxu0 0
      %4620 = vmatpush1.bf16.msra.mxu0 0
      %4621 = vmatprep.subr.bf16.mxu0 0
      %4622 = vmatpush1.bf16.msra.mxu0 %v4605
      %4623 = vmatprep.subr.bf16.mxu0 0
      %4624 = vmatpush2.bf16.msra.mxu0 0
      %4625 = vmatprep.subr.bf16.mxu0 0
      %4626 = vmatpush2.bf16.msra.mxu0 0
      %4627 = vmatprep.subr.bf16.mxu0 0
      %4628 = vmatpush2.bf16.msra.mxu0 0
      %4629 = vmatprep.subr.bf16.mxu0 0
      %4630 = vmatpush2.bf16.msra.mxu0 0
      %4631 = vmatprep.subr.bf16.mxu0 0
      %4632 = vmatpush2.bf16.msra.mxu0 0
      %4633 = vmatprep.subr.bf16.mxu0 0
      %4634 = vmatpush2.bf16.msra.mxu0 0
      %4635 = vmatprep.subr.bf16.mxu0 0
      %4636 = vmatpush2.bf16.msra.mxu0 0
      %4637 = vmatprep.subr.bf16.mxu0 0
      %4638 = vmatpush2.bf16.msra.mxu0 0
      %4639 = vmatprep.mubr.bf16.mxu0 0
      %4640 = vmatmul.mubr.bf16.gmra.mxu0 %v4557
      %v4641 = vpop.f32.mrf.mxu0
      %v4642 = vadd.f32 0.0, %v4641
      %v4643 = vpop.f32.mrf.mxu0
      %v4644 = vpop.f32.mrf.mxu0
      %v4645 = vadd.f32 0.0, %v4644
      %v4646 = vpop.f32.mrf.mxu0
      %4647 = vmatprep.mubr.bf16.mxu0 0
      %4648 = vmatmul.mubr.bf16.gmra.mxu0 %v4560
      %v4649 = vpop.f32.mrf.mxu0
      %v4650 = vadd.f32 0.0, %v4649
      %v4651 = vpop.f32.mrf.mxu0
      %v4652 = vpop.f32.mrf.mxu0
      %v4653 = vadd.f32 0.0, %v4652
      %v4654 = vpop.f32.mrf.mxu0
      %4655 = vmatprep.mubr.bf16.mxu0 0
      %4656 = vmatmul.mubr.bf16.gmra.mxu0 %v4563
      %v4657 = vpop.f32.mrf.mxu0
      %v4658 = vadd.f32 0.0, %v4657
      %v4659 = vpop.f32.mrf.mxu0
      %v4660 = vpop.f32.mrf.mxu0
      %v4661 = vadd.f32 0.0, %v4660
      %v4662 = vpop.f32.mrf.mxu0
      %4663 = vmatprep.mubr.bf16.mxu0 0
      %4664 = vmatmul.mubr.bf16.gmra.mxu0 %v4566
      %v4665 = vpop.f32.mrf.mxu0
      %v4666 = vadd.f32 0.0, %v4665
      %v4667 = vpop.f32.mrf.mxu0
      %v4668 = vpop.f32.mrf.mxu0
      %v4669 = vadd.f32 0.0, %v4668
      %v4670 = vpop.f32.mrf.mxu0
      %4671 = vmatprep.mubr.bf16.mxu0 0
      %4672 = vmatmul.mubr.bf16.gmra.mxu0 %v4569
      %v4673 = vpop.f32.mrf.mxu0
      %v4674 = vadd.f32 0.0, %v4673
      %v4675 = vpop.f32.mrf.mxu0
      %v4676 = vpop.f32.mrf.mxu0
      %v4677 = vadd.f32 0.0, %v4676
      %v4678 = vpop.f32.mrf.mxu0
      %4679 = vmatprep.mubr.bf16.mxu0 0
      %4680 = vmatmul.mubr.bf16.gmra.mxu0 %v4572
      %v4681 = vpop.f32.mrf.mxu0
      %v4682 = vadd.f32 0.0, %v4681
      %v4683 = vpop.f32.mrf.mxu0
      %v4684 = vpop.f32.mrf.mxu0
      %v4685 = vadd.f32 0.0, %v4684
      %v4686 = vpop.f32.mrf.mxu0
      %4687 = vmatprep.mubr.bf16.mxu0 0
      %4688 = vmatmul.mubr.bf16.gmra.mxu0 %v4575
      %v4689 = vpop.f32.mrf.mxu0
      %v4690 = vadd.f32 0.0, %v4689
      %v4691 = vpop.f32.mrf.mxu0
      %v4692 = vpop.f32.mrf.mxu0
      %v4693 = vadd.f32 0.0, %v4692
      %v4694 = vpop.f32.mrf.mxu0
      %4695 = vmatprep.mubr.bf16.mxu0 0
      %4696 = vmatmul.mubr.bf16.gmra.mxu0 %v4578
      %v4697 = vpop.f32.mrf.mxu0
      %v4698 = vadd.f32 0.0, %v4697
      %v4699 = vpop.f32.mrf.mxu0
      %v4700 = vpop.f32.mrf.mxu0
      %v4701 = vadd.f32 0.0, %v4700
      %v4702 = vpop.f32.mrf.mxu0
      %4703 = vmatprep.mubr.bf16.mxu0 0
      %4704 = vmatmul.mubr.bf16.gmra.mxu0 %v4581
      %v4705 = vpop.f32.mrf.mxu0
      %v4706 = vadd.f32 0.0, %v4705
      %v4707 = vpop.f32.mrf.mxu0
      %v4708 = vpop.f32.mrf.mxu0
      %v4709 = vadd.f32 0.0, %v4708
      %v4710 = vpop.f32.mrf.mxu0
      %4711 = vmatprep.mubr.bf16.mxu0 0
      %4712 = vmatmul.mubr.bf16.gmra.mxu0 %v4584
      %v4713 = vpop.f32.mrf.mxu0
      %v4714 = vadd.f32 0.0, %v4713
      %v4715 = vpop.f32.mrf.mxu0
      %v4716 = vpop.f32.mrf.mxu0
      %v4717 = vadd.f32 0.0, %v4716
      %v4718 = vpop.f32.mrf.mxu0
      %4719 = vmatprep.mubr.bf16.mxu0 0
      %4720 = vmatmul.mubr.bf16.gmra.mxu0 %v4587
      %v4721 = vpop.f32.mrf.mxu0
      %v4722 = vadd.f32 0.0, %v4721
      %v4723 = vpop.f32.mrf.mxu0
      %v4724 = vpop.f32.mrf.mxu0
      %v4725 = vadd.f32 0.0, %v4724
      %v4726 = vpop.f32.mrf.mxu0
      %4727 = vmatprep.mubr.bf16.mxu0 0
      %4728 = vmatmul.mubr.bf16.gmra.mxu0 %v4590
      %v4729 = vpop.f32.mrf.mxu0
      %v4730 = vadd.f32 0.0, %v4729
      %v4731 = vpop.f32.mrf.mxu0
      %v4732 = vpop.f32.mrf.mxu0
      %v4733 = vadd.f32 0.0, %v4732
      %v4734 = vpop.f32.mrf.mxu0
      %4735 = vmatprep.mubr.bf16.mxu0 0
      %4736 = vmatmul.mubr.bf16.gmra.mxu0 %v4593
      %v4737 = vpop.f32.mrf.mxu0
      %v4738 = vadd.f32 0.0, %v4737
      %v4739 = vpop.f32.mrf.mxu0
      %v4740 = vpop.f32.mrf.mxu0
      %v4741 = vadd.f32 0.0, %v4740
      %v4742 = vpop.f32.mrf.mxu0
      %4743 = vmatprep.mubr.bf16.mxu0 0
      %4744 = vmatmul.mubr.bf16.gmra.mxu0 %v4596
      %v4745 = vpop.f32.mrf.mxu0
      %v4746 = vadd.f32 0.0, %v4745
      %v4747 = vpop.f32.mrf.mxu0
      %v4748 = vpop.f32.mrf.mxu0
      %v4749 = vadd.f32 0.0, %v4748
      %v4750 = vpop.f32.mrf.mxu0
      %4751 = vmatprep.mubr.bf16.mxu0 0
      %4752 = vmatmul.mubr.bf16.gmra.mxu0 %v4599
      %v4753 = vpop.f32.mrf.mxu0
      %v4754 = vadd.f32 0.0, %v4753
      %v4755 = vpop.f32.mrf.mxu0
      %v4756 = vpop.f32.mrf.mxu0
      %v4757 = vadd.f32 0.0, %v4756
      %v4758 = vpop.f32.mrf.mxu0
      %4759 = vmatprep.mubr.bf16.mxu0 0
      %4760 = vmatmul.mubr.bf16.gmra.mxu0 %v4602
      %v4761 = vpop.f32.mrf.mxu0
      %v4762 = vadd.f32 0.0, %v4761
      %v4763 = vpop.f32.mrf.mxu0
      %v4764 = vpop.f32.mrf.mxu0
      %v4765 = vadd.f32 0.0, %v4764
      %v4766 = vpop.f32.mrf.mxu0
      %4767 = vdwg.mxu0
      %v4768 = vadd.f32 %v4298, %v4642
      %v4769 = vadd.f32 %v4299, %v4645
      %v4770 = vadd.f32 %v4300, %v4650
      %v4771 = vadd.f32 %v4301, %v4653
      %v4772 = vadd.f32 %v4302, %v4658
      %v4773 = vadd.f32 %v4303, %v4661
      %v4774 = vadd.f32 %v4304, %v4666
      %v4775 = vadd.f32 %v4305, %v4669
      %v4776 = vadd.f32 %v4306, %v4674
      %v4777 = vadd.f32 %v4307, %v4677
      %v4778 = vadd.f32 %v4308, %v4682
      %v4779 = vadd.f32 %v4309, %v4685
      %v4780 = vadd.f32 %v4310, %v4690
      %v4781 = vadd.f32 %v4311, %v4693
      %v4782 = vadd.f32 %v4312, %v4698
      %v4783 = vadd.f32 %v4313, %v4701
      %v4784 = vadd.f32 %v4314, %v4706
      %v4785 = vadd.f32 %v4315, %v4709
      %v4786 = vadd.f32 %v4316, %v4714
      %v4787 = vadd.f32 %v4317, %v4717
      %v4788 = vadd.f32 %v4318, %v4722
      %v4789 = vadd.f32 %v4319, %v4725
      %v4790 = vadd.f32 %v4320, %v4730
      %v4791 = vadd.f32 %v4321, %v4733
      %v4792 = vadd.f32 %v4322, %v4738
      %v4793 = vadd.f32 %v4323, %v4741
      %v4794 = vadd.f32 %v4324, %v4746
      %v4795 = vadd.f32 %v4325, %v4749
      %v4796 = vadd.f32 %v4326, %v4754
      %v4797 = vadd.f32 %v4327, %v4757
      %v4798 = vadd.f32 %v4328, %v4762
      %v4799 = vadd.f32 %v4329, %v4765
      %v4800 = vld [vmem:[%s218] sm:$0x1]
      %v4802 = vlaneseq
      %v4803 = vshrl.u32 %v4802, 7
      %v4804 = vsub.s32 0, %v4803
      %v4805 = vrot.slane %v4800, %v4804
      %v4807 = vadd.f32 %v4768, %v4805
      %v4808 = vadd.f32 %v4769, %v4805
      %v4809 = vadd.f32 %v4770, %v4805
      %v4810 = vadd.f32 %v4771, %v4805
      %v4811 = vadd.f32 %v4772, %v4805
      %v4812 = vadd.f32 %v4773, %v4805
      %v4813 = vadd.f32 %v4774, %v4805
      %v4814 = vadd.f32 %v4775, %v4805
      %v4815 = vadd.f32 %v4776, %v4805
      %v4816 = vadd.f32 %v4777, %v4805
      %v4817 = vadd.f32 %v4778, %v4805
      %v4818 = vadd.f32 %v4779, %v4805
      %v4819 = vadd.f32 %v4780, %v4805
      %v4820 = vadd.f32 %v4781, %v4805
      %v4821 = vadd.f32 %v4782, %v4805
      %v4822 = vadd.f32 %v4783, %v4805
      %v4823 = vadd.f32 %v4784, %v4805
      %v4824 = vadd.f32 %v4785, %v4805
      %v4825 = vadd.f32 %v4786, %v4805
      %v4826 = vadd.f32 %v4787, %v4805
      %v4827 = vadd.f32 %v4788, %v4805
      %v4828 = vadd.f32 %v4789, %v4805
      %v4829 = vadd.f32 %v4790, %v4805
      %v4830 = vadd.f32 %v4791, %v4805
      %v4831 = vadd.f32 %v4792, %v4805
      %v4832 = vadd.f32 %v4793, %v4805
      %v4833 = vadd.f32 %v4794, %v4805
      %v4834 = vadd.f32 %v4795, %v4805
      %v4835 = vadd.f32 %v4796, %v4805
      %v4836 = vadd.f32 %v4797, %v4805
      %v4837 = vadd.f32 %v4798, %v4805
      %v4838 = vadd.f32 %v4799, %v4805
      %v4839 = vpack.c.bf16 %v4808, %v4807
      %v4840 = vpack.c.bf16 %v4810, %v4809
      %v4841 = vpack.c.bf16 %v4812, %v4811
      %v4842 = vpack.c.bf16 %v4814, %v4813
      %v4843 = vpack.c.bf16 %v4816, %v4815
      %v4844 = vpack.c.bf16 %v4818, %v4817
      %v4845 = vpack.c.bf16 %v4820, %v4819
      %v4846 = vpack.c.bf16 %v4822, %v4821
      %v4847 = vpack.c.bf16 %v4824, %v4823
      %v4848 = vpack.c.bf16 %v4826, %v4825
      %v4849 = vpack.c.bf16 %v4828, %v4827
      %v4850 = vpack.c.bf16 %v4830, %v4829
      %v4851 = vpack.c.bf16 %v4832, %v4831
      %v4852 = vpack.c.bf16 %v4834, %v4833
      %v4853 = vpack.c.bf16 %v4836, %v4835
      %v4854 = vpack.c.bf16 %v4838, %v4837
      %v4871 = vunpack.c.l.b16 %v4839
      %v4872 = vunpack.c.h.b16 %v4839
      %v4873 = vunpack.c.l.b16 %v4840
      %v4874 = vunpack.c.h.b16 %v4840
      %v4875 = vunpack.c.l.b16 %v4841
      %v4876 = vunpack.c.h.b16 %v4841
      %v4877 = vunpack.c.l.b16 %v4842
      %v4878 = vunpack.c.h.b16 %v4842
      %v4879 = vunpack.c.l.b16 %v4843
      %v4880 = vunpack.c.h.b16 %v4843
      %v4881 = vunpack.c.l.b16 %v4844
      %v4882 = vunpack.c.h.b16 %v4844
      %v4883 = vunpack.c.l.b16 %v4845
      %v4884 = vunpack.c.h.b16 %v4845
      %v4885 = vunpack.c.l.b16 %v4846
      %v4886 = vunpack.c.h.b16 %v4846
      %v4887 = vunpack.c.l.b16 %v4847
      %v4888 = vunpack.c.h.b16 %v4847
      %v4889 = vunpack.c.l.b16 %v4848
      %v4890 = vunpack.c.h.b16 %v4848
      %v4891 = vunpack.c.l.b16 %v4849
      %v4892 = vunpack.c.h.b16 %v4849
      %v4893 = vunpack.c.l.b16 %v4850
      %v4894 = vunpack.c.h.b16 %v4850
      %v4895 = vunpack.c.l.b16 %v4851
      %v4896 = vunpack.c.h.b16 %v4851
      %v4897 = vunpack.c.l.b16 %v4852
      %v4898 = vunpack.c.h.b16 %v4852
      %v4899 = vunpack.c.l.b16 %v4853
      %v4900 = vunpack.c.h.b16 %v4853
      %v4901 = vunpack.c.l.b16 %v4854
      %v4902 = vunpack.c.h.b16 %v4854
      %v4903 = vpack.c.b16 %v4871, %v4871
      %v4904 = vpack.c.b16 %v4872, %v4872
      %v4905 = vpack.c.b16 %v4873, %v4873
      %v4906 = vpack.c.b16 %v4874, %v4874
      %v4907 = vpack.c.b16 %v4875, %v4875
      %v4908 = vpack.c.b16 %v4876, %v4876
      %v4909 = vpack.c.b16 %v4877, %v4877
      %v4910 = vpack.c.b16 %v4878, %v4878
      %v4911 = vpack.c.b16 %v4879, %v4879
      %v4912 = vpack.c.b16 %v4880, %v4880
      %v4913 = vpack.c.b16 %v4881, %v4881
      %v4914 = vpack.c.b16 %v4882, %v4882
      %v4915 = vpack.c.b16 %v4883, %v4883
      %v4916 = vpack.c.b16 %v4884, %v4884
      %v4917 = vpack.c.b16 %v4885, %v4885
      %v4918 = vpack.c.b16 %v4886, %v4886
      %v4919 = vpack.c.b16 %v4887, %v4887
      %v4920 = vpack.c.b16 %v4888, %v4888
      %v4921 = vpack.c.b16 %v4889, %v4889
      %v4922 = vpack.c.b16 %v4890, %v4890
      %v4923 = vpack.c.b16 %v4891, %v4891
      %v4924 = vpack.c.b16 %v4892, %v4892
      %v4925 = vpack.c.b16 %v4893, %v4893
      %v4926 = vpack.c.b16 %v4894, %v4894
      %v4927 = vpack.c.b16 %v4895, %v4895
      %v4928 = vpack.c.b16 %v4896, %v4896
      %v4929 = vpack.c.b16 %v4897, %v4897
      %v4930 = vpack.c.b16 %v4898, %v4898
      %v4931 = vpack.c.b16 %v4899, %v4899
      %v4932 = vpack.c.b16 %v4900, %v4900
      %v4933 = vpack.c.b16 %v4901, %v4901
      %v4934 = vpack.c.b16 %v4902, %v4902
      %vm4967 = vcmask 60416
      %4968 = vst.msk [vmem:[%s228] sm:$0xf] %vm4967, %v4903
      %4969 = vst.msk [vmem:[%s228 + $0x4] sm:$0xf] %vm4967, %v4904
      %4970 = vst.msk [vmem:[%s228 + $0x8] sm:$0xf] %vm4967, %v4905
      %4971 = vst.msk [vmem:[%s228 + $0xc] sm:$0xf] %vm4967, %v4906
      %4972 = vst.msk [vmem:[%s228 + $0x10] sm:$0xf] %vm4967, %v4907
      %4973 = vst.msk [vmem:[%s228 + $0x14] sm:$0xf] %vm4967, %v4908
      %4974 = vst.msk [vmem:[%s228 + $0x18] sm:$0xf] %vm4967, %v4909
      %4975 = vst.msk [vmem:[%s228 + $0x1c] sm:$0xf] %vm4967, %v4910
      %4976 = vst.msk [vmem:[%s228 + $0x20] sm:$0xf] %vm4967, %v4911
      %4977 = vst.msk [vmem:[%s228 + $0x24] sm:$0xf] %vm4967, %v4912
      %4978 = vst.msk [vmem:[%s228 + $0x28] sm:$0xf] %vm4967, %v4913
      %4979 = vst.msk [vmem:[%s228 + $0x2c] sm:$0xf] %vm4967, %v4914
      %4980 = vst.msk [vmem:[%s228 + $0x30] sm:$0xf] %vm4967, %v4915
      %4981 = vst.msk [vmem:[%s228 + $0x34] sm:$0xf] %vm4967, %v4916
      %4982 = vst.msk [vmem:[%s228 + $0x38] sm:$0xf] %vm4967, %v4917
      %4983 = vst.msk [vmem:[%s228 + $0x3c] sm:$0xf] %vm4967, %v4918
      %4984 = vst.msk [vmem:[%s228 + $0x40] sm:$0xf] %vm4967, %v4919
      %4985 = vst.msk [vmem:[%s228 + $0x44] sm:$0xf] %vm4967, %v4920
      %4986 = vst.msk [vmem:[%s228 + $0x48] sm:$0xf] %vm4967, %v4921
      %4987 = vst.msk [vmem:[%s228 + $0x4c] sm:$0xf] %vm4967, %v4922
      %4988 = vst.msk [vmem:[%s228 + $0x50] sm:$0xf] %vm4967, %v4923
      %4989 = vst.msk [vmem:[%s228 + $0x54] sm:$0xf] %vm4967, %v4924
      %4990 = vst.msk [vmem:[%s228 + $0x58] sm:$0xf] %vm4967, %v4925
      %4991 = vst.msk [vmem:[%s228 + $0x5c] sm:$0xf] %vm4967, %v4926
      %4992 = vst.msk [vmem:[%s228 + $0x60] sm:$0xf] %vm4967, %v4927
      %4993 = vst.msk [vmem:[%s228 + $0x64] sm:$0xf] %vm4967, %v4928
      %4994 = vst.msk [vmem:[%s228 + $0x68] sm:$0xf] %vm4967, %v4929
      %4995 = vst.msk [vmem:[%s228 + $0x6c] sm:$0xf] %vm4967, %v4930
      %4996 = vst.msk [vmem:[%s228 + $0x70] sm:$0xf] %vm4967, %v4931
      %4997 = vst.msk [vmem:[%s228 + $0x74] sm:$0xf] %vm4967, %v4932
      %4998 = vst.msk [vmem:[%s228 + $0x78] sm:$0xf] %vm4967, %v4933
      %4999 = vst.msk [vmem:[%s228 + $0x7c] sm:$0xf] %vm4967, %v4934
      %s5000 = smul.u32 16, %s19
      %p5001 = scmp.lt.s32.totalorder %s18, 1
      %s5002 = scalar_select %p5001, %s18, 1
      %p5003 = scmp.lt.s32.totalorder %s5000, 15
      %s5004 = scalar_select %p5003, %s5000, 15
      %s5005 = smul.addr %s5004, 2
      %s5006 = smul.addr %s5002, 32
      %s5007 = sadd.s32 %s5005, %s5006
      %s5008 = smul.addr %s5007, 4
      %s5009 = scalar_lea.vmem %s3, %s5008
      // Predicated region
      $region33: #{new_struct_lora_conv.1} parent=31 // pred_check
        %p5010 = pneg %p124
      $region34: #{new_struct_lora_conv.1} parent=31 // pred_check_branch
        %5012 = sbr.rel (%p5010) target = $region36
      $region35: #{new_struct_lora_conv.1} parent=31 // pred_region
        %s5013 = smul.u32 16, %s19
      $region36: #{new_struct_lora_conv.1} parent=31 // pred_fallthru
        _
    $region32: #{new_struct_lora_conv.1} parent=5 // pred_fallthru
      _
    %p5014 = scmp.le.s32.totalorder 2, %s9
    // Predicated region
    $region37: #{new_struct_lora_conv.1} parent=5 // pred_check
      %p5015 = pneg %p5014
    $region38: #{new_struct_lora_conv.1} parent=5 // pred_check_branch
      %5017 = sbr.rel (%p5015) target = $region40
    $region39: #{new_struct_lora_conv.1} parent=5 // pred_region
      %s5018 = ssub.s32 %s9, 2
      // Predicated region
      $region41: #{new_struct_lora_conv.1} parent=39 // pred_check
        %p5019 = pneg %p130
      $region42: #{new_struct_lora_conv.1} parent=39 // pred_check_branch
        %5021 = sbr.rel (%p5019) target = $region44
      $region43: #{new_struct_lora_conv.1} parent=39 // pred_region
        %s5022 = smul.u32 16, %s21
        %p5023 = scmp.lt.s32.totalorder %s20, 1
        %s5024 = scalar_select %p5023, %s20, 1
        %p5025 = scmp.lt.s32.totalorder %s5022, 15
        %s5026 = scalar_select %p5025, %s5022, 15
        %s5027 = smul.addr %s5026, 2
        %s5028 = smul.addr %s5024, 32
        %s5029 = sadd.s32 %s5027, %s5028
        %s5030 = smul.addr %s5029, 4
        %s5031 = scalar_lea.vmem %s3, %s5030
      $region44: #{new_struct_lora_conv.1} parent=39 // pred_fallthru
        _
    $region40: #{new_struct_lora_conv.1} parent=5 // pred_fallthru
      _
  $region6: #{new_struct_lora_conv.1} parent=0 // loop_footer
    %s13 = sadd.s32 1, %s9
  $region7: #{new_struct_lora_conv.1} parent=0 // loop_footer_branch
    %8 = sbr.rel target = $region3
  $region8: #{new_struct_lora_conv.1} parent=0 // loop_exit
    _

</llo_original>
